<compile_context>
chip_gen: v6e
topology: v6e:2x2x1
jax: 0.10.0
libtpu: 0.0.40
codegen_flags: <defaults>
</compile_context>

<pallas_src>
import functools

import jax
import jax.numpy as jnp
from jax import lax
from jax.experimental import pallas as pl
from jax.experimental.pallas import tpu as pltpu

BN_EPS = 1e-5

# Static architecture config == PyTorch MyModel defaults.
NUM_FILTER = (16, 16, 16, 16, 16)
KERNEL = (5, 5, 5, 5, 5)
STRIDE = (1, 1, 1, 1, 1)
PADDING = (1, 1, 1, 1, 1)
IN_CHANNELS = 4
DENSE_DIM = 256
NUM_CLASSES = 10


def _round_up(x, m):
    return (x + m - 1) // m * m


# ---------------------------------------------------------------------------
# Pallas GEMM kernel:  out = maybe_relu(x @ w + bias)
# Single reduction step (tk == K), bias/BN shift fused in the epilogue,
# output accumulated directly in o_ref (no VMEM scratch).
# ---------------------------------------------------------------------------
def _gemm_bias_kernel(x_ref, w_ref, b_ref, o_ref, *, relu):
    y = jnp.dot(x_ref[...], w_ref[...], preferred_element_type=jnp.float32)
    y = y + b_ref[...]
    if relu:
        y = jnp.maximum(y, 0.0)
    o_ref[...] = y.astype(o_ref.dtype)


def pallas_gemm_bias(x, w, bias, relu=False, tm_cap=512):
    """x: (M, K) f32, w: (K, N) f32 (pre-folded), bias: (N,) f32."""
    M, K = x.shape
    K2, N = w.shape
    assert K == K2

    tm = min(tm_cap, _round_up(M, 8))
    Mp = _round_up(M, tm)
    if Mp != M:
        x = jnp.pad(x, ((0, Mp - M), (0, 0)))

    bias2 = bias.reshape(1, N).astype(jnp.float32)
    grid = (Mp // tm,)

    out = pl.pallas_call(
        functools.partial(_gemm_bias_kernel, relu=relu),
        out_shape=jax.ShapeDtypeStruct((Mp, N), jnp.float32),
        grid_spec=pltpu.PrefetchScalarGridSpec(
            num_scalar_prefetch=0,
            grid=grid,
            in_specs=[
                pl.BlockSpec((tm, K), lambda i: (i, 0)),   # row tile of patches
                pl.BlockSpec((K, N), lambda i: (0, 0)),    # whole weight, resident
                pl.BlockSpec((1, N), lambda i: (0, 0)),    # fused bias/BN shift
            ],
            out_specs=pl.BlockSpec((tm, N), lambda i: (i, 0)),
        ),
        compiler_params=pltpu.CompilerParams(
            dimension_semantics=("parallel",)),
    )(x.astype(jnp.float32), w.astype(jnp.float32), bias2)
    return out[:M]


# ---------------------------------------------------------------------------
# NHWC im2col (layout glue) + conv/BN/ReLU via the Pallas GEMM
# ---------------------------------------------------------------------------
def _im2col_nhwc(x, kh, kw, stride, padding):
    B, H, W, C = x.shape
    xp = jnp.pad(x, ((0, 0), (padding, padding), (padding, padding), (0, 0)))
    Ho = (H + 2 * padding - kh) // stride + 1
    Wo = (W + 2 * padding - kw) // stride + 1
    cols = []
    for i in range(kh):
        for j in range(kw):
            cols.append(xp[:, i:i + stride * Ho:stride, j:j + stride * Wo:stride, :])
    patches = jnp.stack(cols, axis=3)                 # (B, Ho, Wo, kh*kw, C)
    patches = patches.reshape(B * Ho * Wo, kh * kw * C)
    return patches, Ho, Wo


def conv_bn_act(x_nhwc, wmat, shift, k, stride, padding):
    B = x_nhwc.shape[0]
    patches, Ho, Wo = _im2col_nhwc(x_nhwc, k, k, stride, padding)
    y = pallas_gemm_bias(patches, wmat, shift, relu=True)
    return y.reshape(B, Ho, Wo, -1)


def maxpool2x2(x):
    """MaxPool2d(kernel_size=2) in NHWC, floor mode (drops odd row/col)."""
    B, H, W, C = x.shape
    Hc, Wc = (H // 2) * 2, (W // 2) * 2
    x = x[:, :Hc, :Wc, :].reshape(B, Hc // 2, 2, Wc // 2, 2, C)
    return x.max(axis=(2, 4))


# ---------------------------------------------------------------------------
# Parameters: raw (PyTorch-layout) init + one-time folding into GEMM form
# ---------------------------------------------------------------------------
def init_params(key):
    keys = jax.random.split(key, 16)
    ki = 0
    raw = {"conv_w": [], "conv_b": [],
           "bn_gamma": [], "bn_beta": [], "bn_mean": [], "bn_var": []}
    cin = IN_CHANNELS
    for cout, k in zip(NUM_FILTER, KERNEL):
        fan_in = cin * k * k
        w = jax.random.normal(keys[ki], (cout, cin, k, k), jnp.float32) * jnp.sqrt(2.0 / fan_in)
        b = jax.random.uniform(keys[ki + 1], (cout,), jnp.float32,
                               -1.0 / jnp.sqrt(fan_in), 1.0 / jnp.sqrt(fan_in))
        ki += 2
        raw["conv_w"].append(w)
        raw["conv_b"].append(b)
        # Eval-mode BatchNorm with PyTorch-default buffers.
        raw["bn_gamma"].append(jnp.ones((cout,), jnp.float32))
        raw["bn_beta"].append(jnp.zeros((cout,), jnp.float32))
        raw["bn_mean"].append(jnp.zeros((cout,), jnp.float32))
        raw["bn_var"].append(jnp.ones((cout,), jnp.float32))
        cin = cout

    def _linear(key_w, key_b, din, dout):
        bound = 1.0 / jnp.sqrt(din)
        w = jax.random.uniform(key_w, (dout, din), jnp.float32, -bound, bound)
        b = jax.random.uniform(key_b, (dout,), jnp.float32, -bound, bound)
        return w, b

    raw["dense_w"], raw["dense_b"] = _linear(keys[ki], keys[ki + 1], NUM_FILTER[-1], DENSE_DIM)
    raw["fc_w"], raw["fc_b"] = _linear(keys[ki + 2], keys[ki + 3], DENSE_DIM, NUM_CLASSES)
    return raw


def prepare_params(raw):
    """One-time (hoisted out of forward) fold of conv bias + eval BatchNorm into
    GEMM-ready (K, N) weights and epilogue shifts."""
    prep = {"conv_w": [], "conv_b": []}
    for w, b, g, beta, mean, var in zip(raw["conv_w"], raw["conv_b"],
                                        raw["bn_gamma"], raw["bn_beta"],
                                        raw["bn_mean"], raw["bn_var"]):
        scale = g / jnp.sqrt(var + BN_EPS)                       # (Cout,)
        cout, cin, kh, kw = w.shape
        wmat = w.transpose(2, 3, 1, 0).reshape(kh * kw * cin, cout)
        prep["conv_w"].append((wmat * scale[None, :]).astype(jnp.float32))
        prep["conv_b"].append(((b - mean) * scale + beta).astype(jnp.float32))
    prep["dense_w"] = raw["dense_w"].T.astype(jnp.float32)       # (16, 256)
    prep["dense_b"] = raw["dense_b"].astype(jnp.float32)
    prep["fc_w"] = raw["fc_w"].T.astype(jnp.float32)             # (256, 10)
    prep["fc_b"] = raw["fc_b"].astype(jnp.float32)
    return prep


# ---------------------------------------------------------------------------
# Forward pass (semantics of MyModel.forward in eval mode)
# ---------------------------------------------------------------------------
def forward(params, x_nchw):
    # Single NCHW -> NHWC layout change; everything downstream stays NHWC.
    x = jnp.transpose(x_nchw, (0, 2, 3, 1)).astype(jnp.float32)
    for li in range(len(NUM_FILTER)):
        # conv -> BN -> ReLU (all fused into one Pallas GEMM epilogue)
        x = conv_bn_act(x, params["conv_w"][li], params["conv_b"][li],
                        KERNEL[li], STRIDE[li], PADDING[li])
        # Dropout: eval mode -> identity.
        x = maxpool2x2(x)
    # AdaptiveAvgPool2d((1,1)) + flatten == global spatial mean -> (B, 16)
    feat = jnp.mean(x, axis=(1, 2))
    h = pallas_gemm_bias(feat, params["dense_w"], params["dense_b"], relu=False)
    out = pallas_gemm_bias(h, params["fc_w"], params["fc_b"], relu=False)
    return out


# ---------------------------------------------------------------------------
# Pure-JAX reference (for in-script validation only)
# ---------------------------------------------------------------------------
def reference_forward(raw, x_nchw):
    x = x_nchw.astype(jnp.float32)
    for li in range(len(NUM_FILTER)):
        w, b = raw["conv_w"][li], raw["conv_b"][li]
        x = lax.conv_general_dilated(
            x, w, window_strides=(STRIDE[li], STRIDE[li]),
            padding=[(PADDING[li], PADDING[li])] * 2,
            dimension_numbers=("NCHW", "OIHW", "NCHW"),
            precision=lax.Precision.HIGHEST)
        x = x + b[None, :, None, None]
        scale = raw["bn_gamma"][li] / jnp.sqrt(raw["bn_var"][li] + BN_EPS)
        x = (x - raw["bn_mean"][li][None, :, None, None]) * scale[None, :, None, None] \
            + raw["bn_beta"][li][None, :, None, None]
        x = jnp.maximum(x, 0.0)
        x = lax.reduce_window(x, -jnp.inf, lax.max,
                              (1, 1, 2, 2), (1, 1, 2, 2), "VALID")
    feat = jnp.mean(x, axis=(2, 3))
    h = jnp.matmul(feat, raw["dense_w"].T, precision=lax.Precision.HIGHEST) + raw["dense_b"]
    return jnp.matmul(h, raw["fc_w"].T, precision=lax.Precision.HIGHEST) + raw["fc_b"]


if __name__ == "__main__":
    key = jax.random.PRNGKey(0)
    pkey, xkey = jax.random.split(key)

    raw = init_params(pkey)
    params = prepare_params(raw)          # weight prep hoisted out of forward

    # Smallest spatial size for which all five conv(k=5,p=1) + MaxPool2d(2)
    # stages of the module remain valid is 94x94; use 96x96, batch=2, 4 channels.
    x = jax.random.normal(xkey, (2, IN_CHANNELS, 96, 96), jnp.float32)

    fwd = jax.jit(forward)
    out = jax.block_until_ready(fwd(params, x))
    assert out.shape == (2, NUM_CLASSES)
    assert bool(jnp.all(jnp.isfinite(out)))

    ref = jax.block_until_ready(reference_forward(raw, x))
    err = float(jnp.max(jnp.abs(out - ref)))
    ref_scale = float(jnp.max(jnp.abs(ref))) + 1e-6
    assert err <= 2e-2 * ref_scale + 1e-4, f"mismatch: max|diff|={err}, ref scale={ref_scale}"

    print("KERNEL_OK")
</pallas_src>

<mosaic_0001>
module attributes {stable_mosaic.version = 11 : i64} {
  func.func @_gemm_bias_kernel(%arg0: i32, %arg1: memref<512x100xf32, #tpu.memory_space<vmem>>, %arg2: memref<100x16xf32, #tpu.memory_space<vmem>>, %arg3: memref<1x16xf32, #tpu.memory_space<vmem>>, %arg4: memref<512x16xf32, #tpu.memory_space<vmem>>) attributes {dimension_semantics = [#tpu.dimension_semantics<parallel>], iteration_bounds = array<i64: 35>, scalar_prefetch = 0 : i64, scratch_operands = 0 : i64, tpu.core_type = #tpu.core_type<tc>, window_params = [{transform_indices = @transform_0, window_bounds = array<i64: 512, 100>}, {pipeline_mode = #tpu.pipeline_mode<synchronous>, transform_indices = @transform_1, window_bounds = array<i64: 100, 16>}, {pipeline_mode = #tpu.pipeline_mode<synchronous>, transform_indices = @transform_2, window_bounds = array<i64: 1, 16>}, {transform_indices = @transform_3, window_bounds = array<i64: 512, 16>}]} {
    %c0 = arith.constant 0 : index
    %c0_0 = arith.constant 0 : index
    %0 = vector.load %arg1[%c0, %c0_0] : memref<512x100xf32, #tpu.memory_space<vmem>>, vector<512x100xf32>
    %c0_1 = arith.constant 0 : index
    %c0_2 = arith.constant 0 : index
    %1 = vector.load %arg2[%c0_1, %c0_2] : memref<100x16xf32, #tpu.memory_space<vmem>>, vector<100x16xf32>
    %cst = arith.constant dense<0.000000e+00> : vector<512x16xf32>
    %2 = tpu.matmul %0, %1, %cst {dimension_numbers = #tpu.dot_dimension_numbers<[1], [0], [0], [1], [0, 0, 1, 1], [], []>} : vector<512x100xf32>, vector<100x16xf32>, vector<512x16xf32> -> vector<512x16xf32>
    %c0_3 = arith.constant 0 : index
    %c0_4 = arith.constant 0 : index
    %3 = vector.load %arg3[%c0_3, %c0_4] : memref<1x16xf32, #tpu.memory_space<vmem>>, vector<1x16xf32>
    %4 = vector.broadcast %3 : vector<1x16xf32> to vector<512x16xf32>
    %5 = arith.addf %2, %4 : vector<512x16xf32>
    %cst_5 = arith.constant 0.000000e+00 : f32
    %6 = vector.broadcast %cst_5 : f32 to vector<512x16xf32>
    %7 = arith.maximumf %5, %6 : vector<512x16xf32>
    %c0_6 = arith.constant 0 : index
    %c0_7 = arith.constant 0 : index
    %8 = vector.load %arg4[%c0_6, %c0_7] : memref<512x16xf32, #tpu.memory_space<vmem>>, vector<512x16xf32>
    tpu.vector_store %arg4[%c0_6, %c0_7], %7 {strides = array<i32>} : memref<512x16xf32, #tpu.memory_space<vmem>>, vector<512x16xf32>,
    return
  }
  func.func @transform_0(%arg0: i32) -> (i32, i32) {
    %c0_i32 = arith.constant 0 : i32
    %c0_i32_0 = arith.constant 0 : i32
    return %arg0, %c0_i32 : i32, i32
  }
  func.func @transform_1(%arg0: i32) -> (i32, i32) {
    %c0_i32 = arith.constant 0 : i32
    %c0_i32_0 = arith.constant 0 : i32
    %c0_i32_1 = arith.constant 0 : i32
    return %c0_i32, %c0_i32_0 : i32, i32
  }
  func.func @transform_2(%arg0: i32) -> (i32, i32) {
    %c0_i32 = arith.constant 0 : i32
    %c0_i32_0 = arith.constant 0 : i32
    %c0_i32_1 = arith.constant 0 : i32
    return %c0_i32, %c0_i32_0 : i32, i32
  }
  func.func @transform_3(%arg0: i32) -> (i32, i32) {
    %c0_i32 = arith.constant 0 : i32
    %c0_i32_0 = arith.constant 0 : i32
    return %arg0, %c0_i32 : i32, i32
  }
}

module attributes {stable_mosaic.version = 11 : i64} {
  func.func @_gemm_bias_kernel(%arg0: i32, %arg1: memref<512x400xf32, #tpu.memory_space<vmem>>, %arg2: memref<400x16xf32, #tpu.memory_space<vmem>>, %arg3: memref<1x16xf32, #tpu.memory_space<vmem>>, %arg4: memref<512x16xf32, #tpu.memory_space<vmem>>) attributes {dimension_semantics = [#tpu.dimension_semantics<parallel>], iteration_bounds = array<i64: 8>, scalar_prefetch = 0 : i64, scratch_operands = 0 : i64, tpu.core_type = #tpu.core_type<tc>, window_params = [{transform_indices = @transform_0, window_bounds = array<i64: 512, 400>}, {pipeline_mode = #tpu.pipeline_mode<synchronous>, transform_indices = @transform_1, window_bounds = array<i64: 400, 16>}, {pipeline_mode = #tpu.pipeline_mode<synchronous>, transform_indices = @transform_2, window_bounds = array<i64: 1, 16>}, {transform_indices = @transform_3, window_bounds = array<i64: 512, 16>}]} {
    %c0 = arith.constant 0 : index
    %c0_0 = arith.constant 0 : index
    %0 = vector.load %arg1[%c0, %c0_0] : memref<512x400xf32, #tpu.memory_space<vmem>>, vector<512x400xf32>
    %c0_1 = arith.constant 0 : index
    %c0_2 = arith.constant 0 : index
    %1 = vector.load %arg2[%c0_1, %c0_2] : memref<400x16xf32, #tpu.memory_space<vmem>>, vector<400x16xf32>
    %cst = arith.constant dense<0.000000e+00> : vector<512x16xf32>
    %2 = tpu.matmul %0, %1, %cst {dimension_numbers = #tpu.dot_dimension_numbers<[1], [0], [0], [1], [0, 0, 1, 1], [], []>} : vector<512x400xf32>, vector<400x16xf32>, vector<512x16xf32> -> vector<512x16xf32>
    %c0_3 = arith.constant 0 : index
    %c0_4 = arith.constant 0 : index
    %3 = vector.load %arg3[%c0_3, %c0_4] : memref<1x16xf32, #tpu.memory_space<vmem>>, vector<1x16xf32>
    %4 = vector.broadcast %3 : vector<1x16xf32> to vector<512x16xf32>
    %5 = arith.addf %2, %4 : vector<512x16xf32>
    %cst_5 = arith.constant 0.000000e+00 : f32
    %6 = vector.broadcast %cst_5 : f32 to vector<512x16xf32>
    %7 = arith.maximumf %5, %6 : vector<512x16xf32>
    %c0_6 = arith.constant 0 : index
    %c0_7 = arith.constant 0 : index
    %8 = vector.load %arg4[%c0_6, %c0_7] : memref<512x16xf32, #tpu.memory_space<vmem>>, vector<512x16xf32>
    tpu.vector_store %arg4[%c0_6, %c0_7], %7 {strides = array<i32>} : memref<512x16xf32, #tpu.memory_space<vmem>>, vector<512x16xf32>,
    return
  }
  func.func @transform_0(%arg0: i32) -> (i32, i32) {
    %c0_i32 = arith.constant 0 : i32
    %c0_i32_0 = arith.constant 0 : i32
    return %arg0, %c0_i32 : i32, i32
  }
  func.func @transform_1(%arg0: i32) -> (i32, i32) {
    %c0_i32 = arith.constant 0 : i32
    %c0_i32_0 = arith.constant 0 : i32
    %c0_i32_1 = arith.constant 0 : i32
    return %c0_i32, %c0_i32_0 : i32, i32
  }
  func.func @transform_2(%arg0: i32) -> (i32, i32) {
    %c0_i32 = arith.constant 0 : i32
    %c0_i32_0 = arith.constant 0 : i32
    %c0_i32_1 = arith.constant 0 : i32
    return %c0_i32, %c0_i32_0 : i32, i32
  }
  func.func @transform_3(%arg0: i32) -> (i32, i32) {
    %c0_i32 = arith.constant 0 : i32
    %c0_i32_0 = arith.constant 0 : i32
    return %arg0, %c0_i32 : i32, i32
  }
}

module attributes {stable_mosaic.version = 11 : i64} {
  func.func @_gemm_bias_kernel(%arg0: i32, %arg1: memref<512x400xf32, #tpu.memory_space<vmem>>, %arg2: memref<400x16xf32, #tpu.memory_space<vmem>>, %arg3: memref<1x16xf32, #tpu.memory_space<vmem>>, %arg4: memref<512x16xf32, #tpu.memory_space<vmem>>) attributes {dimension_semantics = [#tpu.dimension_semantics<parallel>], iteration_bounds = array<i64: 2>, scalar_prefetch = 0 : i64, scratch_operands = 0 : i64, tpu.core_type = #tpu.core_type<tc>, window_params = [{transform_indices = @transform_0, window_bounds = array<i64: 512, 400>}, {pipeline_mode = #tpu.pipeline_mode<synchronous>, transform_indices = @transform_1, window_bounds = array<i64: 400, 16>}, {pipeline_mode = #tpu.pipeline_mode<synchronous>, transform_indices = @transform_2, window_bounds = array<i64: 1, 16>}, {transform_indices = @transform_3, window_bounds = array<i64: 512, 16>}]} {
    %c0 = arith.constant 0 : index
    %c0_0 = arith.constant 0 : index
    %0 = vector.load %arg1[%c0, %c0_0] : memref<512x400xf32, #tpu.memory_space<vmem>>, vector<512x400xf32>
    %c0_1 = arith.constant 0 : index
    %c0_2 = arith.constant 0 : index
    %1 = vector.load %arg2[%c0_1, %c0_2] : memref<400x16xf32, #tpu.memory_space<vmem>>, vector<400x16xf32>
    %cst = arith.constant dense<0.000000e+00> : vector<512x16xf32>
    %2 = tpu.matmul %0, %1, %cst {dimension_numbers = #tpu.dot_dimension_numbers<[1], [0], [0], [1], [0, 0, 1, 1], [], []>} : vector<512x400xf32>, vector<400x16xf32>, vector<512x16xf32> -> vector<512x16xf32>
    %c0_3 = arith.constant 0 : index
    %c0_4 = arith.constant 0 : index
    %3 = vector.load %arg3[%c0_3, %c0_4] : memref<1x16xf32, #tpu.memory_space<vmem>>, vector<1x16xf32>
    %4 = vector.broadcast %3 : vector<1x16xf32> to vector<512x16xf32>
    %5 = arith.addf %2, %4 : vector<512x16xf32>
    %cst_5 = arith.constant 0.000000e+00 : f32
    %6 = vector.broadcast %cst_5 : f32 to vector<512x16xf32>
    %7 = arith.maximumf %5, %6 : vector<512x16xf32>
    %c0_6 = arith.constant 0 : index
    %c0_7 = arith.constant 0 : index
    %8 = vector.load %arg4[%c0_6, %c0_7] : memref<512x16xf32, #tpu.memory_space<vmem>>, vector<512x16xf32>
    tpu.vector_store %arg4[%c0_6, %c0_7], %7 {strides = array<i32>} : memref<512x16xf32, #tpu.memory_space<vmem>>, vector<512x16xf32>,
    return
  }
  func.func @transform_0(%arg0: i32) -> (i32, i32) {
    %c0_i32 = arith.constant 0 : i32
    %c0_i32_0 = arith.constant 0 : i32
    return %arg0, %c0_i32 : i32, i32
  }
  func.func @transform_1(%arg0: i32) -> (i32, i32) {
    %c0_i32 = arith.constant 0 : i32
    %c0_i32_0 = arith.constant 0 : i32
    %c0_i32_1 = arith.constant 0 : i32
    return %c0_i32, %c0_i32_0 : i32, i32
  }
  func.func @transform_2(%arg0: i32) -> (i32, i32) {
    %c0_i32 = arith.constant 0 : i32
    %c0_i32_0 = arith.constant 0 : i32
    %c0_i32_1 = arith.constant 0 : i32
    return %c0_i32, %c0_i32_0 : i32, i32
  }
  func.func @transform_3(%arg0: i32) -> (i32, i32) {
    %c0_i32 = arith.constant 0 : i32
    %c0_i32_0 = arith.constant 0 : i32
    return %arg0, %c0_i32 : i32, i32
  }
}

module attributes {stable_mosaic.version = 11 : i64} {
  func.func @_gemm_bias_kernel(%arg0: i32, %arg1: memref<128x400xf32, #tpu.memory_space<vmem>>, %arg2: memref<400x16xf32, #tpu.memory_space<vmem>>, %arg3: memref<1x16xf32, #tpu.memory_space<vmem>>, %arg4: memref<128x16xf32, #tpu.memory_space<vmem>>) attributes {dimension_semantics = [#tpu.dimension_semantics<parallel>], iteration_bounds = array<i64: 1>, scalar_prefetch = 0 : i64, scratch_operands = 0 : i64, tpu.core_type = #tpu.core_type<tc>, window_params = [{transform_indices = @transform_0, window_bounds = array<i64: 128, 400>}, {pipeline_mode = #tpu.pipeline_mode<synchronous>, transform_indices = @transform_1, window_bounds = array<i64: 400, 16>}, {pipeline_mode = #tpu.pipeline_mode<synchronous>, transform_indices = @transform_2, window_bounds = array<i64: 1, 16>}, {transform_indices = @transform_3, window_bounds = array<i64: 128, 16>}]} {
    %c0 = arith.constant 0 : index
    %c0_0 = arith.constant 0 : index
    %0 = vector.load %arg1[%c0, %c0_0] : memref<128x400xf32, #tpu.memory_space<vmem>>, vector<128x400xf32>
    %c0_1 = arith.constant 0 : index
    %c0_2 = arith.constant 0 : index
    %1 = vector.load %arg2[%c0_1, %c0_2] : memref<400x16xf32, #tpu.memory_space<vmem>>, vector<400x16xf32>
    %cst = arith.constant dense<0.000000e+00> : vector<128x16xf32>
    %2 = tpu.matmul %0, %1, %cst {dimension_numbers = #tpu.dot_dimension_numbers<[1], [0], [0], [1], [0, 0, 1, 1], [], []>} : vector<128x400xf32>, vector<400x16xf32>, vector<128x16xf32> -> vector<128x16xf32>
    %c0_3 = arith.constant 0 : index
    %c0_4 = arith.constant 0 : index
    %3 = vector.load %arg3[%c0_3, %c0_4] : memref<1x16xf32, #tpu.memory_space<vmem>>, vector<1x16xf32>
    %4 = vector.broadcast %3 : vector<1x16xf32> to vector<128x16xf32>
    %5 = arith.addf %2, %4 : vector<128x16xf32>
    %cst_5 = arith.constant 0.000000e+00 : f32
    %6 = vector.broadcast %cst_5 : f32 to vector<128x16xf32>
    %7 = arith.maximumf %5, %6 : vector<128x16xf32>
    %c0_6 = arith.constant 0 : index
    %c0_7 = arith.constant 0 : index
    %8 = vector.load %arg4[%c0_6, %c0_7] : memref<128x16xf32, #tpu.memory_space<vmem>>, vector<128x16xf32>
    tpu.vector_store %arg4[%c0_6, %c0_7], %7 {strides = array<i32>} : memref<128x16xf32, #tpu.memory_space<vmem>>, vector<128x16xf32>,
    return
  }
  func.func @transform_0(%arg0: i32) -> (i32, i32) {
    %c0_i32 = arith.constant 0 : i32
    %c0_i32_0 = arith.constant 0 : i32
    return %arg0, %c0_i32 : i32, i32
  }
  func.func @transform_1(%arg0: i32) -> (i32, i32) {
    %c0_i32 = arith.constant 0 : i32
    %c0_i32_0 = arith.constant 0 : i32
    %c0_i32_1 = arith.constant 0 : i32
    return %c0_i32, %c0_i32_0 : i32, i32
  }
  func.func @transform_2(%arg0: i32) -> (i32, i32) {
    %c0_i32 = arith.constant 0 : i32
    %c0_i32_0 = arith.constant 0 : i32
    %c0_i32_1 = arith.constant 0 : i32
    return %c0_i32, %c0_i32_0 : i32, i32
  }
  func.func @transform_3(%arg0: i32) -> (i32, i32) {
    %c0_i32 = arith.constant 0 : i32
    %c0_i32_0 = arith.constant 0 : i32
    return %arg0, %c0_i32 : i32, i32
  }
}

module attributes {stable_mosaic.version = 11 : i64} {
  func.func @_gemm_bias_kernel(%arg0: i32, %arg1: memref<8x400xf32, #tpu.memory_space<vmem>>, %arg2: memref<400x16xf32, #tpu.memory_space<vmem>>, %arg3: memref<1x16xf32, #tpu.memory_space<vmem>>, %arg4: memref<8x16xf32, #tpu.memory_space<vmem>>) attributes {dimension_semantics = [#tpu.dimension_semantics<parallel>], iteration_bounds = array<i64: 1>, scalar_prefetch = 0 : i64, scratch_operands = 0 : i64, tpu.core_type = #tpu.core_type<tc>, window_params = [{transform_indices = @transform_0, window_bounds = array<i64: 8, 400>}, {pipeline_mode = #tpu.pipeline_mode<synchronous>, transform_indices = @transform_1, window_bounds = array<i64: 400, 16>}, {pipeline_mode = #tpu.pipeline_mode<synchronous>, transform_indices = @transform_2, window_bounds = array<i64: 1, 16>}, {transform_indices = @transform_3, window_bounds = array<i64: 8, 16>}]} {
    %c0 = arith.constant 0 : index
    %c0_0 = arith.constant 0 : index
    %0 = vector.load %arg1[%c0, %c0_0] : memref<8x400xf32, #tpu.memory_space<vmem>>, vector<8x400xf32>
    %c0_1 = arith.constant 0 : index
    %c0_2 = arith.constant 0 : index
    %1 = vector.load %arg2[%c0_1, %c0_2] : memref<400x16xf32, #tpu.memory_space<vmem>>, vector<400x16xf32>
    %cst = arith.constant dense<0.000000e+00> : vector<8x16xf32>
    %2 = tpu.matmul %0, %1, %cst {dimension_numbers = #tpu.dot_dimension_numbers<[1], [0], [0], [1], [0, 0, 1, 1], [], []>} : vector<8x400xf32>, vector<400x16xf32>, vector<8x16xf32> -> vector<8x16xf32>
    %c0_3 = arith.constant 0 : index
    %c0_4 = arith.constant 0 : index
    %3 = vector.load %arg3[%c0_3, %c0_4] : memref<1x16xf32, #tpu.memory_space<vmem>>, vector<1x16xf32>
    %4 = vector.broadcast %3 : vector<1x16xf32> to vector<8x16xf32>
    %5 = arith.addf %2, %4 : vector<8x16xf32>
    %cst_5 = arith.constant 0.000000e+00 : f32
    %6 = vector.broadcast %cst_5 : f32 to vector<8x16xf32>
    %7 = arith.maximumf %5, %6 : vector<8x16xf32>
    %c0_6 = arith.constant 0 : index
    %c0_7 = arith.constant 0 : index
    %8 = vector.load %arg4[%c0_6, %c0_7] : memref<8x16xf32, #tpu.memory_space<vmem>>, vector<8x16xf32>
    tpu.vector_store %arg4[%c0_6, %c0_7], %7 {strides = array<i32>} : memref<8x16xf32, #tpu.memory_space<vmem>>, vector<8x16xf32>,
    return
  }
  func.func @transform_0(%arg0: i32) -> (i32, i32) {
    %c0_i32 = arith.constant 0 : i32
    %c0_i32_0 = arith.constant 0 : i32
    return %arg0, %c0_i32 : i32, i32
  }
  func.func @transform_1(%arg0: i32) -> (i32, i32) {
    %c0_i32 = arith.constant 0 : i32
    %c0_i32_0 = arith.constant 0 : i32
    %c0_i32_1 = arith.constant 0 : i32
    return %c0_i32, %c0_i32_0 : i32, i32
  }
  func.func @transform_2(%arg0: i32) -> (i32, i32) {
    %c0_i32 = arith.constant 0 : i32
    %c0_i32_0 = arith.constant 0 : i32
    %c0_i32_1 = arith.constant 0 : i32
    return %c0_i32, %c0_i32_0 : i32, i32
  }
  func.func @transform_3(%arg0: i32) -> (i32, i32) {
    %c0_i32 = arith.constant 0 : i32
    %c0_i32_0 = arith.constant 0 : i32
    return %arg0, %c0_i32 : i32, i32
  }
}

module attributes {stable_mosaic.version = 11 : i64} {
  func.func @_gemm_bias_kernel(%arg0: i32, %arg1: memref<8x16xf32, #tpu.memory_space<vmem>>, %arg2: memref<16x256xf32, #tpu.memory_space<vmem>>, %arg3: memref<1x256xf32, #tpu.memory_space<vmem>>, %arg4: memref<8x256xf32, #tpu.memory_space<vmem>>) attributes {dimension_semantics = [#tpu.dimension_semantics<parallel>], iteration_bounds = array<i64: 1>, scalar_prefetch = 0 : i64, scratch_operands = 0 : i64, tpu.core_type = #tpu.core_type<tc>, window_params = [{transform_indices = @transform_0, window_bounds = array<i64: 8, 16>}, {pipeline_mode = #tpu.pipeline_mode<synchronous>, transform_indices = @transform_1, window_bounds = array<i64: 16, 256>}, {pipeline_mode = #tpu.pipeline_mode<synchronous>, transform_indices = @transform_2, window_bounds = array<i64: 1, 256>}, {transform_indices = @transform_3, window_bounds = array<i64: 8, 256>}]} {
    %c0 = arith.constant 0 : index
    %c0_0 = arith.constant 0 : index
    %0 = vector.load %arg1[%c0, %c0_0] : memref<8x16xf32, #tpu.memory_space<vmem>>, vector<8x16xf32>
    %c0_1 = arith.constant 0 : index
    %c0_2 = arith.constant 0 : index
    %1 = vector.load %arg2[%c0_1, %c0_2] : memref<16x256xf32, #tpu.memory_space<vmem>>, vector<16x256xf32>
    %cst = arith.constant dense<0.000000e+00> : vector<8x256xf32>
    %2 = tpu.matmul %0, %1, %cst {dimension_numbers = #tpu.dot_dimension_numbers<[1], [0], [0], [1], [0, 0, 1, 1], [], []>} : vector<8x16xf32>, vector<16x256xf32>, vector<8x256xf32> -> vector<8x256xf32>
    %c0_3 = arith.constant 0 : index
    %c0_4 = arith.constant 0 : index
    %3 = vector.load %arg3[%c0_3, %c0_4] : memref<1x256xf32, #tpu.memory_space<vmem>>, vector<1x256xf32>
    %4 = vector.broadcast %3 : vector<1x256xf32> to vector<8x256xf32>
    %5 = arith.addf %2, %4 : vector<8x256xf32>
    %c0_5 = arith.constant 0 : index
    %c0_6 = arith.constant 0 : index
    %6 = vector.load %arg4[%c0_5, %c0_6] : memref<8x256xf32, #tpu.memory_space<vmem>>, vector<8x256xf32>
    tpu.vector_store %arg4[%c0_5, %c0_6], %5 {strides = array<i32>} : memref<8x256xf32, #tpu.memory_space<vmem>>, vector<8x256xf32>,
    return
  }
  func.func @transform_0(%arg0: i32) -> (i32, i32) {
    %c0_i32 = arith.constant 0 : i32
    %c0_i32_0 = arith.constant 0 : i32
    return %arg0, %c0_i32 : i32, i32
  }
  func.func @transform_1(%arg0: i32) -> (i32, i32) {
    %c0_i32 = arith.constant 0 : i32
    %c0_i32_0 = arith.constant 0 : i32
    %c0_i32_1 = arith.constant 0 : i32
    return %c0_i32, %c0_i32_0 : i32, i32
  }
  func.func @transform_2(%arg0: i32) -> (i32, i32) {
    %c0_i32 = arith.constant 0 : i32
    %c0_i32_0 = arith.constant 0 : i32
    %c0_i32_1 = arith.constant 0 : i32
    return %c0_i32, %c0_i32_0 : i32, i32
  }
  func.func @transform_3(%arg0: i32) -> (i32, i32) {
    %c0_i32 = arith.constant 0 : i32
    %c0_i32_0 = arith.constant 0 : i32
    return %arg0, %c0_i32 : i32, i32
  }
}

module attributes {stable_mosaic.version = 11 : i64} {
  func.func @_gemm_bias_kernel(%arg0: i32, %arg1: memref<8x256xf32, #tpu.memory_space<vmem>>, %arg2: memref<256x10xf32, #tpu.memory_space<vmem>>, %arg3: memref<1x10xf32, #tpu.memory_space<vmem>>, %arg4: memref<8x10xf32, #tpu.memory_space<vmem>>) attributes {dimension_semantics = [#tpu.dimension_semantics<parallel>], iteration_bounds = array<i64: 1>, scalar_prefetch = 0 : i64, scratch_operands = 0 : i64, tpu.core_type = #tpu.core_type<tc>, window_params = [{transform_indices = @transform_0, window_bounds = array<i64: 8, 256>}, {pipeline_mode = #tpu.pipeline_mode<synchronous>, transform_indices = @transform_1, window_bounds = array<i64: 256, 10>}, {pipeline_mode = #tpu.pipeline_mode<synchronous>, transform_indices = @transform_2, window_bounds = array<i64: 1, 10>}, {transform_indices = @transform_3, window_bounds = array<i64: 8, 10>}]} {
    %c0 = arith.constant 0 : index
    %c0_0 = arith.constant 0 : index
    %0 = vector.load %arg1[%c0, %c0_0] : memref<8x256xf32, #tpu.memory_space<vmem>>, vector<8x256xf32>
    %c0_1 = arith.constant 0 : index
    %c0_2 = arith.constant 0 : index
    %1 = vector.load %arg2[%c0_1, %c0_2] : memref<256x10xf32, #tpu.memory_space<vmem>>, vector<256x10xf32>
    %cst = arith.constant dense<0.000000e+00> : vector<8x10xf32>
    %2 = tpu.matmul %0, %1, %cst {dimension_numbers = #tpu.dot_dimension_numbers<[1], [0], [0], [1], [0, 0, 1, 1], [], []>} : vector<8x256xf32>, vector<256x10xf32>, vector<8x10xf32> -> vector<8x10xf32>
    %c0_3 = arith.constant 0 : index
    %c0_4 = arith.constant 0 : index
    %3 = vector.load %arg3[%c0_3, %c0_4] : memref<1x10xf32, #tpu.memory_space<vmem>>, vector<1x10xf32>
    %4 = vector.broadcast %3 : vector<1x10xf32> to vector<8x10xf32>
    %5 = arith.addf %2, %4 : vector<8x10xf32>
    %c0_5 = arith.constant 0 : index
    %c0_6 = arith.constant 0 : index
    %6 = vector.load %arg4[%c0_5, %c0_6] : memref<8x10xf32, #tpu.memory_space<vmem>>, vector<8x10xf32>
    tpu.vector_store %arg4[%c0_5, %c0_6], %5 {strides = array<i32>} : memref<8x10xf32, #tpu.memory_space<vmem>>, vector<8x10xf32>,
    return
  }
  func.func @transform_0(%arg0: i32) -> (i32, i32) {
    %c0_i32 = arith.constant 0 : i32
    %c0_i32_0 = arith.constant 0 : i32
    return %arg0, %c0_i32 : i32, i32
  }
  func.func @transform_1(%arg0: i32) -> (i32, i32) {
    %c0_i32 = arith.constant 0 : i32
    %c0_i32_0 = arith.constant 0 : i32
    %c0_i32_1 = arith.constant 0 : i32
    return %c0_i32, %c0_i32_0 : i32, i32
  }
  func.func @transform_2(%arg0: i32) -> (i32, i32) {
    %c0_i32 = arith.constant 0 : i32
    %c0_i32_0 = arith.constant 0 : i32
    %c0_i32_1 = arith.constant 0 : i32
    return %c0_i32, %c0_i32_0 : i32, i32
  }
  func.func @transform_3(%arg0: i32) -> (i32, i32) {
    %c0_i32 = arith.constant 0 : i32
    %c0_i32_0 = arith.constant 0 : i32
    return %arg0, %c0_i32 : i32, i32
  }
}

</mosaic_0001>

<llo_original>
// kernel: forward.7
$region0: #{forward.7}
  #allocation0 [shape = 'u32[]', space=smem, size = 0x4, offset = 0x4, fixed_abs, tag = 'smem constant byte address 0x4 - core index']
  #allocation1 [shape = 'u32[144,128]{1,0:T(1,128)}', space=vmem, size = 0x12000, scoped, tag = 'internal scratch']
  %s0 = inlined_call_operand.vmem [shape: f32[17920,100], index: 0, kind: input, shape index: {}]
  %s1 = inlined_call_operand.vmem [shape: f32[100,16], index: 1, kind: input, shape index: {}]
  %s2 = inlined_call_operand.vmem [shape: f32[1,16], index: 2, kind: input, shape index: {}]
  %s3 = inlined_call_operand.vmem [shape: f32[17920,16], index: 3, kind: output, shape index: {}]
  %s4 = sld [smem:[#allocation0]]
  $region45: #{forward.7} parent=0
    _
  %s6 = ssub.s32 1, %s4
  %s7 = scalar_select 0, %s6, %s4
  loop: start=0, step=1, limit=37
  $region2: #{forward.7} parent=0 // loop_pre_header
    _
  $region3: #{forward.7} parent=0 // loop_header
    %s9 = sphi 0, %s13
    %p10 = scmp.ge.s32.totalorder %s9, 37
    %s19 = sphi 0, %s21
    %s22 = sphi 0, %s19
    %s23 = sphi 0, %s22
    %s39 = sphi 0, %s23
    %s43 = sphi 0, %s43
    %s45 = sphi 0, %s43
    %s46 = sphi 0, %s45
    %s60 = sphi 0, %s46
    %s64 = sphi 0, %s64
    %s66 = sphi 0, %s64
    %s67 = sphi 0, %s66
    %s81 = sphi 0, %s67
    %s87 = sphi 0, %s89
    %s90 = sphi 0, %s87
    %s91 = sphi 0, %s90
    %s107 = sphi 0, %s91
  $region4: #{forward.7} parent=0 // loop_header_branch
    %12 = sbr.rel (%p10) target = $region8
  $region5: #{forward.7} parent=0 // loop_body
    %s14 = ssub.s32 %s9, 1
    %s15 = ssub.s32 %s9, 2
    %s16 = sadd.s32 %s9, 1
    %s17 = ssub.s32 %s9, %s16
    %p18 = scmp.eq.s32.totalorder %s17, 0
    %s20 = sadd.s32 %s19, 1
    %s21 = scalar_select %p18, %s19, %s20
    %p24 = pneg %p18
    %p25 = scmp.eq.s32.totalorder %s9, 34
    %p26 = por %p24, %p25
    %p27 = scmp.ne.s32.totalorder %s19, %s22
    %p28 = scmp.eq.s32.totalorder %s9, 0
    %p29 = por %p27, %p28
    %p30 = scmp.ne.s32.totalorder %s19, %s22
    %p31 = scmp.eq.s32.totalorder %s14, 34
    %p32 = por %p30, %p31
    %p33 = scmp.ne.s32.totalorder %s22, %s23
    %p34 = scmp.eq.s32.totalorder %s14, 0
    %p35 = por %p33, %p34
    %p36 = scmp.ne.s32.totalorder %s22, %s23
    %p37 = scmp.eq.s32.totalorder %s15, 34
    %p38 = por %p36, %p37
    %p40 = scmp.ne.s32.totalorder %s23, %s39
    %p41 = scmp.eq.s32.totalorder %s15, 0
    %p42 = por %p40, %p41
    %s44 = sadd.s32 %s43, 1
    %p47 = scmp.eq.s32.totalorder %s9, 34
    %p48 = scmp.ne.s32.totalorder %s43, %s45
    %p49 = scmp.eq.s32.totalorder %s9, 0
    %p50 = por %p48, %p49
    %p51 = scmp.ne.s32.totalorder %s43, %s45
    %p52 = scmp.eq.s32.totalorder %s14, 34
    %p53 = por %p51, %p52
    %p54 = scmp.ne.s32.totalorder %s45, %s46
    %p55 = scmp.eq.s32.totalorder %s14, 0
    %p56 = por %p54, %p55
    %p57 = scmp.ne.s32.totalorder %s45, %s46
    %p58 = scmp.eq.s32.totalorder %s15, 34
    %p59 = por %p57, %p58
    %p61 = scmp.ne.s32.totalorder %s46, %s60
    %p62 = scmp.eq.s32.totalorder %s15, 0
    %p63 = por %p61, %p62
    %s65 = sadd.s32 %s64, 1
    %p68 = scmp.eq.s32.totalorder %s9, 34
    %p69 = scmp.ne.s32.totalorder %s64, %s66
    %p70 = scmp.eq.s32.totalorder %s9, 0
    %p71 = por %p69, %p70
    %p72 = scmp.ne.s32.totalorder %s64, %s66
    %p73 = scmp.eq.s32.totalorder %s14, 34
    %p74 = por %p72, %p73
    %p75 = scmp.ne.s32.totalorder %s66, %s67
    %p76 = scmp.eq.s32.totalorder %s14, 0
    %p77 = por %p75, %p76
    %p78 = scmp.ne.s32.totalorder %s66, %s67
    %p79 = scmp.eq.s32.totalorder %s15, 34
    %p80 = por %p78, %p79
    %p82 = scmp.ne.s32.totalorder %s67, %s81
    %p83 = scmp.eq.s32.totalorder %s15, 0
    %p84 = por %p82, %p83
    %s85 = ssub.s32 %s9, %s16
    %p86 = scmp.eq.s32.totalorder %s85, 0
    %s88 = sadd.s32 %s87, 1
    %s89 = scalar_select %p86, %s87, %s88
    %p92 = pneg %p86
    %p93 = scmp.eq.s32.totalorder %s9, 34
    %p94 = por %p92, %p93
    %p95 = scmp.ne.s32.totalorder %s87, %s90
    %p96 = scmp.eq.s32.totalorder %s9, 0
    %p97 = por %p95, %p96
    %p98 = scmp.ne.s32.totalorder %s87, %s90
    %p99 = scmp.eq.s32.totalorder %s14, 34
    %p100 = por %p98, %p99
    %p101 = scmp.ne.s32.totalorder %s90, %s91
    %p102 = scmp.eq.s32.totalorder %s14, 0
    %p103 = por %p101, %p102
    %p104 = scmp.ne.s32.totalorder %s90, %s91
    %p105 = scmp.eq.s32.totalorder %s15, 34
    %p106 = por %p104, %p105
    %p108 = scmp.ne.s32.totalorder %s91, %s107
    %p109 = scmp.eq.s32.totalorder %s15, 0
    %p110 = por %p108, %p109
    %p111 = scmp.le.s32.totalorder 1, %s9
    %p112 = scmp.lt.s32.totalorder %s9, 36
    %p113 = pnand %p111, %p112
    %p114 = pneg %p113
    // Predicated region
    $region9: #{forward.7} parent=5 // pred_check
      _
    $region10: #{forward.7} parent=5 // pred_check_branch
      %116 = sbr.rel (%p113) target = $region12
    $region11: #{forward.7} parent=5 // pred_region
      %s117 = ssub.s32 %s9, 1
      // Predicated region
      $region13: #{forward.7} parent=11 // pred_check
        %p118 = pneg %p56
      $region14: #{forward.7} parent=11 // pred_check_branch
        %120 = sbr.rel (%p118) target = $region16
      $region15: #{forward.7} parent=11 // pred_region
        _
      $region16: #{forward.7} parent=11 // pred_fallthru
        _
      // Predicated region
      $region17: #{forward.7} parent=11 // pred_check
        %p121 = pneg %p77
      $region18: #{forward.7} parent=11 // pred_check_branch
        %123 = sbr.rel (%p121) target = $region20
      $region19: #{forward.7} parent=11 // pred_region
        _
      $region20: #{forward.7} parent=11 // pred_fallthru
        _
    $region12: #{forward.7} parent=5 // pred_fallthru
      _
    %p124 = scmp.lt.s32.totalorder %s9, 35
    // Predicated region
    $region21: #{forward.7} parent=5 // pred_check
      %p125 = pneg %p124
    $region22: #{forward.7} parent=5 // pred_check_branch
      %127 = sbr.rel (%p125) target = $region24
    $region23: #{forward.7} parent=5 // pred_region
      // Predicated region
      $region25: #{forward.7} parent=23 // pred_check
        %p128 = pneg %p29
      $region26: #{forward.7} parent=23 // pred_check_branch
        %130 = sbr.rel (%p128) target = $region28
      $region27: #{forward.7} parent=23 // pred_region
        %s131 = smul.u32 64, %s9
        %p132 = scmp.lt.s32.totalorder %s131, 2239
        %s133 = scalar_select %p132, %s131, 2239
        %s134 = smul.addr %s133, 8
        %s135 = scalar_lea.vmem %s0, %s134
        %s136 = smul.u32 64, %s9
      $region28: #{forward.7} parent=23 // pred_fallthru
        _
    $region24: #{forward.7} parent=5 // pred_fallthru
      _
    %p137 = scmp.le.s32.totalorder 1, %s9
    %p138 = scmp.lt.s32.totalorder %s9, 36
    %p139 = pnand %p137, %p138
    %p140 = pneg %p139
    // Predicated region
    $region29: #{forward.7} parent=5 // pred_check
      _
    $region30: #{forward.7} parent=5 // pred_check_branch
      %142 = sbr.rel (%p139) target = $region32
    $region31: #{forward.7} parent=5 // pred_region
      %s143 = ssub.s32 %s9, 1
      %s144 = smul.u32 64, %s14
      %p145 = scmp.lt.s32.totalorder %s144, 2239
      %s146 = scalar_select %p145, %s144, 2239
      %s147 = smul.addr %s146, 8
      %s148 = scalar_lea.vmem %s0, %s147
      %p149 = pneg %p35
      %p150 = pneg %p32
      %p151 = pneg %p56
      %p152 = pneg %p53
      %p153 = pneg %p77
      %p154 = pneg %p74
      %p155 = pneg %p103
      %p156 = pneg %p100
      %s157 = smul.u32 64, %s14
      %p158 = scmp.lt.s32.totalorder %s157, 2239
      %s159 = scalar_select %p158, %s157, 2239
      %s160 = smul.addr %s159, 8
      %s161 = scalar_lea.vmem %s3, %s160
      %s162 = smul.u32 64, %s14
      %p163 = scmp.lt.s32.totalorder %s162, 2239
      %s164 = scalar_select %p163, %s162, 2239
      %s165 = smul.addr %s164, 8
      %s166 = scalar_lea.vmem %s0, %s165
      %s167 = smul.u32 64, %s14
      %s168 = smul.u32 64, %s14
      %p169 = scmp.lt.s32.totalorder %s168, 2239
      %s170 = scalar_select %p169, %s168, 2239
      %s171 = smul.addr %s170, 8
      %s172 = scalar_lea.vmem %s3, %s171
      %s173 = smul.u32 64, %s14
      %v174 = vld [vmem:[%s166] sm:$0xff]
      %v175 = vld [vmem:[%s166 + $0x8] sm:$0xff]
      %v176 = vld [vmem:[%s166 + $0x10] sm:$0xff]
      %v177 = vld [vmem:[%s166 + $0x18] sm:$0xff]
      %v178 = vld [vmem:[%s166 + $0x20] sm:$0xff]
      %v179 = vld [vmem:[%s166 + $0x28] sm:$0xff]
      %v180 = vld [vmem:[%s166 + $0x30] sm:$0xff]
      %v181 = vld [vmem:[%s166 + $0x38] sm:$0xff]
      %v182 = vld [vmem:[%s166 + $0x40] sm:$0xff]
      %v183 = vld [vmem:[%s166 + $0x48] sm:$0xff]
      %v184 = vld [vmem:[%s166 + $0x50] sm:$0xff]
      %v185 = vld [vmem:[%s166 + $0x58] sm:$0xff]
      %v186 = vld [vmem:[%s166 + $0x60] sm:$0xff]
      %v187 = vld [vmem:[%s166 + $0x68] sm:$0xff]
      %v188 = vld [vmem:[%s166 + $0x70] sm:$0xff]
      %v189 = vld [vmem:[%s166 + $0x78] sm:$0xff]
      %v190 = vld [vmem:[%s166 + $0x80] sm:$0xff]
      %v191 = vld [vmem:[%s166 + $0x88] sm:$0xff]
      %v192 = vld [vmem:[%s166 + $0x90] sm:$0xff]
      %v193 = vld [vmem:[%s166 + $0x98] sm:$0xff]
      %v194 = vld [vmem:[%s166 + $0xa0] sm:$0xff]
      %v195 = vld [vmem:[%s166 + $0xa8] sm:$0xff]
      %v196 = vld [vmem:[%s166 + $0xb0] sm:$0xff]
      %v197 = vld [vmem:[%s166 + $0xb8] sm:$0xff]
      %v198 = vld [vmem:[%s166 + $0xc0] sm:$0xff]
      %v199 = vld [vmem:[%s166 + $0xc8] sm:$0xff]
      %v200 = vld [vmem:[%s166 + $0xd0] sm:$0xff]
      %v201 = vld [vmem:[%s166 + $0xd8] sm:$0xff]
      %v202 = vld [vmem:[%s166 + $0xe0] sm:$0xff]
      %v203 = vld [vmem:[%s166 + $0xe8] sm:$0xff]
      %v204 = vld [vmem:[%s166 + $0xf0] sm:$0xff]
      %v205 = vld [vmem:[%s166 + $0xf8] sm:$0xff]
      %v206 = vld [vmem:[%s166 + $0x100] sm:$0xff]
      %v207 = vld [vmem:[%s166 + $0x108] sm:$0xff]
      %v208 = vld [vmem:[%s166 + $0x110] sm:$0xff]
      %v209 = vld [vmem:[%s166 + $0x118] sm:$0xff]
      %v210 = vld [vmem:[%s166 + $0x120] sm:$0xff]
      %v211 = vld [vmem:[%s166 + $0x128] sm:$0xff]
      %v212 = vld [vmem:[%s166 + $0x130] sm:$0xff]
      %v213 = vld [vmem:[%s166 + $0x138] sm:$0xff]
      %v214 = vld [vmem:[%s166 + $0x140] sm:$0xff]
      %v215 = vld [vmem:[%s166 + $0x148] sm:$0xff]
      %v216 = vld [vmem:[%s166 + $0x150] sm:$0xff]
      %v217 = vld [vmem:[%s166 + $0x158] sm:$0xff]
      %v218 = vld [vmem:[%s166 + $0x160] sm:$0xff]
      %v219 = vld [vmem:[%s166 + $0x168] sm:$0xff]
      %v220 = vld [vmem:[%s166 + $0x170] sm:$0xff]
      %v221 = vld [vmem:[%s166 + $0x178] sm:$0xff]
      %v222 = vld [vmem:[%s166 + $0x180] sm:$0xff]
      %v223 = vld [vmem:[%s166 + $0x188] sm:$0xff]
      %v224 = vld [vmem:[%s166 + $0x190] sm:$0xff]
      %v225 = vld [vmem:[%s166 + $0x198] sm:$0xff]
      %v226 = vld [vmem:[%s166 + $0x1a0] sm:$0xff]
      %v227 = vld [vmem:[%s166 + $0x1a8] sm:$0xff]
      %v228 = vld [vmem:[%s166 + $0x1b0] sm:$0xff]
      %v229 = vld [vmem:[%s166 + $0x1b8] sm:$0xff]
      %v230 = vld [vmem:[%s166 + $0x1c0] sm:$0xff]
      %v231 = vld [vmem:[%s166 + $0x1c8] sm:$0xff]
      %v232 = vld [vmem:[%s166 + $0x1d0] sm:$0xff]
      %v233 = vld [vmem:[%s166 + $0x1d8] sm:$0xff]
      %v234 = vld [vmem:[%s166 + $0x1e0] sm:$0xff]
      %v235 = vld [vmem:[%s166 + $0x1e8] sm:$0xff]
      %v236 = vld [vmem:[%s166 + $0x1f0] sm:$0xff]
      %v237 = vld [vmem:[%s166 + $0x1f8] sm:$0xff]
      %v238 = vld [vmem:[%s1] sm:$0xff]
      %v239 = vld [vmem:[%s1 + $0x8] sm:$0xff]
      %v240 = vld [vmem:[%s1 + $0x10] sm:$0xff]
      %v241 = vld [vmem:[%s1 + $0x18] sm:$0xff]
      %v242 = vld [vmem:[%s1 + $0x20] sm:$0xff]
      %v243 = vld [vmem:[%s1 + $0x28] sm:$0xff]
      %v244 = vld [vmem:[%s1 + $0x30] sm:$0xff]
      %v245 = vld [vmem:[%s1 + $0x38] sm:$0xff]
      %v246 = vld [vmem:[%s1 + $0x40] sm:$0xff]
      %v247 = vld [vmem:[%s1 + $0x48] sm:$0xff]
      %v248 = vld [vmem:[%s1 + $0x50] sm:$0xff]
      %v249 = vld [vmem:[%s1 + $0x58] sm:$0xff]
      %v250 = vld [vmem:[%s1 + $0x60] sm:$0xf]
      %v251 = vld [vmem:[%s2] sm:$0x1]
      %v253 = vlaneseq
      %v254 = vshrl.u32 %v253, 7
      %v255 = vsub.s32 0, %v254
      %v256 = vrot.slane %v251, %v255
      %vm258 = vcmask 818176
      %v260 = vsel %vm258, %v174, 0
      %v263 = vsel %vm258, %v175, 0
      %v266 = vsel %vm258, %v176, 0
      %v269 = vsel %vm258, %v177, 0
      %v272 = vsel %vm258, %v178, 0
      %v275 = vsel %vm258, %v179, 0
      %v278 = vsel %vm258, %v180, 0
      %v281 = vsel %vm258, %v181, 0
      %v284 = vsel %vm258, %v182, 0
      %v287 = vsel %vm258, %v183, 0
      %v290 = vsel %vm258, %v184, 0
      %v293 = vsel %vm258, %v185, 0
      %v296 = vsel %vm258, %v186, 0
      %v299 = vsel %vm258, %v187, 0
      %v302 = vsel %vm258, %v188, 0
      %v305 = vsel %vm258, %v189, 0
      %v308 = vsel %vm258, %v190, 0
      %v311 = vsel %vm258, %v191, 0
      %v314 = vsel %vm258, %v192, 0
      %v317 = vsel %vm258, %v193, 0
      %v320 = vsel %vm258, %v194, 0
      %v323 = vsel %vm258, %v195, 0
      %v326 = vsel %vm258, %v196, 0
      %v329 = vsel %vm258, %v197, 0
      %v332 = vsel %vm258, %v198, 0
      %v335 = vsel %vm258, %v199, 0
      %v338 = vsel %vm258, %v200, 0
      %v341 = vsel %vm258, %v201, 0
      %v344 = vsel %vm258, %v202, 0
      %v347 = vsel %vm258, %v203, 0
      %v350 = vsel %vm258, %v204, 0
      %v353 = vsel %vm258, %v205, 0
      %v356 = vsel %vm258, %v206, 0
      %v359 = vsel %vm258, %v207, 0
      %v362 = vsel %vm258, %v208, 0
      %v365 = vsel %vm258, %v209, 0
      %v368 = vsel %vm258, %v210, 0
      %v371 = vsel %vm258, %v211, 0
      %v374 = vsel %vm258, %v212, 0
      %v377 = vsel %vm258, %v213, 0
      %v380 = vsel %vm258, %v214, 0
      %v383 = vsel %vm258, %v215, 0
      %v386 = vsel %vm258, %v216, 0
      %v389 = vsel %vm258, %v217, 0
      %v392 = vsel %vm258, %v218, 0
      %v395 = vsel %vm258, %v219, 0
      %v398 = vsel %vm258, %v220, 0
      %v401 = vsel %vm258, %v221, 0
      %v404 = vsel %vm258, %v222, 0
      %v407 = vsel %vm258, %v223, 0
      %v410 = vsel %vm258, %v224, 0
      %v413 = vsel %vm258, %v225, 0
      %v416 = vsel %vm258, %v226, 0
      %v419 = vsel %vm258, %v227, 0
      %v422 = vsel %vm258, %v228, 0
      %v425 = vsel %vm258, %v229, 0
      %v428 = vsel %vm258, %v230, 0
      %v431 = vsel %vm258, %v231, 0
      %v434 = vsel %vm258, %v232, 0
      %v437 = vsel %vm258, %v233, 0
      %v440 = vsel %vm258, %v234, 0
      %v443 = vsel %vm258, %v235, 0
      %v446 = vsel %vm258, %v236, 0
      %v449 = vsel %vm258, %v237, 0
      %vm451 = vcmask 1043456
      %v453 = vsel %vm451, %v250, 0
      %455 = vmatprep.subr.mxu0 0.0
      %456 = vmatpush1.msra.mxu0 0.0
      %457 = vmatprep.subr.mxu0 0.0
      %458 = vmatpush1.msra.mxu0 0.0
      %459 = vmatprep.subr.mxu0 0.0
      %460 = vmatpush1.msra.mxu0 0.0
      %461 = vmatprep.subr.mxu0 0.0
      %462 = vmatpush1.msra.mxu0 %v453
      %463 = vmatprep.subr.mxu0 0.0
      %464 = vmatpush1.msra.mxu0 %v249
      %465 = vmatprep.subr.mxu0 0.0
      %466 = vmatpush1.msra.mxu0 %v248
      %467 = vmatprep.subr.mxu0 0.0
      %468 = vmatpush1.msra.mxu0 %v247
      %469 = vmatprep.subr.mxu0 0.0
      %470 = vmatpush1.msra.mxu0 %v246
      %471 = vmatprep.subr.mxu0 0.0
      %472 = vmatpush1.msra.mxu0 %v245
      %473 = vmatprep.subr.mxu0 0.0
      %474 = vmatpush1.msra.mxu0 %v244
      %475 = vmatprep.subr.mxu0 0.0
      %476 = vmatpush1.msra.mxu0 %v243
      %477 = vmatprep.subr.mxu0 0.0
      %478 = vmatpush1.msra.mxu0 %v242
      %479 = vmatprep.subr.mxu0 0.0
      %480 = vmatpush1.msra.mxu0 %v241
      %481 = vmatprep.subr.mxu0 0.0
      %482 = vmatpush1.msra.mxu0 %v240
      %483 = vmatprep.subr.mxu0 0.0
      %484 = vmatpush1.msra.mxu0 %v239
      %485 = vmatprep.subr.mxu0 0.0
      %486 = vmatpush1.msra.mxu0 %v238
      %487 = vmatprep.subr.mxu0 0.0
      %488 = vmatpush2.msra.mxu0 0.0
      %489 = vmatprep.subr.mxu0 0.0
      %490 = vmatpush2.msra.mxu0 0.0
      %491 = vmatprep.subr.mxu0 0.0
      %492 = vmatpush2.msra.mxu0 0.0
      %493 = vmatprep.subr.mxu0 0.0
      %494 = vmatpush2.msra.mxu0 0.0
      %495 = vmatprep.subr.mxu0 0.0
      %496 = vmatpush2.msra.mxu0 0.0
      %497 = vmatprep.subr.mxu0 0.0
      %498 = vmatpush2.msra.mxu0 0.0
      %499 = vmatprep.subr.mxu0 0.0
      %500 = vmatpush2.msra.mxu0 0.0
      %501 = vmatprep.subr.mxu0 0.0
      %502 = vmatpush2.msra.mxu0 0.0
      %503 = vmatprep.subr.mxu0 0.0
      %504 = vmatpush2.msra.mxu0 0.0
      %505 = vmatprep.subr.mxu0 0.0
      %506 = vmatpush2.msra.mxu0 0.0
      %507 = vmatprep.subr.mxu0 0.0
      %508 = vmatpush2.msra.mxu0 0.0
      %509 = vmatprep.subr.mxu0 0.0
      %510 = vmatpush2.msra.mxu0 0.0
      %511 = vmatprep.subr.mxu0 0.0
      %512 = vmatpush2.msra.mxu0 0.0
      %513 = vmatprep.subr.mxu0 0.0
      %514 = vmatpush2.msra.mxu0 0.0
      %515 = vmatprep.subr.mxu0 0.0
      %516 = vmatpush2.msra.mxu0 0.0
      %517 = vmatprep.subr.mxu0 0.0
      %518 = vmatpush2.msra.mxu0 0.0
      %519 = vmatprep.mubr.f32.mxu0 0.0
      %520 = vmatmul.mubr.f32.gmra.mxu0 %v260
      %v521 = vpop.f32.mrf.mxu0
      %v522 = vadd.f32 %v256, %v521
      %v523 = vpop.f32.mrf.mxu0
      %524 = vmatprep.mubr.f32.mxu0 0.0
      %525 = vmatmul.mubr.f32.gmra.mxu0 %v263
      %v526 = vpop.f32.mrf.mxu0
      %v527 = vadd.f32 %v256, %v526
      %v528 = vpop.f32.mrf.mxu0
      %529 = vmatprep.mubr.f32.mxu0 0.0
      %530 = vmatmul.mubr.f32.gmra.mxu0 %v266
      %v531 = vpop.f32.mrf.mxu0
      %v532 = vadd.f32 %v256, %v531
      %v533 = vpop.f32.mrf.mxu0
      %534 = vmatprep.mubr.f32.mxu0 0.0
      %535 = vmatmul.mubr.f32.gmra.mxu0 %v269
      %v536 = vpop.f32.mrf.mxu0
      %v537 = vadd.f32 %v256, %v536
      %v538 = vpop.f32.mrf.mxu0
      %539 = vmatprep.mubr.f32.mxu0 0.0
      %540 = vmatmul.mubr.f32.gmra.mxu0 %v272
      %v541 = vpop.f32.mrf.mxu0
      %v542 = vadd.f32 %v256, %v541
      %v543 = vpop.f32.mrf.mxu0
      %544 = vmatprep.mubr.f32.mxu0 0.0
      %545 = vmatmul.mubr.f32.gmra.mxu0 %v275
      %v546 = vpop.f32.mrf.mxu0
      %v547 = vadd.f32 %v256, %v546
      %v548 = vpop.f32.mrf.mxu0
      %549 = vmatprep.mubr.f32.mxu0 0.0
      %550 = vmatmul.mubr.f32.gmra.mxu0 %v278
      %v551 = vpop.f32.mrf.mxu0
      %v552 = vadd.f32 %v256, %v551
      %v553 = vpop.f32.mrf.mxu0
      %554 = vmatprep.mubr.f32.mxu0 0.0
      %555 = vmatmul.mubr.f32.gmra.mxu0 %v281
      %v556 = vpop.f32.mrf.mxu0
      %v557 = vadd.f32 %v256, %v556
      %v558 = vpop.f32.mrf.mxu0
      %559 = vmatprep.mubr.f32.mxu0 0.0
      %560 = vmatmul.mubr.f32.gmra.mxu0 %v284
      %v561 = vpop.f32.mrf.mxu0
      %v562 = vadd.f32 %v256, %v561
      %v563 = vpop.f32.mrf.mxu0
      %564 = vmatprep.mubr.f32.mxu0 0.0
      %565 = vmatmul.mubr.f32.gmra.mxu0 %v287
      %v566 = vpop.f32.mrf.mxu0
      %v567 = vadd.f32 %v256, %v566
      %v568 = vpop.f32.mrf.mxu0
      %569 = vmatprep.mubr.f32.mxu0 0.0
      %570 = vmatmul.mubr.f32.gmra.mxu0 %v290
      %v571 = vpop.f32.mrf.mxu0
      %v572 = vadd.f32 %v256, %v571
      %v573 = vpop.f32.mrf.mxu0
      %574 = vmatprep.mubr.f32.mxu0 0.0
      %575 = vmatmul.mubr.f32.gmra.mxu0 %v293
      %v576 = vpop.f32.mrf.mxu0
      %v577 = vadd.f32 %v256, %v576
      %v578 = vpop.f32.mrf.mxu0
      %579 = vmatprep.mubr.f32.mxu0 0.0
      %580 = vmatmul.mubr.f32.gmra.mxu0 %v296
      %v581 = vpop.f32.mrf.mxu0
      %v582 = vadd.f32 %v256, %v581
      %v583 = vpop.f32.mrf.mxu0
      %584 = vmatprep.mubr.f32.mxu0 0.0
      %585 = vmatmul.mubr.f32.gmra.mxu0 %v299
      %v586 = vpop.f32.mrf.mxu0
      %v587 = vadd.f32 %v256, %v586
      %v588 = vpop.f32.mrf.mxu0
      %589 = vmatprep.mubr.f32.mxu0 0.0
      %590 = vmatmul.mubr.f32.gmra.mxu0 %v302
      %v591 = vpop.f32.mrf.mxu0
      %v592 = vadd.f32 %v256, %v591
      %v593 = vpop.f32.mrf.mxu0
      %594 = vmatprep.mubr.f32.mxu0 0.0
      %595 = vmatmul.mubr.f32.gmra.mxu0 %v305
      %v596 = vpop.f32.mrf.mxu0
      %v597 = vadd.f32 %v256, %v596
      %v598 = vpop.f32.mrf.mxu0
      %599 = vmatprep.mubr.f32.mxu0 0.0
      %600 = vmatmul.mubr.f32.gmra.mxu0 %v308
      %v601 = vpop.f32.mrf.mxu0
      %v602 = vadd.f32 %v256, %v601
      %v603 = vpop.f32.mrf.mxu0
      %604 = vmatprep.mubr.f32.mxu0 0.0
      %605 = vmatmul.mubr.f32.gmra.mxu0 %v311
      %v606 = vpop.f32.mrf.mxu0
      %v607 = vadd.f32 %v256, %v606
      %v608 = vpop.f32.mrf.mxu0
      %609 = vmatprep.mubr.f32.mxu0 0.0
      %610 = vmatmul.mubr.f32.gmra.mxu0 %v314
      %v611 = vpop.f32.mrf.mxu0
      %v612 = vadd.f32 %v256, %v611
      %v613 = vpop.f32.mrf.mxu0
      %614 = vmatprep.mubr.f32.mxu0 0.0
      %615 = vmatmul.mubr.f32.gmra.mxu0 %v317
      %v616 = vpop.f32.mrf.mxu0
      %v617 = vadd.f32 %v256, %v616
      %v618 = vpop.f32.mrf.mxu0
      %619 = vmatprep.mubr.f32.mxu0 0.0
      %620 = vmatmul.mubr.f32.gmra.mxu0 %v320
      %v621 = vpop.f32.mrf.mxu0
      %v622 = vadd.f32 %v256, %v621
      %v623 = vpop.f32.mrf.mxu0
      %624 = vmatprep.mubr.f32.mxu0 0.0
      %625 = vmatmul.mubr.f32.gmra.mxu0 %v323
      %v626 = vpop.f32.mrf.mxu0
      %v627 = vadd.f32 %v256, %v626
      %v628 = vpop.f32.mrf.mxu0
      %629 = vmatprep.mubr.f32.mxu0 0.0
      %630 = vmatmul.mubr.f32.gmra.mxu0 %v326
      %v631 = vpop.f32.mrf.mxu0
      %v632 = vadd.f32 %v256, %v631
      %v633 = vpop.f32.mrf.mxu0
      %634 = vmatprep.mubr.f32.mxu0 0.0
      %635 = vmatmul.mubr.f32.gmra.mxu0 %v329
      %v636 = vpop.f32.mrf.mxu0
      %v637 = vadd.f32 %v256, %v636
      %v638 = vpop.f32.mrf.mxu0
      %639 = vmatprep.mubr.f32.mxu0 0.0
      %640 = vmatmul.mubr.f32.gmra.mxu0 %v332
      %v641 = vpop.f32.mrf.mxu0
      %v642 = vadd.f32 %v256, %v641
      %v643 = vpop.f32.mrf.mxu0
      %644 = vmatprep.mubr.f32.mxu0 0.0
      %645 = vmatmul.mubr.f32.gmra.mxu0 %v335
      %v646 = vpop.f32.mrf.mxu0
      %v647 = vadd.f32 %v256, %v646
      %v648 = vpop.f32.mrf.mxu0
      %649 = vmatprep.mubr.f32.mxu0 0.0
      %650 = vmatmul.mubr.f32.gmra.mxu0 %v338
      %v651 = vpop.f32.mrf.mxu0
      %v652 = vadd.f32 %v256, %v651
      %v653 = vpop.f32.mrf.mxu0
      %654 = vmatprep.mubr.f32.mxu0 0.0
      %655 = vmatmul.mubr.f32.gmra.mxu0 %v341
      %v656 = vpop.f32.mrf.mxu0
      %v657 = vadd.f32 %v256, %v656
      %v658 = vpop.f32.mrf.mxu0
      %659 = vmatprep.mubr.f32.mxu0 0.0
      %660 = vmatmul.mubr.f32.gmra.mxu0 %v344
      %v661 = vpop.f32.mrf.mxu0
      %v662 = vadd.f32 %v256, %v661
      %v663 = vpop.f32.mrf.mxu0
      %664 = vmatprep.mubr.f32.mxu0 0.0
      %665 = vmatmul.mubr.f32.gmra.mxu0 %v347
      %v666 = vpop.f32.mrf.mxu0
      %v667 = vadd.f32 %v256, %v666
      %v668 = vpop.f32.mrf.mxu0
      %669 = vmatprep.mubr.f32.mxu0 0.0
      %670 = vmatmul.mubr.f32.gmra.mxu0 %v350
      %v671 = vpop.f32.mrf.mxu0
      %v672 = vadd.f32 %v256, %v671
      %v673 = vpop.f32.mrf.mxu0
      %674 = vmatprep.mubr.f32.mxu0 0.0
      %675 = vmatmul.mubr.f32.gmra.mxu0 %v353
      %v676 = vpop.f32.mrf.mxu0
      %v677 = vadd.f32 %v256, %v676
      %v678 = vpop.f32.mrf.mxu0
      %679 = vmatprep.mubr.f32.mxu0 0.0
      %680 = vmatmul.mubr.f32.gmra.mxu0 %v356
      %v681 = vpop.f32.mrf.mxu0
      %v682 = vadd.f32 %v256, %v681
      %v683 = vpop.f32.mrf.mxu0
      %684 = vmatprep.mubr.f32.mxu0 0.0
      %685 = vmatmul.mubr.f32.gmra.mxu0 %v359
      %v686 = vpop.f32.mrf.mxu0
      %v687 = vadd.f32 %v256, %v686
      %v688 = vpop.f32.mrf.mxu0
      %689 = vmatprep.mubr.f32.mxu0 0.0
      %690 = vmatmul.mubr.f32.gmra.mxu0 %v362
      %v691 = vpop.f32.mrf.mxu0
      %v692 = vadd.f32 %v256, %v691
      %v693 = vpop.f32.mrf.mxu0
      %694 = vmatprep.mubr.f32.mxu0 0.0
      %695 = vmatmul.mubr.f32.gmra.mxu0 %v365
      %v696 = vpop.f32.mrf.mxu0
      %v697 = vadd.f32 %v256, %v696
      %v698 = vpop.f32.mrf.mxu0
      %699 = vmatprep.mubr.f32.mxu0 0.0
      %700 = vmatmul.mubr.f32.gmra.mxu0 %v368
      %v701 = vpop.f32.mrf.mxu0
      %v702 = vadd.f32 %v256, %v701
      %v703 = vpop.f32.mrf.mxu0
      %704 = vmatprep.mubr.f32.mxu0 0.0
      %705 = vmatmul.mubr.f32.gmra.mxu0 %v371
      %v706 = vpop.f32.mrf.mxu0
      %v707 = vadd.f32 %v256, %v706
      %v708 = vpop.f32.mrf.mxu0
      %709 = vmatprep.mubr.f32.mxu0 0.0
      %710 = vmatmul.mubr.f32.gmra.mxu0 %v374
      %v711 = vpop.f32.mrf.mxu0
      %v712 = vadd.f32 %v256, %v711
      %v713 = vpop.f32.mrf.mxu0
      %714 = vmatprep.mubr.f32.mxu0 0.0
      %715 = vmatmul.mubr.f32.gmra.mxu0 %v377
      %v716 = vpop.f32.mrf.mxu0
      %v717 = vadd.f32 %v256, %v716
      %v718 = vpop.f32.mrf.mxu0
      %719 = vmatprep.mubr.f32.mxu0 0.0
      %720 = vmatmul.mubr.f32.gmra.mxu0 %v380
      %v721 = vpop.f32.mrf.mxu0
      %v722 = vadd.f32 %v256, %v721
      %v723 = vpop.f32.mrf.mxu0
      %724 = vmatprep.mubr.f32.mxu0 0.0
      %725 = vmatmul.mubr.f32.gmra.mxu0 %v383
      %v726 = vpop.f32.mrf.mxu0
      %v727 = vadd.f32 %v256, %v726
      %v728 = vpop.f32.mrf.mxu0
      %729 = vmatprep.mubr.f32.mxu0 0.0
      %730 = vmatmul.mubr.f32.gmra.mxu0 %v386
      %v731 = vpop.f32.mrf.mxu0
      %v732 = vadd.f32 %v256, %v731
      %v733 = vpop.f32.mrf.mxu0
      %734 = vmatprep.mubr.f32.mxu0 0.0
      %735 = vmatmul.mubr.f32.gmra.mxu0 %v389
      %v736 = vpop.f32.mrf.mxu0
      %v737 = vadd.f32 %v256, %v736
      %v738 = vpop.f32.mrf.mxu0
      %739 = vmatprep.mubr.f32.mxu0 0.0
      %740 = vmatmul.mubr.f32.gmra.mxu0 %v392
      %v741 = vpop.f32.mrf.mxu0
      %v742 = vadd.f32 %v256, %v741
      %v743 = vpop.f32.mrf.mxu0
      %744 = vmatprep.mubr.f32.mxu0 0.0
      %745 = vmatmul.mubr.f32.gmra.mxu0 %v395
      %v746 = vpop.f32.mrf.mxu0
      %v747 = vadd.f32 %v256, %v746
      %v748 = vpop.f32.mrf.mxu0
      %749 = vmatprep.mubr.f32.mxu0 0.0
      %750 = vmatmul.mubr.f32.gmra.mxu0 %v398
      %v751 = vpop.f32.mrf.mxu0
      %v752 = vadd.f32 %v256, %v751
      %v753 = vpop.f32.mrf.mxu0
      %754 = vmatprep.mubr.f32.mxu0 0.0
      %755 = vmatmul.mubr.f32.gmra.mxu0 %v401
      %v756 = vpop.f32.mrf.mxu0
      %v757 = vadd.f32 %v256, %v756
      %v758 = vpop.f32.mrf.mxu0
      %759 = vmatprep.mubr.f32.mxu0 0.0
      %760 = vmatmul.mubr.f32.gmra.mxu0 %v404
      %v761 = vpop.f32.mrf.mxu0
      %v762 = vadd.f32 %v256, %v761
      %v763 = vpop.f32.mrf.mxu0
      %764 = vmatprep.mubr.f32.mxu0 0.0
      %765 = vmatmul.mubr.f32.gmra.mxu0 %v407
      %v766 = vpop.f32.mrf.mxu0
      %v767 = vadd.f32 %v256, %v766
      %v768 = vpop.f32.mrf.mxu0
      %769 = vmatprep.mubr.f32.mxu0 0.0
      %770 = vmatmul.mubr.f32.gmra.mxu0 %v410
      %v771 = vpop.f32.mrf.mxu0
      %v772 = vadd.f32 %v256, %v771
      %v773 = vpop.f32.mrf.mxu0
      %774 = vmatprep.mubr.f32.mxu0 0.0
      %775 = vmatmul.mubr.f32.gmra.mxu0 %v413
      %v776 = vpop.f32.mrf.mxu0
      %v777 = vadd.f32 %v256, %v776
      %v778 = vpop.f32.mrf.mxu0
      %779 = vmatprep.mubr.f32.mxu0 0.0
      %780 = vmatmul.mubr.f32.gmra.mxu0 %v416
      %v781 = vpop.f32.mrf.mxu0
      %v782 = vadd.f32 %v256, %v781
      %v783 = vpop.f32.mrf.mxu0
      %784 = vmatprep.mubr.f32.mxu0 0.0
      %785 = vmatmul.mubr.f32.gmra.mxu0 %v419
      %v786 = vpop.f32.mrf.mxu0
      %v787 = vadd.f32 %v256, %v786
      %v788 = vpop.f32.mrf.mxu0
      %789 = vmatprep.mubr.f32.mxu0 0.0
      %790 = vmatmul.mubr.f32.gmra.mxu0 %v422
      %v791 = vpop.f32.mrf.mxu0
      %v792 = vadd.f32 %v256, %v791
      %v793 = vpop.f32.mrf.mxu0
      %794 = vmatprep.mubr.f32.mxu0 0.0
      %795 = vmatmul.mubr.f32.gmra.mxu0 %v425
      %v796 = vpop.f32.mrf.mxu0
      %v797 = vadd.f32 %v256, %v796
      %v798 = vpop.f32.mrf.mxu0
      %799 = vmatprep.mubr.f32.mxu0 0.0
      %800 = vmatmul.mubr.f32.gmra.mxu0 %v428
      %v801 = vpop.f32.mrf.mxu0
      %v802 = vadd.f32 %v256, %v801
      %v803 = vpop.f32.mrf.mxu0
      %804 = vmatprep.mubr.f32.mxu0 0.0
      %805 = vmatmul.mubr.f32.gmra.mxu0 %v431
      %v806 = vpop.f32.mrf.mxu0
      %v807 = vadd.f32 %v256, %v806
      %v808 = vpop.f32.mrf.mxu0
      %809 = vmatprep.mubr.f32.mxu0 0.0
      %810 = vmatmul.mubr.f32.gmra.mxu0 %v434
      %v811 = vpop.f32.mrf.mxu0
      %v812 = vadd.f32 %v256, %v811
      %v813 = vpop.f32.mrf.mxu0
      %814 = vmatprep.mubr.f32.mxu0 0.0
      %815 = vmatmul.mubr.f32.gmra.mxu0 %v437
      %v816 = vpop.f32.mrf.mxu0
      %v817 = vadd.f32 %v256, %v816
      %v818 = vpop.f32.mrf.mxu0
      %819 = vmatprep.mubr.f32.mxu0 0.0
      %820 = vmatmul.mubr.f32.gmra.mxu0 %v440
      %v821 = vpop.f32.mrf.mxu0
      %v822 = vadd.f32 %v256, %v821
      %v823 = vpop.f32.mrf.mxu0
      %824 = vmatprep.mubr.f32.mxu0 0.0
      %825 = vmatmul.mubr.f32.gmra.mxu0 %v443
      %v826 = vpop.f32.mrf.mxu0
      %v827 = vadd.f32 %v256, %v826
      %v828 = vpop.f32.mrf.mxu0
      %829 = vmatprep.mubr.f32.mxu0 0.0
      %830 = vmatmul.mubr.f32.gmra.mxu0 %v446
      %v831 = vpop.f32.mrf.mxu0
      %v832 = vadd.f32 %v256, %v831
      %v833 = vpop.f32.mrf.mxu0
      %834 = vmatprep.mubr.f32.mxu0 0.0
      %835 = vmatmul.mubr.f32.gmra.mxu0 %v449
      %v836 = vpop.f32.mrf.mxu0
      %v837 = vadd.f32 %v256, %v836
      %v838 = vpop.f32.mrf.mxu0
      %839 = vdwg.mxu0
      %v840 = vmax.f32 %v522, 0.0
      %v841 = vmax.f32 %v527, 0.0
      %v842 = vmax.f32 %v532, 0.0
      %v843 = vmax.f32 %v537, 0.0
      %v844 = vmax.f32 %v542, 0.0
      %v845 = vmax.f32 %v547, 0.0
      %v846 = vmax.f32 %v552, 0.0
      %v847 = vmax.f32 %v557, 0.0
      %v848 = vmax.f32 %v562, 0.0
      %v849 = vmax.f32 %v567, 0.0
      %v850 = vmax.f32 %v572, 0.0
      %v851 = vmax.f32 %v577, 0.0
      %v852 = vmax.f32 %v582, 0.0
      %v853 = vmax.f32 %v587, 0.0
      %v854 = vmax.f32 %v592, 0.0
      %v855 = vmax.f32 %v597, 0.0
      %v856 = vmax.f32 %v602, 0.0
      %v857 = vmax.f32 %v607, 0.0
      %v858 = vmax.f32 %v612, 0.0
      %v859 = vmax.f32 %v617, 0.0
      %v860 = vmax.f32 %v622, 0.0
      %v861 = vmax.f32 %v627, 0.0
      %v862 = vmax.f32 %v632, 0.0
      %v863 = vmax.f32 %v637, 0.0
      %v864 = vmax.f32 %v642, 0.0
      %v865 = vmax.f32 %v647, 0.0
      %v866 = vmax.f32 %v652, 0.0
      %v867 = vmax.f32 %v657, 0.0
      %v868 = vmax.f32 %v662, 0.0
      %v869 = vmax.f32 %v667, 0.0
      %v870 = vmax.f32 %v672, 0.0
      %v871 = vmax.f32 %v677, 0.0
      %v872 = vmax.f32 %v682, 0.0
      %v873 = vmax.f32 %v687, 0.0
      %v874 = vmax.f32 %v692, 0.0
      %v875 = vmax.f32 %v697, 0.0
      %v876 = vmax.f32 %v702, 0.0
      %v877 = vmax.f32 %v707, 0.0
      %v878 = vmax.f32 %v712, 0.0
      %v879 = vmax.f32 %v717, 0.0
      %v880 = vmax.f32 %v722, 0.0
      %v881 = vmax.f32 %v727, 0.0
      %v882 = vmax.f32 %v732, 0.0
      %v883 = vmax.f32 %v737, 0.0
      %v884 = vmax.f32 %v742, 0.0
      %v885 = vmax.f32 %v747, 0.0
      %v886 = vmax.f32 %v752, 0.0
      %v887 = vmax.f32 %v757, 0.0
      %v888 = vmax.f32 %v762, 0.0
      %v889 = vmax.f32 %v767, 0.0
      %v890 = vmax.f32 %v772, 0.0
      %v891 = vmax.f32 %v777, 0.0
      %v892 = vmax.f32 %v782, 0.0
      %v893 = vmax.f32 %v787, 0.0
      %v894 = vmax.f32 %v792, 0.0
      %v895 = vmax.f32 %v797, 0.0
      %v896 = vmax.f32 %v802, 0.0
      %v897 = vmax.f32 %v807, 0.0
      %v898 = vmax.f32 %v812, 0.0
      %v899 = vmax.f32 %v817, 0.0
      %v900 = vmax.f32 %v822, 0.0
      %v901 = vmax.f32 %v827, 0.0
      %v902 = vmax.f32 %v832, 0.0
      %v903 = vmax.f32 %v837, 0.0
      %vm904 = vcmask 130048
      %905 = vst.msk [vmem:[%s172] sm:$0xff] %vm904, %v840
      %906 = vst.msk [vmem:[%s172 + $0x8] sm:$0xff] %vm904, %v841
      %907 = vst.msk [vmem:[%s172 + $0x10] sm:$0xff] %vm904, %v842
      %908 = vst.msk [vmem:[%s172 + $0x18] sm:$0xff] %vm904, %v843
      %909 = vst.msk [vmem:[%s172 + $0x20] sm:$0xff] %vm904, %v844
      %910 = vst.msk [vmem:[%s172 + $0x28] sm:$0xff] %vm904, %v845
      %911 = vst.msk [vmem:[%s172 + $0x30] sm:$0xff] %vm904, %v846
      %912 = vst.msk [vmem:[%s172 + $0x38] sm:$0xff] %vm904, %v847
      %913 = vst.msk [vmem:[%s172 + $0x40] sm:$0xff] %vm904, %v848
      %914 = vst.msk [vmem:[%s172 + $0x48] sm:$0xff] %vm904, %v849
      %915 = vst.msk [vmem:[%s172 + $0x50] sm:$0xff] %vm904, %v850
      %916 = vst.msk [vmem:[%s172 + $0x58] sm:$0xff] %vm904, %v851
      %917 = vst.msk [vmem:[%s172 + $0x60] sm:$0xff] %vm904, %v852
      %918 = vst.msk [vmem:[%s172 + $0x68] sm:$0xff] %vm904, %v853
      %919 = vst.msk [vmem:[%s172 + $0x70] sm:$0xff] %vm904, %v854
      %920 = vst.msk [vmem:[%s172 + $0x78] sm:$0xff] %vm904, %v855
      %921 = vst.msk [vmem:[%s172 + $0x80] sm:$0xff] %vm904, %v856
      %922 = vst.msk [vmem:[%s172 + $0x88] sm:$0xff] %vm904, %v857
      %923 = vst.msk [vmem:[%s172 + $0x90] sm:$0xff] %vm904, %v858
      %924 = vst.msk [vmem:[%s172 + $0x98] sm:$0xff] %vm904, %v859
      %925 = vst.msk [vmem:[%s172 + $0xa0] sm:$0xff] %vm904, %v860
      %926 = vst.msk [vmem:[%s172 + $0xa8] sm:$0xff] %vm904, %v861
      %927 = vst.msk [vmem:[%s172 + $0xb0] sm:$0xff] %vm904, %v862
      %928 = vst.msk [vmem:[%s172 + $0xb8] sm:$0xff] %vm904, %v863
      %929 = vst.msk [vmem:[%s172 + $0xc0] sm:$0xff] %vm904, %v864
      %930 = vst.msk [vmem:[%s172 + $0xc8] sm:$0xff] %vm904, %v865
      %931 = vst.msk [vmem:[%s172 + $0xd0] sm:$0xff] %vm904, %v866
      %932 = vst.msk [vmem:[%s172 + $0xd8] sm:$0xff] %vm904, %v867
      %933 = vst.msk [vmem:[%s172 + $0xe0] sm:$0xff] %vm904, %v868
      %934 = vst.msk [vmem:[%s172 + $0xe8] sm:$0xff] %vm904, %v869
      %935 = vst.msk [vmem:[%s172 + $0xf0] sm:$0xff] %vm904, %v870
      %936 = vst.msk [vmem:[%s172 + $0xf8] sm:$0xff] %vm904, %v871
      %937 = vst.msk [vmem:[%s172 + $0x100] sm:$0xff] %vm904, %v872
      %938 = vst.msk [vmem:[%s172 + $0x108] sm:$0xff] %vm904, %v873
      %939 = vst.msk [vmem:[%s172 + $0x110] sm:$0xff] %vm904, %v874
      %940 = vst.msk [vmem:[%s172 + $0x118] sm:$0xff] %vm904, %v875
      %941 = vst.msk [vmem:[%s172 + $0x120] sm:$0xff] %vm904, %v876
      %942 = vst.msk [vmem:[%s172 + $0x128] sm:$0xff] %vm904, %v877
      %943 = vst.msk [vmem:[%s172 + $0x130] sm:$0xff] %vm904, %v878
      %944 = vst.msk [vmem:[%s172 + $0x138] sm:$0xff] %vm904, %v879
      %945 = vst.msk [vmem:[%s172 + $0x140] sm:$0xff] %vm904, %v880
      %946 = vst.msk [vmem:[%s172 + $0x148] sm:$0xff] %vm904, %v881
      %947 = vst.msk [vmem:[%s172 + $0x150] sm:$0xff] %vm904, %v882
      %948 = vst.msk [vmem:[%s172 + $0x158] sm:$0xff] %vm904, %v883
      %949 = vst.msk [vmem:[%s172 + $0x160] sm:$0xff] %vm904, %v884
      %950 = vst.msk [vmem:[%s172 + $0x168] sm:$0xff] %vm904, %v885
      %951 = vst.msk [vmem:[%s172 + $0x170] sm:$0xff] %vm904, %v886
      %952 = vst.msk [vmem:[%s172 + $0x178] sm:$0xff] %vm904, %v887
      %953 = vst.msk [vmem:[%s172 + $0x180] sm:$0xff] %vm904, %v888
      %954 = vst.msk [vmem:[%s172 + $0x188] sm:$0xff] %vm904, %v889
      %955 = vst.msk [vmem:[%s172 + $0x190] sm:$0xff] %vm904, %v890
      %956 = vst.msk [vmem:[%s172 + $0x198] sm:$0xff] %vm904, %v891
      %957 = vst.msk [vmem:[%s172 + $0x1a0] sm:$0xff] %vm904, %v892
      %958 = vst.msk [vmem:[%s172 + $0x1a8] sm:$0xff] %vm904, %v893
      %959 = vst.msk [vmem:[%s172 + $0x1b0] sm:$0xff] %vm904, %v894
      %960 = vst.msk [vmem:[%s172 + $0x1b8] sm:$0xff] %vm904, %v895
      %961 = vst.msk [vmem:[%s172 + $0x1c0] sm:$0xff] %vm904, %v896
      %962 = vst.msk [vmem:[%s172 + $0x1c8] sm:$0xff] %vm904, %v897
      %963 = vst.msk [vmem:[%s172 + $0x1d0] sm:$0xff] %vm904, %v898
      %964 = vst.msk [vmem:[%s172 + $0x1d8] sm:$0xff] %vm904, %v899
      %965 = vst.msk [vmem:[%s172 + $0x1e0] sm:$0xff] %vm904, %v900
      %966 = vst.msk [vmem:[%s172 + $0x1e8] sm:$0xff] %vm904, %v901
      %967 = vst.msk [vmem:[%s172 + $0x1f0] sm:$0xff] %vm904, %v902
      %968 = vst.msk [vmem:[%s172 + $0x1f8] sm:$0xff] %vm904, %v903
      %s969 = smul.u32 64, %s14
      %p970 = scmp.lt.s32.totalorder %s969, 2239
      %s971 = scalar_select %p970, %s969, 2239
      %s972 = smul.addr %s971, 8
      %s973 = scalar_lea.vmem %s3, %s972
      // Predicated region
      $region33: #{forward.7} parent=31 // pred_check
        %p974 = pneg %p100
      $region34: #{forward.7} parent=31 // pred_check_branch
        %976 = sbr.rel (%p974) target = $region36
      $region35: #{forward.7} parent=31 // pred_region
        %s977 = smul.u32 64, %s14
      $region36: #{forward.7} parent=31 // pred_fallthru
        _
    $region32: #{forward.7} parent=5 // pred_fallthru
      _
    %p978 = scmp.le.s32.totalorder 2, %s9
    // Predicated region
    $region37: #{forward.7} parent=5 // pred_check
      %p979 = pneg %p978
    $region38: #{forward.7} parent=5 // pred_check_branch
      %981 = sbr.rel (%p979) target = $region40
    $region39: #{forward.7} parent=5 // pred_region
      %s982 = ssub.s32 %s9, 2
      // Predicated region
      $region41: #{forward.7} parent=39 // pred_check
        %p983 = pneg %p106
      $region42: #{forward.7} parent=39 // pred_check_branch
        %985 = sbr.rel (%p983) target = $region44
      $region43: #{forward.7} parent=39 // pred_region
        %s986 = smul.u32 64, %s15
        %p987 = scmp.lt.s32.totalorder %s986, 2239
        %s988 = scalar_select %p987, %s986, 2239
        %s989 = smul.addr %s988, 8
        %s990 = scalar_lea.vmem %s3, %s989
      $region44: #{forward.7} parent=39 // pred_fallthru
        _
    $region40: #{forward.7} parent=5 // pred_fallthru
      _
  $region6: #{forward.7} parent=0 // loop_footer
    %s13 = sadd.s32 1, %s9
  $region7: #{forward.7} parent=0 // loop_footer_branch
    %8 = sbr.rel target = $region3
  $region8: #{forward.7} parent=0 // loop_exit
    _

// kernel: forward.8
$region0: #{forward.8}
  #allocation0 [shape = 'u32[]', space=smem, size = 0x4, offset = 0x4, fixed_abs, tag = 'smem constant byte address 0x4 - core index']
  #allocation1 [shape = 'u32[144,128]{1,0:T(1,128)}', space=vmem, size = 0x12000, scoped, tag = 'internal scratch']
  %s0 = inlined_call_operand.vmem [shape: f32[4096,400], index: 0, kind: input, shape index: {}]
  %s1 = inlined_call_operand.vmem [shape: f32[400,16], index: 1, kind: input, shape index: {}]
  %s2 = inlined_call_operand.vmem [shape: f32[1,16], index: 2, kind: input, shape index: {}]
  %s3 = inlined_call_operand.vmem [shape: f32[4096,16], index: 3, kind: output, shape index: {}]
  %s4 = sld [smem:[#allocation0]]
  $region45: #{forward.8} parent=0
    _
  %s6 = ssub.s32 1, %s4
  %s7 = scalar_select 0, %s6, %s4
  loop: start=0, step=1, limit=10
  $region2: #{forward.8} parent=0 // loop_pre_header
    _
  $region3: #{forward.8} parent=0 // loop_header
    %s9 = sphi 0, %s13
    %p10 = scmp.ge.s32.totalorder %s9, 10
    %s19 = sphi 0, %s21
    %s22 = sphi 0, %s19
    %s23 = sphi 0, %s22
    %s39 = sphi 0, %s23
    %s43 = sphi 0, %s43
    %s45 = sphi 0, %s43
    %s46 = sphi 0, %s45
    %s60 = sphi 0, %s46
    %s64 = sphi 0, %s64
    %s66 = sphi 0, %s64
    %s67 = sphi 0, %s66
    %s81 = sphi 0, %s67
    %s87 = sphi 0, %s89
    %s90 = sphi 0, %s87
    %s91 = sphi 0, %s90
    %s107 = sphi 0, %s91
  $region4: #{forward.8} parent=0 // loop_header_branch
    %12 = sbr.rel (%p10) target = $region8
  $region5: #{forward.8} parent=0 // loop_body
    %s14 = ssub.s32 %s9, 1
    %s15 = ssub.s32 %s9, 2
    %s16 = sadd.s32 %s9, 1
    %s17 = ssub.s32 %s9, %s16
    %p18 = scmp.eq.s32.totalorder %s17, 0
    %s20 = sadd.s32 %s19, 1
    %s21 = scalar_select %p18, %s19, %s20
    %p24 = pneg %p18
    %p25 = scmp.eq.s32.totalorder %s9, 7
    %p26 = por %p24, %p25
    %p27 = scmp.ne.s32.totalorder %s19, %s22
    %p28 = scmp.eq.s32.totalorder %s9, 0
    %p29 = por %p27, %p28
    %p30 = scmp.ne.s32.totalorder %s19, %s22
    %p31 = scmp.eq.s32.totalorder %s14, 7
    %p32 = por %p30, %p31
    %p33 = scmp.ne.s32.totalorder %s22, %s23
    %p34 = scmp.eq.s32.totalorder %s14, 0
    %p35 = por %p33, %p34
    %p36 = scmp.ne.s32.totalorder %s22, %s23
    %p37 = scmp.eq.s32.totalorder %s15, 7
    %p38 = por %p36, %p37
    %p40 = scmp.ne.s32.totalorder %s23, %s39
    %p41 = scmp.eq.s32.totalorder %s15, 0
    %p42 = por %p40, %p41
    %s44 = sadd.s32 %s43, 1
    %p47 = scmp.eq.s32.totalorder %s9, 7
    %p48 = scmp.ne.s32.totalorder %s43, %s45
    %p49 = scmp.eq.s32.totalorder %s9, 0
    %p50 = por %p48, %p49
    %p51 = scmp.ne.s32.totalorder %s43, %s45
    %p52 = scmp.eq.s32.totalorder %s14, 7
    %p53 = por %p51, %p52
    %p54 = scmp.ne.s32.totalorder %s45, %s46
    %p55 = scmp.eq.s32.totalorder %s14, 0
    %p56 = por %p54, %p55
    %p57 = scmp.ne.s32.totalorder %s45, %s46
    %p58 = scmp.eq.s32.totalorder %s15, 7
    %p59 = por %p57, %p58
    %p61 = scmp.ne.s32.totalorder %s46, %s60
    %p62 = scmp.eq.s32.totalorder %s15, 0
    %p63 = por %p61, %p62
    %s65 = sadd.s32 %s64, 1
    %p68 = scmp.eq.s32.totalorder %s9, 7
    %p69 = scmp.ne.s32.totalorder %s64, %s66
    %p70 = scmp.eq.s32.totalorder %s9, 0
    %p71 = por %p69, %p70
    %p72 = scmp.ne.s32.totalorder %s64, %s66
    %p73 = scmp.eq.s32.totalorder %s14, 7
    %p74 = por %p72, %p73
    %p75 = scmp.ne.s32.totalorder %s66, %s67
    %p76 = scmp.eq.s32.totalorder %s14, 0
    %p77 = por %p75, %p76
    %p78 = scmp.ne.s32.totalorder %s66, %s67
    %p79 = scmp.eq.s32.totalorder %s15, 7
    %p80 = por %p78, %p79
    %p82 = scmp.ne.s32.totalorder %s67, %s81
    %p83 = scmp.eq.s32.totalorder %s15, 0
    %p84 = por %p82, %p83
    %s85 = ssub.s32 %s9, %s16
    %p86 = scmp.eq.s32.totalorder %s85, 0
    %s88 = sadd.s32 %s87, 1
    %s89 = scalar_select %p86, %s87, %s88
    %p92 = pneg %p86
    %p93 = scmp.eq.s32.totalorder %s9, 7
    %p94 = por %p92, %p93
    %p95 = scmp.ne.s32.totalorder %s87, %s90
    %p96 = scmp.eq.s32.totalorder %s9, 0
    %p97 = por %p95, %p96
    %p98 = scmp.ne.s32.totalorder %s87, %s90
    %p99 = scmp.eq.s32.totalorder %s14, 7
    %p100 = por %p98, %p99
    %p101 = scmp.ne.s32.totalorder %s90, %s91
    %p102 = scmp.eq.s32.totalorder %s14, 0
    %p103 = por %p101, %p102
    %p104 = scmp.ne.s32.totalorder %s90, %s91
    %p105 = scmp.eq.s32.totalorder %s15, 7
    %p106 = por %p104, %p105
    %p108 = scmp.ne.s32.totalorder %s91, %s107
    %p109 = scmp.eq.s32.totalorder %s15, 0
    %p110 = por %p108, %p109
    %p111 = scmp.le.s32.totalorder 1, %s9
    %p112 = scmp.lt.s32.totalorder %s9, 9
    %p113 = pnand %p111, %p112
    %p114 = pneg %p113
    // Predicated region
    $region9: #{forward.8} parent=5 // pred_check
      _
    $region10: #{forward.8} parent=5 // pred_check_branch
      %116 = sbr.rel (%p113) target = $region12
    $region11: #{forward.8} parent=5 // pred_region
      %s117 = ssub.s32 %s9, 1
      // Predicated region
      $region13: #{forward.8} parent=11 // pred_check
        %p118 = pneg %p56
      $region14: #{forward.8} parent=11 // pred_check_branch
        %120 = sbr.rel (%p118) target = $region16
      $region15: #{forward.8} parent=11 // pred_region
        _
      $region16: #{forward.8} parent=11 // pred_fallthru
        _
      // Predicated region
      $region17: #{forward.8} parent=11 // pred_check
        %p121 = pneg %p77
      $region18: #{forward.8} parent=11 // pred_check_branch
        %123 = sbr.rel (%p121) target = $region20
      $region19: #{forward.8} parent=11 // pred_region
        _
      $region20: #{forward.8} parent=11 // pred_fallthru
        _
    $region12: #{forward.8} parent=5 // pred_fallthru
      _
    %p124 = scmp.lt.s32.totalorder %s9, 8
    // Predicated region
    $region21: #{forward.8} parent=5 // pred_check
      %p125 = pneg %p124
    $region22: #{forward.8} parent=5 // pred_check_branch
      %127 = sbr.rel (%p125) target = $region24
    $region23: #{forward.8} parent=5 // pred_region
      // Predicated region
      $region25: #{forward.8} parent=23 // pred_check
        %p128 = pneg %p29
      $region26: #{forward.8} parent=23 // pred_check_branch
        %130 = sbr.rel (%p128) target = $region28
      $region27: #{forward.8} parent=23 // pred_region
        %s131 = smul.u32 64, %s9
        %p132 = scmp.lt.s32.totalorder %s131, 511
        %s133 = scalar_select %p132, %s131, 511
        %s134 = smul.addr %s133, 4
        %s135 = smul.addr %s134, 8
        %s136 = scalar_lea.vmem %s0, %s135
        %s137 = smul.u32 64, %s9
      $region28: #{forward.8} parent=23 // pred_fallthru
        _
    $region24: #{forward.8} parent=5 // pred_fallthru
      _
    %p138 = scmp.le.s32.totalorder 1, %s9
    %p139 = scmp.lt.s32.totalorder %s9, 9
    %p140 = pnand %p138, %p139
    %p141 = pneg %p140
    // Predicated region
    $region29: #{forward.8} parent=5 // pred_check
      _
    $region30: #{forward.8} parent=5 // pred_check_branch
      %143 = sbr.rel (%p140) target = $region32
    $region31: #{forward.8} parent=5 // pred_region
      %s144 = ssub.s32 %s9, 1
      %s145 = smul.u32 64, %s14
      %p146 = scmp.lt.s32.totalorder %s145, 511
      %s147 = scalar_select %p146, %s145, 511
      %s148 = smul.addr %s147, 4
      %s149 = smul.addr %s148, 8
      %s150 = scalar_lea.vmem %s0, %s149
      %p151 = pneg %p35
      %p152 = pneg %p32
      %p153 = pneg %p56
      %p154 = pneg %p53
      %p155 = pneg %p77
      %p156 = pneg %p74
      %p157 = pneg %p103
      %p158 = pneg %p100
      %s159 = smul.u32 64, %s14
      %p160 = scmp.lt.s32.totalorder %s159, 511
      %s161 = scalar_select %p160, %s159, 511
      %s162 = smul.addr %s161, 8
      %s163 = scalar_lea.vmem %s3, %s162
      %s164 = smul.u32 64, %s14
      %p165 = scmp.lt.s32.totalorder %s164, 511
      %s166 = scalar_select %p165, %s164, 511
      %s167 = smul.addr %s166, 4
      %s168 = smul.addr %s167, 8
      %s169 = scalar_lea.vmem %s0, %s168
      %s170 = smul.u32 64, %s14
      %s171 = smul.u32 64, %s14
      %p172 = scmp.lt.s32.totalorder %s171, 511
      %s173 = scalar_select %p172, %s171, 511
      %s174 = smul.addr %s173, 8
      %s175 = scalar_lea.vmem %s3, %s174
      %s176 = smul.u32 64, %s14
      %v177 = vld [vmem:[%s169] sm:$0xff]
      %v178 = vld [vmem:[%s169 + $0x8] sm:$0xff]
      %v179 = vld [vmem:[%s169 + $0x10] sm:$0xff]
      %v180 = vld [vmem:[%s169 + $0x18] sm:$0xff]
      %v181 = vld [vmem:[%s169 + $0x20] sm:$0xff]
      %v182 = vld [vmem:[%s169 + $0x28] sm:$0xff]
      %v183 = vld [vmem:[%s169 + $0x30] sm:$0xff]
      %v184 = vld [vmem:[%s169 + $0x38] sm:$0xff]
      %v185 = vld [vmem:[%s169 + $0x40] sm:$0xff]
      %v186 = vld [vmem:[%s169 + $0x48] sm:$0xff]
      %v187 = vld [vmem:[%s169 + $0x50] sm:$0xff]
      %v188 = vld [vmem:[%s169 + $0x58] sm:$0xff]
      %v189 = vld [vmem:[%s169 + $0x60] sm:$0xff]
      %v190 = vld [vmem:[%s169 + $0x68] sm:$0xff]
      %v191 = vld [vmem:[%s169 + $0x70] sm:$0xff]
      %v192 = vld [vmem:[%s169 + $0x78] sm:$0xff]
      %v193 = vld [vmem:[%s169 + $0x80] sm:$0xff]
      %v194 = vld [vmem:[%s169 + $0x88] sm:$0xff]
      %v195 = vld [vmem:[%s169 + $0x90] sm:$0xff]
      %v196 = vld [vmem:[%s169 + $0x98] sm:$0xff]
      %v197 = vld [vmem:[%s169 + $0xa0] sm:$0xff]
      %v198 = vld [vmem:[%s169 + $0xa8] sm:$0xff]
      %v199 = vld [vmem:[%s169 + $0xb0] sm:$0xff]
      %v200 = vld [vmem:[%s169 + $0xb8] sm:$0xff]
      %v201 = vld [vmem:[%s169 + $0xc0] sm:$0xff]
      %v202 = vld [vmem:[%s169 + $0xc8] sm:$0xff]
      %v203 = vld [vmem:[%s169 + $0xd0] sm:$0xff]
      %v204 = vld [vmem:[%s169 + $0xd8] sm:$0xff]
      %v205 = vld [vmem:[%s169 + $0xe0] sm:$0xff]
      %v206 = vld [vmem:[%s169 + $0xe8] sm:$0xff]
      %v207 = vld [vmem:[%s169 + $0xf0] sm:$0xff]
      %v208 = vld [vmem:[%s169 + $0xf8] sm:$0xff]
      %v209 = vld [vmem:[%s169 + $0x100] sm:$0xff]
      %v210 = vld [vmem:[%s169 + $0x108] sm:$0xff]
      %v211 = vld [vmem:[%s169 + $0x110] sm:$0xff]
      %v212 = vld [vmem:[%s169 + $0x118] sm:$0xff]
      %v213 = vld [vmem:[%s169 + $0x120] sm:$0xff]
      %v214 = vld [vmem:[%s169 + $0x128] sm:$0xff]
      %v215 = vld [vmem:[%s169 + $0x130] sm:$0xff]
      %v216 = vld [vmem:[%s169 + $0x138] sm:$0xff]
      %v217 = vld [vmem:[%s169 + $0x140] sm:$0xff]
      %v218 = vld [vmem:[%s169 + $0x148] sm:$0xff]
      %v219 = vld [vmem:[%s169 + $0x150] sm:$0xff]
      %v220 = vld [vmem:[%s169 + $0x158] sm:$0xff]
      %v221 = vld [vmem:[%s169 + $0x160] sm:$0xff]
      %v222 = vld [vmem:[%s169 + $0x168] sm:$0xff]
      %v223 = vld [vmem:[%s169 + $0x170] sm:$0xff]
      %v224 = vld [vmem:[%s169 + $0x178] sm:$0xff]
      %v225 = vld [vmem:[%s169 + $0x180] sm:$0xff]
      %v226 = vld [vmem:[%s169 + $0x188] sm:$0xff]
      %v227 = vld [vmem:[%s169 + $0x190] sm:$0xff]
      %v228 = vld [vmem:[%s169 + $0x198] sm:$0xff]
      %v229 = vld [vmem:[%s169 + $0x1a0] sm:$0xff]
      %v230 = vld [vmem:[%s169 + $0x1a8] sm:$0xff]
      %v231 = vld [vmem:[%s169 + $0x1b0] sm:$0xff]
      %v232 = vld [vmem:[%s169 + $0x1b8] sm:$0xff]
      %v233 = vld [vmem:[%s169 + $0x1c0] sm:$0xff]
      %v234 = vld [vmem:[%s169 + $0x1c8] sm:$0xff]
      %v235 = vld [vmem:[%s169 + $0x1d0] sm:$0xff]
      %v236 = vld [vmem:[%s169 + $0x1d8] sm:$0xff]
      %v237 = vld [vmem:[%s169 + $0x1e0] sm:$0xff]
      %v238 = vld [vmem:[%s169 + $0x1e8] sm:$0xff]
      %v239 = vld [vmem:[%s169 + $0x1f0] sm:$0xff]
      %v240 = vld [vmem:[%s169 + $0x1f8] sm:$0xff]
      %v241 = vld [vmem:[%s169 + $0x200] sm:$0xff]
      %v242 = vld [vmem:[%s169 + $0x208] sm:$0xff]
      %v243 = vld [vmem:[%s169 + $0x210] sm:$0xff]
      %v244 = vld [vmem:[%s169 + $0x218] sm:$0xff]
      %v245 = vld [vmem:[%s169 + $0x220] sm:$0xff]
      %v246 = vld [vmem:[%s169 + $0x228] sm:$0xff]
      %v247 = vld [vmem:[%s169 + $0x230] sm:$0xff]
      %v248 = vld [vmem:[%s169 + $0x238] sm:$0xff]
      %v249 = vld [vmem:[%s169 + $0x240] sm:$0xff]
      %v250 = vld [vmem:[%s169 + $0x248] sm:$0xff]
      %v251 = vld [vmem:[%s169 + $0x250] sm:$0xff]
      %v252 = vld [vmem:[%s169 + $0x258] sm:$0xff]
      %v253 = vld [vmem:[%s169 + $0x260] sm:$0xff]
      %v254 = vld [vmem:[%s169 + $0x268] sm:$0xff]
      %v255 = vld [vmem:[%s169 + $0x270] sm:$0xff]
      %v256 = vld [vmem:[%s169 + $0x278] sm:$0xff]
      %v257 = vld [vmem:[%s169 + $0x280] sm:$0xff]
      %v258 = vld [vmem:[%s169 + $0x288] sm:$0xff]
      %v259 = vld [vmem:[%s169 + $0x290] sm:$0xff]
      %v260 = vld [vmem:[%s169 + $0x298] sm:$0xff]
      %v261 = vld [vmem:[%s169 + $0x2a0] sm:$0xff]
      %v262 = vld [vmem:[%s169 + $0x2a8] sm:$0xff]
      %v263 = vld [vmem:[%s169 + $0x2b0] sm:$0xff]
      %v264 = vld [vmem:[%s169 + $0x2b8] sm:$0xff]
      %v265 = vld [vmem:[%s169 + $0x2c0] sm:$0xff]
      %v266 = vld [vmem:[%s169 + $0x2c8] sm:$0xff]
      %v267 = vld [vmem:[%s169 + $0x2d0] sm:$0xff]
      %v268 = vld [vmem:[%s169 + $0x2d8] sm:$0xff]
      %v269 = vld [vmem:[%s169 + $0x2e0] sm:$0xff]
      %v270 = vld [vmem:[%s169 + $0x2e8] sm:$0xff]
      %v271 = vld [vmem:[%s169 + $0x2f0] sm:$0xff]
      %v272 = vld [vmem:[%s169 + $0x2f8] sm:$0xff]
      %v273 = vld [vmem:[%s169 + $0x300] sm:$0xff]
      %v274 = vld [vmem:[%s169 + $0x308] sm:$0xff]
      %v275 = vld [vmem:[%s169 + $0x310] sm:$0xff]
      %v276 = vld [vmem:[%s169 + $0x318] sm:$0xff]
      %v277 = vld [vmem:[%s169 + $0x320] sm:$0xff]
      %v278 = vld [vmem:[%s169 + $0x328] sm:$0xff]
      %v279 = vld [vmem:[%s169 + $0x330] sm:$0xff]
      %v280 = vld [vmem:[%s169 + $0x338] sm:$0xff]
      %v281 = vld [vmem:[%s169 + $0x340] sm:$0xff]
      %v282 = vld [vmem:[%s169 + $0x348] sm:$0xff]
      %v283 = vld [vmem:[%s169 + $0x350] sm:$0xff]
      %v284 = vld [vmem:[%s169 + $0x358] sm:$0xff]
      %v285 = vld [vmem:[%s169 + $0x360] sm:$0xff]
      %v286 = vld [vmem:[%s169 + $0x368] sm:$0xff]
      %v287 = vld [vmem:[%s169 + $0x370] sm:$0xff]
      %v288 = vld [vmem:[%s169 + $0x378] sm:$0xff]
      %v289 = vld [vmem:[%s169 + $0x380] sm:$0xff]
      %v290 = vld [vmem:[%s169 + $0x388] sm:$0xff]
      %v291 = vld [vmem:[%s169 + $0x390] sm:$0xff]
      %v292 = vld [vmem:[%s169 + $0x398] sm:$0xff]
      %v293 = vld [vmem:[%s169 + $0x3a0] sm:$0xff]
      %v294 = vld [vmem:[%s169 + $0x3a8] sm:$0xff]
      %v295 = vld [vmem:[%s169 + $0x3b0] sm:$0xff]
      %v296 = vld [vmem:[%s169 + $0x3b8] sm:$0xff]
      %v297 = vld [vmem:[%s169 + $0x3c0] sm:$0xff]
      %v298 = vld [vmem:[%s169 + $0x3c8] sm:$0xff]
      %v299 = vld [vmem:[%s169 + $0x3d0] sm:$0xff]
      %v300 = vld [vmem:[%s169 + $0x3d8] sm:$0xff]
      %v301 = vld [vmem:[%s169 + $0x3e0] sm:$0xff]
      %v302 = vld [vmem:[%s169 + $0x3e8] sm:$0xff]
      %v303 = vld [vmem:[%s169 + $0x3f0] sm:$0xff]
      %v304 = vld [vmem:[%s169 + $0x3f8] sm:$0xff]
      %v305 = vld [vmem:[%s169 + $0x400] sm:$0xff]
      %v306 = vld [vmem:[%s169 + $0x408] sm:$0xff]
      %v307 = vld [vmem:[%s169 + $0x410] sm:$0xff]
      %v308 = vld [vmem:[%s169 + $0x418] sm:$0xff]
      %v309 = vld [vmem:[%s169 + $0x420] sm:$0xff]
      %v310 = vld [vmem:[%s169 + $0x428] sm:$0xff]
      %v311 = vld [vmem:[%s169 + $0x430] sm:$0xff]
      %v312 = vld [vmem:[%s169 + $0x438] sm:$0xff]
      %v313 = vld [vmem:[%s169 + $0x440] sm:$0xff]
      %v314 = vld [vmem:[%s169 + $0x448] sm:$0xff]
      %v315 = vld [vmem:[%s169 + $0x450] sm:$0xff]
      %v316 = vld [vmem:[%s169 + $0x458] sm:$0xff]
      %v317 = vld [vmem:[%s169 + $0x460] sm:$0xff]
      %v318 = vld [vmem:[%s169 + $0x468] sm:$0xff]
      %v319 = vld [vmem:[%s169 + $0x470] sm:$0xff]
      %v320 = vld [vmem:[%s169 + $0x478] sm:$0xff]
      %v321 = vld [vmem:[%s169 + $0x480] sm:$0xff]
      %v322 = vld [vmem:[%s169 + $0x488] sm:$0xff]
      %v323 = vld [vmem:[%s169 + $0x490] sm:$0xff]
      %v324 = vld [vmem:[%s169 + $0x498] sm:$0xff]
      %v325 = vld [vmem:[%s169 + $0x4a0] sm:$0xff]
      %v326 = vld [vmem:[%s169 + $0x4a8] sm:$0xff]
      %v327 = vld [vmem:[%s169 + $0x4b0] sm:$0xff]
      %v328 = vld [vmem:[%s169 + $0x4b8] sm:$0xff]
      %v329 = vld [vmem:[%s169 + $0x4c0] sm:$0xff]
      %v330 = vld [vmem:[%s169 + $0x4c8] sm:$0xff]
      %v331 = vld [vmem:[%s169 + $0x4d0] sm:$0xff]
      %v332 = vld [vmem:[%s169 + $0x4d8] sm:$0xff]
      %v333 = vld [vmem:[%s169 + $0x4e0] sm:$0xff]
      %v334 = vld [vmem:[%s169 + $0x4e8] sm:$0xff]
      %v335 = vld [vmem:[%s169 + $0x4f0] sm:$0xff]
      %v336 = vld [vmem:[%s169 + $0x4f8] sm:$0xff]
      %v337 = vld [vmem:[%s169 + $0x500] sm:$0xff]
      %v338 = vld [vmem:[%s169 + $0x508] sm:$0xff]
      %v339 = vld [vmem:[%s169 + $0x510] sm:$0xff]
      %v340 = vld [vmem:[%s169 + $0x518] sm:$0xff]
      %v341 = vld [vmem:[%s169 + $0x520] sm:$0xff]
      %v342 = vld [vmem:[%s169 + $0x528] sm:$0xff]
      %v343 = vld [vmem:[%s169 + $0x530] sm:$0xff]
      %v344 = vld [vmem:[%s169 + $0x538] sm:$0xff]
      %v345 = vld [vmem:[%s169 + $0x540] sm:$0xff]
      %v346 = vld [vmem:[%s169 + $0x548] sm:$0xff]
      %v347 = vld [vmem:[%s169 + $0x550] sm:$0xff]
      %v348 = vld [vmem:[%s169 + $0x558] sm:$0xff]
      %v349 = vld [vmem:[%s169 + $0x560] sm:$0xff]
      %v350 = vld [vmem:[%s169 + $0x568] sm:$0xff]
      %v351 = vld [vmem:[%s169 + $0x570] sm:$0xff]
      %v352 = vld [vmem:[%s169 + $0x578] sm:$0xff]
      %v353 = vld [vmem:[%s169 + $0x580] sm:$0xff]
      %v354 = vld [vmem:[%s169 + $0x588] sm:$0xff]
      %v355 = vld [vmem:[%s169 + $0x590] sm:$0xff]
      %v356 = vld [vmem:[%s169 + $0x598] sm:$0xff]
      %v357 = vld [vmem:[%s169 + $0x5a0] sm:$0xff]
      %v358 = vld [vmem:[%s169 + $0x5a8] sm:$0xff]
      %v359 = vld [vmem:[%s169 + $0x5b0] sm:$0xff]
      %v360 = vld [vmem:[%s169 + $0x5b8] sm:$0xff]
      %v361 = vld [vmem:[%s169 + $0x5c0] sm:$0xff]
      %v362 = vld [vmem:[%s169 + $0x5c8] sm:$0xff]
      %v363 = vld [vmem:[%s169 + $0x5d0] sm:$0xff]
      %v364 = vld [vmem:[%s169 + $0x5d8] sm:$0xff]
      %v365 = vld [vmem:[%s169 + $0x5e0] sm:$0xff]
      %v366 = vld [vmem:[%s169 + $0x5e8] sm:$0xff]
      %v367 = vld [vmem:[%s169 + $0x5f0] sm:$0xff]
      %v368 = vld [vmem:[%s169 + $0x5f8] sm:$0xff]
      %v369 = vld [vmem:[%s169 + $0x600] sm:$0xff]
      %v370 = vld [vmem:[%s169 + $0x608] sm:$0xff]
      %v371 = vld [vmem:[%s169 + $0x610] sm:$0xff]
      %v372 = vld [vmem:[%s169 + $0x618] sm:$0xff]
      %v373 = vld [vmem:[%s169 + $0x620] sm:$0xff]
      %v374 = vld [vmem:[%s169 + $0x628] sm:$0xff]
      %v375 = vld [vmem:[%s169 + $0x630] sm:$0xff]
      %v376 = vld [vmem:[%s169 + $0x638] sm:$0xff]
      %v377 = vld [vmem:[%s169 + $0x640] sm:$0xff]
      %v378 = vld [vmem:[%s169 + $0x648] sm:$0xff]
      %v379 = vld [vmem:[%s169 + $0x650] sm:$0xff]
      %v380 = vld [vmem:[%s169 + $0x658] sm:$0xff]
      %v381 = vld [vmem:[%s169 + $0x660] sm:$0xff]
      %v382 = vld [vmem:[%s169 + $0x668] sm:$0xff]
      %v383 = vld [vmem:[%s169 + $0x670] sm:$0xff]
      %v384 = vld [vmem:[%s169 + $0x678] sm:$0xff]
      %v385 = vld [vmem:[%s169 + $0x680] sm:$0xff]
      %v386 = vld [vmem:[%s169 + $0x688] sm:$0xff]
      %v387 = vld [vmem:[%s169 + $0x690] sm:$0xff]
      %v388 = vld [vmem:[%s169 + $0x698] sm:$0xff]
      %v389 = vld [vmem:[%s169 + $0x6a0] sm:$0xff]
      %v390 = vld [vmem:[%s169 + $0x6a8] sm:$0xff]
      %v391 = vld [vmem:[%s169 + $0x6b0] sm:$0xff]
      %v392 = vld [vmem:[%s169 + $0x6b8] sm:$0xff]
      %v393 = vld [vmem:[%s169 + $0x6c0] sm:$0xff]
      %v394 = vld [vmem:[%s169 + $0x6c8] sm:$0xff]
      %v395 = vld [vmem:[%s169 + $0x6d0] sm:$0xff]
      %v396 = vld [vmem:[%s169 + $0x6d8] sm:$0xff]
      %v397 = vld [vmem:[%s169 + $0x6e0] sm:$0xff]
      %v398 = vld [vmem:[%s169 + $0x6e8] sm:$0xff]
      %v399 = vld [vmem:[%s169 + $0x6f0] sm:$0xff]
      %v400 = vld [vmem:[%s169 + $0x6f8] sm:$0xff]
      %v401 = vld [vmem:[%s169 + $0x700] sm:$0xff]
      %v402 = vld [vmem:[%s169 + $0x708] sm:$0xff]
      %v403 = vld [vmem:[%s169 + $0x710] sm:$0xff]
      %v404 = vld [vmem:[%s169 + $0x718] sm:$0xff]
      %v405 = vld [vmem:[%s169 + $0x720] sm:$0xff]
      %v406 = vld [vmem:[%s169 + $0x728] sm:$0xff]
      %v407 = vld [vmem:[%s169 + $0x730] sm:$0xff]
      %v408 = vld [vmem:[%s169 + $0x738] sm:$0xff]
      %v409 = vld [vmem:[%s169 + $0x740] sm:$0xff]
      %v410 = vld [vmem:[%s169 + $0x748] sm:$0xff]
      %v411 = vld [vmem:[%s169 + $0x750] sm:$0xff]
      %v412 = vld [vmem:[%s169 + $0x758] sm:$0xff]
      %v413 = vld [vmem:[%s169 + $0x760] sm:$0xff]
      %v414 = vld [vmem:[%s169 + $0x768] sm:$0xff]
      %v415 = vld [vmem:[%s169 + $0x770] sm:$0xff]
      %v416 = vld [vmem:[%s169 + $0x778] sm:$0xff]
      %v417 = vld [vmem:[%s169 + $0x780] sm:$0xff]
      %v418 = vld [vmem:[%s169 + $0x788] sm:$0xff]
      %v419 = vld [vmem:[%s169 + $0x790] sm:$0xff]
      %v420 = vld [vmem:[%s169 + $0x798] sm:$0xff]
      %v421 = vld [vmem:[%s169 + $0x7a0] sm:$0xff]
      %v422 = vld [vmem:[%s169 + $0x7a8] sm:$0xff]
      %v423 = vld [vmem:[%s169 + $0x7b0] sm:$0xff]
      %v424 = vld [vmem:[%s169 + $0x7b8] sm:$0xff]
      %v425 = vld [vmem:[%s169 + $0x7c0] sm:$0xff]
      %v426 = vld [vmem:[%s169 + $0x7c8] sm:$0xff]
      %v427 = vld [vmem:[%s169 + $0x7d0] sm:$0xff]
      %v428 = vld [vmem:[%s169 + $0x7d8] sm:$0xff]
      %v429 = vld [vmem:[%s169 + $0x7e0] sm:$0xff]
      %v430 = vld [vmem:[%s169 + $0x7e8] sm:$0xff]
      %v431 = vld [vmem:[%s169 + $0x7f0] sm:$0xff]
      %v432 = vld [vmem:[%s169 + $0x7f8] sm:$0xff]
      %v433 = vld [vmem:[%s1] sm:$0xff]
      %v434 = vld [vmem:[%s1 + $0x8] sm:$0xff]
      %v435 = vld [vmem:[%s1 + $0x10] sm:$0xff]
      %v436 = vld [vmem:[%s1 + $0x18] sm:$0xff]
      %v437 = vld [vmem:[%s1 + $0x20] sm:$0xff]
      %v438 = vld [vmem:[%s1 + $0x28] sm:$0xff]
      %v439 = vld [vmem:[%s1 + $0x30] sm:$0xff]
      %v440 = vld [vmem:[%s1 + $0x38] sm:$0xff]
      %v441 = vld [vmem:[%s1 + $0x40] sm:$0xff]
      %v442 = vld [vmem:[%s1 + $0x48] sm:$0xff]
      %v443 = vld [vmem:[%s1 + $0x50] sm:$0xff]
      %v444 = vld [vmem:[%s1 + $0x58] sm:$0xff]
      %v445 = vld [vmem:[%s1 + $0x60] sm:$0xff]
      %v446 = vld [vmem:[%s1 + $0x68] sm:$0xff]
      %v447 = vld [vmem:[%s1 + $0x70] sm:$0xff]
      %v448 = vld [vmem:[%s1 + $0x78] sm:$0xff]
      %v449 = vld [vmem:[%s1 + $0x80] sm:$0xff]
      %v450 = vld [vmem:[%s1 + $0x88] sm:$0xff]
      %v451 = vld [vmem:[%s1 + $0x90] sm:$0xff]
      %v452 = vld [vmem:[%s1 + $0x98] sm:$0xff]
      %v453 = vld [vmem:[%s1 + $0xa0] sm:$0xff]
      %v454 = vld [vmem:[%s1 + $0xa8] sm:$0xff]
      %v455 = vld [vmem:[%s1 + $0xb0] sm:$0xff]
      %v456 = vld [vmem:[%s1 + $0xb8] sm:$0xff]
      %v457 = vld [vmem:[%s1 + $0xc0] sm:$0xff]
      %v458 = vld [vmem:[%s1 + $0xc8] sm:$0xff]
      %v459 = vld [vmem:[%s1 + $0xd0] sm:$0xff]
      %v460 = vld [vmem:[%s1 + $0xd8] sm:$0xff]
      %v461 = vld [vmem:[%s1 + $0xe0] sm:$0xff]
      %v462 = vld [vmem:[%s1 + $0xe8] sm:$0xff]
      %v463 = vld [vmem:[%s1 + $0xf0] sm:$0xff]
      %v464 = vld [vmem:[%s1 + $0xf8] sm:$0xff]
      %v465 = vld [vmem:[%s1 + $0x100] sm:$0xff]
      %v466 = vld [vmem:[%s1 + $0x108] sm:$0xff]
      %v467 = vld [vmem:[%s1 + $0x110] sm:$0xff]
      %v468 = vld [vmem:[%s1 + $0x118] sm:$0xff]
      %v469 = vld [vmem:[%s1 + $0x120] sm:$0xff]
      %v470 = vld [vmem:[%s1 + $0x128] sm:$0xff]
      %v471 = vld [vmem:[%s1 + $0x130] sm:$0xff]
      %v472 = vld [vmem:[%s1 + $0x138] sm:$0xff]
      %v473 = vld [vmem:[%s1 + $0x140] sm:$0xff]
      %v474 = vld [vmem:[%s1 + $0x148] sm:$0xff]
      %v475 = vld [vmem:[%s1 + $0x150] sm:$0xff]
      %v476 = vld [vmem:[%s1 + $0x158] sm:$0xff]
      %v477 = vld [vmem:[%s1 + $0x160] sm:$0xff]
      %v478 = vld [vmem:[%s1 + $0x168] sm:$0xff]
      %v479 = vld [vmem:[%s1 + $0x170] sm:$0xff]
      %v480 = vld [vmem:[%s1 + $0x178] sm:$0xff]
      %v481 = vld [vmem:[%s1 + $0x180] sm:$0xff]
      %v482 = vld [vmem:[%s1 + $0x188] sm:$0xff]
      %v483 = vld [vmem:[%s2] sm:$0x1]
      %v485 = vlaneseq
      %v486 = vshrl.u32 %v485, 7
      %v487 = vsub.s32 0, %v486
      %v488 = vrot.slane %v483, %v487
      %vm490 = vcmask 130048
      %v492 = vsel %vm490, %v180, 0
      %v495 = vsel %vm490, %v184, 0
      %v498 = vsel %vm490, %v188, 0
      %v501 = vsel %vm490, %v192, 0
      %v504 = vsel %vm490, %v196, 0
      %v507 = vsel %vm490, %v200, 0
      %v510 = vsel %vm490, %v204, 0
      %v513 = vsel %vm490, %v208, 0
      %v516 = vsel %vm490, %v212, 0
      %v519 = vsel %vm490, %v216, 0
      %v522 = vsel %vm490, %v220, 0
      %v525 = vsel %vm490, %v224, 0
      %v528 = vsel %vm490, %v228, 0
      %v531 = vsel %vm490, %v232, 0
      %v534 = vsel %vm490, %v236, 0
      %v537 = vsel %vm490, %v240, 0
      %v540 = vsel %vm490, %v244, 0
      %v543 = vsel %vm490, %v248, 0
      %v546 = vsel %vm490, %v252, 0
      %v549 = vsel %vm490, %v256, 0
      %v552 = vsel %vm490, %v260, 0
      %v555 = vsel %vm490, %v264, 0
      %v558 = vsel %vm490, %v268, 0
      %v561 = vsel %vm490, %v272, 0
      %v564 = vsel %vm490, %v276, 0
      %v567 = vsel %vm490, %v280, 0
      %v570 = vsel %vm490, %v284, 0
      %v573 = vsel %vm490, %v288, 0
      %v576 = vsel %vm490, %v292, 0
      %v579 = vsel %vm490, %v296, 0
      %v582 = vsel %vm490, %v300, 0
      %v585 = vsel %vm490, %v304, 0
      %v588 = vsel %vm490, %v308, 0
      %v591 = vsel %vm490, %v312, 0
      %v594 = vsel %vm490, %v316, 0
      %v597 = vsel %vm490, %v320, 0
      %v600 = vsel %vm490, %v324, 0
      %v603 = vsel %vm490, %v328, 0
      %v606 = vsel %vm490, %v332, 0
      %v609 = vsel %vm490, %v336, 0
      %v612 = vsel %vm490, %v340, 0
      %v615 = vsel %vm490, %v344, 0
      %v618 = vsel %vm490, %v348, 0
      %v621 = vsel %vm490, %v352, 0
      %v624 = vsel %vm490, %v356, 0
      %v627 = vsel %vm490, %v360, 0
      %v630 = vsel %vm490, %v364, 0
      %v633 = vsel %vm490, %v368, 0
      %v636 = vsel %vm490, %v372, 0
      %v639 = vsel %vm490, %v376, 0
      %v642 = vsel %vm490, %v380, 0
      %v645 = vsel %vm490, %v384, 0
      %v648 = vsel %vm490, %v388, 0
      %v651 = vsel %vm490, %v392, 0
      %v654 = vsel %vm490, %v396, 0
      %v657 = vsel %vm490, %v400, 0
      %v660 = vsel %vm490, %v404, 0
      %v663 = vsel %vm490, %v408, 0
      %v666 = vsel %vm490, %v412, 0
      %v669 = vsel %vm490, %v416, 0
      %v672 = vsel %vm490, %v420, 0
      %v675 = vsel %vm490, %v424, 0
      %v678 = vsel %vm490, %v428, 0
      %v681 = vsel %vm490, %v432, 0
      %683 = vmatprep.subr.mxu0 0.0
      %684 = vmatpush1.msra.mxu0 %v448
      %685 = vmatprep.subr.mxu0 0.0
      %686 = vmatpush1.msra.mxu0 %v447
      %687 = vmatprep.subr.mxu0 0.0
      %688 = vmatpush1.msra.mxu0 %v446
      %689 = vmatprep.subr.mxu0 0.0
      %690 = vmatpush1.msra.mxu0 %v445
      %691 = vmatprep.subr.mxu0 0.0
      %692 = vmatpush1.msra.mxu0 %v444
      %693 = vmatprep.subr.mxu0 0.0
      %694 = vmatpush1.msra.mxu0 %v443
      %695 = vmatprep.subr.mxu0 0.0
      %696 = vmatpush1.msra.mxu0 %v442
      %697 = vmatprep.subr.mxu0 0.0
      %698 = vmatpush1.msra.mxu0 %v441
      %699 = vmatprep.subr.mxu0 0.0
      %700 = vmatpush1.msra.mxu0 %v440
      %701 = vmatprep.subr.mxu0 0.0
      %702 = vmatpush1.msra.mxu0 %v439
      %703 = vmatprep.subr.mxu0 0.0
      %704 = vmatpush1.msra.mxu0 %v438
      %705 = vmatprep.subr.mxu0 0.0
      %706 = vmatpush1.msra.mxu0 %v437
      %707 = vmatprep.subr.mxu0 0.0
      %708 = vmatpush1.msra.mxu0 %v436
      %709 = vmatprep.subr.mxu0 0.0
      %710 = vmatpush1.msra.mxu0 %v435
      %711 = vmatprep.subr.mxu0 0.0
      %712 = vmatpush1.msra.mxu0 %v434
      %713 = vmatprep.subr.mxu0 0.0
      %714 = vmatpush1.msra.mxu0 %v433
      %715 = vmatprep.subr.mxu0 0.0
      %716 = vmatpush2.msra.mxu0 %v464
      %717 = vmatprep.subr.mxu0 0.0
      %718 = vmatpush2.msra.mxu0 %v463
      %719 = vmatprep.subr.mxu0 0.0
      %720 = vmatpush2.msra.mxu0 %v462
      %721 = vmatprep.subr.mxu0 0.0
      %722 = vmatpush2.msra.mxu0 %v461
      %723 = vmatprep.subr.mxu0 0.0
      %724 = vmatpush2.msra.mxu0 %v460
      %725 = vmatprep.subr.mxu0 0.0
      %726 = vmatpush2.msra.mxu0 %v459
      %727 = vmatprep.subr.mxu0 0.0
      %728 = vmatpush2.msra.mxu0 %v458
      %729 = vmatprep.subr.mxu0 0.0
      %730 = vmatpush2.msra.mxu0 %v457
      %731 = vmatprep.subr.mxu0 0.0
      %732 = vmatpush2.msra.mxu0 %v456
      %733 = vmatprep.subr.mxu0 0.0
      %734 = vmatpush2.msra.mxu0 %v455
      %735 = vmatprep.subr.mxu0 0.0
      %736 = vmatpush2.msra.mxu0 %v454
      %737 = vmatprep.subr.mxu0 0.0
      %738 = vmatpush2.msra.mxu0 %v453
      %739 = vmatprep.subr.mxu0 0.0
      %740 = vmatpush2.msra.mxu0 %v452
      %741 = vmatprep.subr.mxu0 0.0
      %742 = vmatpush2.msra.mxu0 %v451
      %743 = vmatprep.subr.mxu0 0.0
      %744 = vmatpush2.msra.mxu0 %v450
      %745 = vmatprep.subr.mxu0 0.0
      %746 = vmatpush2.msra.mxu0 %v449
      %747 = vmatprep.mubr.f32.mxu0 %v178
      %748 = vmatmul.mubr.f32.gmra.mxu0 %v177
      %v749 = vpop.f32.mrf.mxu0
      %v750 = vadd.f32 %v488, %v749
      %v751 = vpop.f32.mrf.mxu0
      %752 = vmatprep.mubr.f32.mxu0 %v182
      %753 = vmatmul.mubr.f32.gmra.mxu0 %v181
      %v754 = vpop.f32.mrf.mxu0
      %v755 = vadd.f32 %v488, %v754
      %v756 = vpop.f32.mrf.mxu0
      %757 = vmatprep.mubr.f32.mxu0 %v186
      %758 = vmatmul.mubr.f32.gmra.mxu0 %v185
      %v759 = vpop.f32.mrf.mxu0
      %v760 = vadd.f32 %v488, %v759
      %v761 = vpop.f32.mrf.mxu0
      %762 = vmatprep.mubr.f32.mxu0 %v190
      %763 = vmatmul.mubr.f32.gmra.mxu0 %v189
      %v764 = vpop.f32.mrf.mxu0
      %v765 = vadd.f32 %v488, %v764
      %v766 = vpop.f32.mrf.mxu0
      %767 = vmatprep.mubr.f32.mxu0 %v194
      %768 = vmatmul.mubr.f32.gmra.mxu0 %v193
      %v769 = vpop.f32.mrf.mxu0
      %v770 = vadd.f32 %v488, %v769
      %v771 = vpop.f32.mrf.mxu0
      %772 = vmatprep.mubr.f32.mxu0 %v198
      %773 = vmatmul.mubr.f32.gmra.mxu0 %v197
      %v774 = vpop.f32.mrf.mxu0
      %v775 = vadd.f32 %v488, %v774
      %v776 = vpop.f32.mrf.mxu0
      %777 = vmatprep.mubr.f32.mxu0 %v202
      %778 = vmatmul.mubr.f32.gmra.mxu0 %v201
      %v779 = vpop.f32.mrf.mxu0
      %v780 = vadd.f32 %v488, %v779
      %v781 = vpop.f32.mrf.mxu0
      %782 = vmatprep.mubr.f32.mxu0 %v206
      %783 = vmatmul.mubr.f32.gmra.mxu0 %v205
      %v784 = vpop.f32.mrf.mxu0
      %v785 = vadd.f32 %v488, %v784
      %v786 = vpop.f32.mrf.mxu0
      %787 = vmatprep.mubr.f32.mxu0 %v210
      %788 = vmatmul.mubr.f32.gmra.mxu0 %v209
      %v789 = vpop.f32.mrf.mxu0
      %v790 = vadd.f32 %v488, %v789
      %v791 = vpop.f32.mrf.mxu0
      %792 = vmatprep.mubr.f32.mxu0 %v214
      %793 = vmatmul.mubr.f32.gmra.mxu0 %v213
      %v794 = vpop.f32.mrf.mxu0
      %v795 = vadd.f32 %v488, %v794
      %v796 = vpop.f32.mrf.mxu0
      %797 = vmatprep.mubr.f32.mxu0 %v218
      %798 = vmatmul.mubr.f32.gmra.mxu0 %v217
      %v799 = vpop.f32.mrf.mxu0
      %v800 = vadd.f32 %v488, %v799
      %v801 = vpop.f32.mrf.mxu0
      %802 = vmatprep.mubr.f32.mxu0 %v222
      %803 = vmatmul.mubr.f32.gmra.mxu0 %v221
      %v804 = vpop.f32.mrf.mxu0
      %v805 = vadd.f32 %v488, %v804
      %v806 = vpop.f32.mrf.mxu0
      %807 = vmatprep.mubr.f32.mxu0 %v226
      %808 = vmatmul.mubr.f32.gmra.mxu0 %v225
      %v809 = vpop.f32.mrf.mxu0
      %v810 = vadd.f32 %v488, %v809
      %v811 = vpop.f32.mrf.mxu0
      %812 = vmatprep.mubr.f32.mxu0 %v230
      %813 = vmatmul.mubr.f32.gmra.mxu0 %v229
      %v814 = vpop.f32.mrf.mxu0
      %v815 = vadd.f32 %v488, %v814
      %v816 = vpop.f32.mrf.mxu0
      %817 = vmatprep.mubr.f32.mxu0 %v234
      %818 = vmatmul.mubr.f32.gmra.mxu0 %v233
      %v819 = vpop.f32.mrf.mxu0
      %v820 = vadd.f32 %v488, %v819
      %v821 = vpop.f32.mrf.mxu0
      %822 = vmatprep.mubr.f32.mxu0 %v238
      %823 = vmatmul.mubr.f32.gmra.mxu0 %v237
      %v824 = vpop.f32.mrf.mxu0
      %v825 = vadd.f32 %v488, %v824
      %v826 = vpop.f32.mrf.mxu0
      %827 = vmatprep.mubr.f32.mxu0 %v242
      %828 = vmatmul.mubr.f32.gmra.mxu0 %v241
      %v829 = vpop.f32.mrf.mxu0
      %v830 = vadd.f32 %v488, %v829
      %v831 = vpop.f32.mrf.mxu0
      %832 = vmatprep.mubr.f32.mxu0 %v246
      %833 = vmatmul.mubr.f32.gmra.mxu0 %v245
      %v834 = vpop.f32.mrf.mxu0
      %v835 = vadd.f32 %v488, %v834
      %v836 = vpop.f32.mrf.mxu0
      %837 = vmatprep.mubr.f32.mxu0 %v250
      %838 = vmatmul.mubr.f32.gmra.mxu0 %v249
      %v839 = vpop.f32.mrf.mxu0
      %v840 = vadd.f32 %v488, %v839
      %v841 = vpop.f32.mrf.mxu0
      %842 = vmatprep.mubr.f32.mxu0 %v254
      %843 = vmatmul.mubr.f32.gmra.mxu0 %v253
      %v844 = vpop.f32.mrf.mxu0
      %v845 = vadd.f32 %v488, %v844
      %v846 = vpop.f32.mrf.mxu0
      %847 = vmatprep.mubr.f32.mxu0 %v258
      %848 = vmatmul.mubr.f32.gmra.mxu0 %v257
      %v849 = vpop.f32.mrf.mxu0
      %v850 = vadd.f32 %v488, %v849
      %v851 = vpop.f32.mrf.mxu0
      %852 = vmatprep.mubr.f32.mxu0 %v262
      %853 = vmatmul.mubr.f32.gmra.mxu0 %v261
      %v854 = vpop.f32.mrf.mxu0
      %v855 = vadd.f32 %v488, %v854
      %v856 = vpop.f32.mrf.mxu0
      %857 = vmatprep.mubr.f32.mxu0 %v266
      %858 = vmatmul.mubr.f32.gmra.mxu0 %v265
      %v859 = vpop.f32.mrf.mxu0
      %v860 = vadd.f32 %v488, %v859
      %v861 = vpop.f32.mrf.mxu0
      %862 = vmatprep.mubr.f32.mxu0 %v270
      %863 = vmatmul.mubr.f32.gmra.mxu0 %v269
      %v864 = vpop.f32.mrf.mxu0
      %v865 = vadd.f32 %v488, %v864
      %v866 = vpop.f32.mrf.mxu0
      %867 = vmatprep.mubr.f32.mxu0 %v274
      %868 = vmatmul.mubr.f32.gmra.mxu0 %v273
      %v869 = vpop.f32.mrf.mxu0
      %v870 = vadd.f32 %v488, %v869
      %v871 = vpop.f32.mrf.mxu0
      %872 = vmatprep.mubr.f32.mxu0 %v278
      %873 = vmatmul.mubr.f32.gmra.mxu0 %v277
      %v874 = vpop.f32.mrf.mxu0
      %v875 = vadd.f32 %v488, %v874
      %v876 = vpop.f32.mrf.mxu0
      %877 = vmatprep.mubr.f32.mxu0 %v282
      %878 = vmatmul.mubr.f32.gmra.mxu0 %v281
      %v879 = vpop.f32.mrf.mxu0
      %v880 = vadd.f32 %v488, %v879
      %v881 = vpop.f32.mrf.mxu0
      %882 = vmatprep.mubr.f32.mxu0 %v286
      %883 = vmatmul.mubr.f32.gmra.mxu0 %v285
      %v884 = vpop.f32.mrf.mxu0
      %v885 = vadd.f32 %v488, %v884
      %v886 = vpop.f32.mrf.mxu0
      %887 = vmatprep.mubr.f32.mxu0 %v290
      %888 = vmatmul.mubr.f32.gmra.mxu0 %v289
      %v889 = vpop.f32.mrf.mxu0
      %v890 = vadd.f32 %v488, %v889
      %v891 = vpop.f32.mrf.mxu0
      %892 = vmatprep.mubr.f32.mxu0 %v294
      %893 = vmatmul.mubr.f32.gmra.mxu0 %v293
      %v894 = vpop.f32.mrf.mxu0
      %v895 = vadd.f32 %v488, %v894
      %v896 = vpop.f32.mrf.mxu0
      %897 = vmatprep.mubr.f32.mxu0 %v298
      %898 = vmatmul.mubr.f32.gmra.mxu0 %v297
      %v899 = vpop.f32.mrf.mxu0
      %v900 = vadd.f32 %v488, %v899
      %v901 = vpop.f32.mrf.mxu0
      %902 = vmatprep.mubr.f32.mxu0 %v302
      %903 = vmatmul.mubr.f32.gmra.mxu0 %v301
      %v904 = vpop.f32.mrf.mxu0
      %v905 = vadd.f32 %v488, %v904
      %v906 = vpop.f32.mrf.mxu0
      %907 = vmatprep.mubr.f32.mxu0 %v306
      %908 = vmatmul.mubr.f32.gmra.mxu0 %v305
      %v909 = vpop.f32.mrf.mxu0
      %v910 = vadd.f32 %v488, %v909
      %v911 = vpop.f32.mrf.mxu0
      %912 = vmatprep.mubr.f32.mxu0 %v310
      %913 = vmatmul.mubr.f32.gmra.mxu0 %v309
      %v914 = vpop.f32.mrf.mxu0
      %v915 = vadd.f32 %v488, %v914
      %v916 = vpop.f32.mrf.mxu0
      %917 = vmatprep.mubr.f32.mxu0 %v314
      %918 = vmatmul.mubr.f32.gmra.mxu0 %v313
      %v919 = vpop.f32.mrf.mxu0
      %v920 = vadd.f32 %v488, %v919
      %v921 = vpop.f32.mrf.mxu0
      %922 = vmatprep.mubr.f32.mxu0 %v318
      %923 = vmatmul.mubr.f32.gmra.mxu0 %v317
      %v924 = vpop.f32.mrf.mxu0
      %v925 = vadd.f32 %v488, %v924
      %v926 = vpop.f32.mrf.mxu0
      %927 = vmatprep.mubr.f32.mxu0 %v322
      %928 = vmatmul.mubr.f32.gmra.mxu0 %v321
      %v929 = vpop.f32.mrf.mxu0
      %v930 = vadd.f32 %v488, %v929
      %v931 = vpop.f32.mrf.mxu0
      %932 = vmatprep.mubr.f32.mxu0 %v326
      %933 = vmatmul.mubr.f32.gmra.mxu0 %v325
      %v934 = vpop.f32.mrf.mxu0
      %v935 = vadd.f32 %v488, %v934
      %v936 = vpop.f32.mrf.mxu0
      %937 = vmatprep.mubr.f32.mxu0 %v330
      %938 = vmatmul.mubr.f32.gmra.mxu0 %v329
      %v939 = vpop.f32.mrf.mxu0
      %v940 = vadd.f32 %v488, %v939
      %v941 = vpop.f32.mrf.mxu0
      %942 = vmatprep.mubr.f32.mxu0 %v334
      %943 = vmatmul.mubr.f32.gmra.mxu0 %v333
      %v944 = vpop.f32.mrf.mxu0
      %v945 = vadd.f32 %v488, %v944
      %v946 = vpop.f32.mrf.mxu0
      %947 = vmatprep.mubr.f32.mxu0 %v338
      %948 = vmatmul.mubr.f32.gmra.mxu0 %v337
      %v949 = vpop.f32.mrf.mxu0
      %v950 = vadd.f32 %v488, %v949
      %v951 = vpop.f32.mrf.mxu0
      %952 = vmatprep.mubr.f32.mxu0 %v342
      %953 = vmatmul.mubr.f32.gmra.mxu0 %v341
      %v954 = vpop.f32.mrf.mxu0
      %v955 = vadd.f32 %v488, %v954
      %v956 = vpop.f32.mrf.mxu0
      %957 = vmatprep.mubr.f32.mxu0 %v346
      %958 = vmatmul.mubr.f32.gmra.mxu0 %v345
      %v959 = vpop.f32.mrf.mxu0
      %v960 = vadd.f32 %v488, %v959
      %v961 = vpop.f32.mrf.mxu0
      %962 = vmatprep.mubr.f32.mxu0 %v350
      %963 = vmatmul.mubr.f32.gmra.mxu0 %v349
      %v964 = vpop.f32.mrf.mxu0
      %v965 = vadd.f32 %v488, %v964
      %v966 = vpop.f32.mrf.mxu0
      %967 = vmatprep.mubr.f32.mxu0 %v354
      %968 = vmatmul.mubr.f32.gmra.mxu0 %v353
      %v969 = vpop.f32.mrf.mxu0
      %v970 = vadd.f32 %v488, %v969
      %v971 = vpop.f32.mrf.mxu0
      %972 = vmatprep.mubr.f32.mxu0 %v358
      %973 = vmatmul.mubr.f32.gmra.mxu0 %v357
      %v974 = vpop.f32.mrf.mxu0
      %v975 = vadd.f32 %v488, %v974
      %v976 = vpop.f32.mrf.mxu0
      %977 = vmatprep.mubr.f32.mxu0 %v362
      %978 = vmatmul.mubr.f32.gmra.mxu0 %v361
      %v979 = vpop.f32.mrf.mxu0
      %v980 = vadd.f32 %v488, %v979
      %v981 = vpop.f32.mrf.mxu0
      %982 = vmatprep.mubr.f32.mxu0 %v366
      %983 = vmatmul.mubr.f32.gmra.mxu0 %v365
      %v984 = vpop.f32.mrf.mxu0
      %v985 = vadd.f32 %v488, %v984
      %v986 = vpop.f32.mrf.mxu0
      %987 = vmatprep.mubr.f32.mxu0 %v370
      %988 = vmatmul.mubr.f32.gmra.mxu0 %v369
      %v989 = vpop.f32.mrf.mxu0
      %v990 = vadd.f32 %v488, %v989
      %v991 = vpop.f32.mrf.mxu0
      %992 = vmatprep.mubr.f32.mxu0 %v374
      %993 = vmatmul.mubr.f32.gmra.mxu0 %v373
      %v994 = vpop.f32.mrf.mxu0
      %v995 = vadd.f32 %v488, %v994
      %v996 = vpop.f32.mrf.mxu0
      %997 = vmatprep.mubr.f32.mxu0 %v378
      %998 = vmatmul.mubr.f32.gmra.mxu0 %v377
      %v999 = vpop.f32.mrf.mxu0
      %v1000 = vadd.f32 %v488, %v999
      %v1001 = vpop.f32.mrf.mxu0
      %1002 = vmatprep.mubr.f32.mxu0 %v382
      %1003 = vmatmul.mubr.f32.gmra.mxu0 %v381
      %v1004 = vpop.f32.mrf.mxu0
      %v1005 = vadd.f32 %v488, %v1004
      %v1006 = vpop.f32.mrf.mxu0
      %1007 = vmatprep.mubr.f32.mxu0 %v386
      %1008 = vmatmul.mubr.f32.gmra.mxu0 %v385
      %v1009 = vpop.f32.mrf.mxu0
      %v1010 = vadd.f32 %v488, %v1009
      %v1011 = vpop.f32.mrf.mxu0
      %1012 = vmatprep.mubr.f32.mxu0 %v390
      %1013 = vmatmul.mubr.f32.gmra.mxu0 %v389
      %v1014 = vpop.f32.mrf.mxu0
      %v1015 = vadd.f32 %v488, %v1014
      %v1016 = vpop.f32.mrf.mxu0
      %1017 = vmatprep.mubr.f32.mxu0 %v394
      %1018 = vmatmul.mubr.f32.gmra.mxu0 %v393
      %v1019 = vpop.f32.mrf.mxu0
      %v1020 = vadd.f32 %v488, %v1019
      %v1021 = vpop.f32.mrf.mxu0
      %1022 = vmatprep.mubr.f32.mxu0 %v398
      %1023 = vmatmul.mubr.f32.gmra.mxu0 %v397
      %v1024 = vpop.f32.mrf.mxu0
      %v1025 = vadd.f32 %v488, %v1024
      %v1026 = vpop.f32.mrf.mxu0
      %1027 = vmatprep.mubr.f32.mxu0 %v402
      %1028 = vmatmul.mubr.f32.gmra.mxu0 %v401
      %v1029 = vpop.f32.mrf.mxu0
      %v1030 = vadd.f32 %v488, %v1029
      %v1031 = vpop.f32.mrf.mxu0
      %1032 = vmatprep.mubr.f32.mxu0 %v406
      %1033 = vmatmul.mubr.f32.gmra.mxu0 %v405
      %v1034 = vpop.f32.mrf.mxu0
      %v1035 = vadd.f32 %v488, %v1034
      %v1036 = vpop.f32.mrf.mxu0
      %1037 = vmatprep.mubr.f32.mxu0 %v410
      %1038 = vmatmul.mubr.f32.gmra.mxu0 %v409
      %v1039 = vpop.f32.mrf.mxu0
      %v1040 = vadd.f32 %v488, %v1039
      %v1041 = vpop.f32.mrf.mxu0
      %1042 = vmatprep.mubr.f32.mxu0 %v414
      %1043 = vmatmul.mubr.f32.gmra.mxu0 %v413
      %v1044 = vpop.f32.mrf.mxu0
      %v1045 = vadd.f32 %v488, %v1044
      %v1046 = vpop.f32.mrf.mxu0
      %1047 = vmatprep.mubr.f32.mxu0 %v418
      %1048 = vmatmul.mubr.f32.gmra.mxu0 %v417
      %v1049 = vpop.f32.mrf.mxu0
      %v1050 = vadd.f32 %v488, %v1049
      %v1051 = vpop.f32.mrf.mxu0
      %1052 = vmatprep.mubr.f32.mxu0 %v422
      %1053 = vmatmul.mubr.f32.gmra.mxu0 %v421
      %v1054 = vpop.f32.mrf.mxu0
      %v1055 = vadd.f32 %v488, %v1054
      %v1056 = vpop.f32.mrf.mxu0
      %1057 = vmatprep.mubr.f32.mxu0 %v426
      %1058 = vmatmul.mubr.f32.gmra.mxu0 %v425
      %v1059 = vpop.f32.mrf.mxu0
      %v1060 = vadd.f32 %v488, %v1059
      %v1061 = vpop.f32.mrf.mxu0
      %1062 = vmatprep.mubr.f32.mxu0 %v430
      %1063 = vmatmul.mubr.f32.gmra.mxu0 %v429
      %v1064 = vpop.f32.mrf.mxu0
      %v1065 = vadd.f32 %v488, %v1064
      %v1066 = vpop.f32.mrf.mxu0
      %1067 = vdwg.mxu0
      %1068 = vmatprep.subr.mxu0 0.0
      %1069 = vmatpush1.msra.mxu0 %v480
      %1070 = vmatprep.subr.mxu0 0.0
      %1071 = vmatpush1.msra.mxu0 %v479
      %1072 = vmatprep.subr.mxu0 0.0
      %1073 = vmatpush1.msra.mxu0 %v478
      %1074 = vmatprep.subr.mxu0 0.0
      %1075 = vmatpush1.msra.mxu0 %v477
      %1076 = vmatprep.subr.mxu0 0.0
      %1077 = vmatpush1.msra.mxu0 %v476
      %1078 = vmatprep.subr.mxu0 0.0
      %1079 = vmatpush1.msra.mxu0 %v475
      %1080 = vmatprep.subr.mxu0 0.0
      %1081 = vmatpush1.msra.mxu0 %v474
      %1082 = vmatprep.subr.mxu0 0.0
      %1083 = vmatpush1.msra.mxu0 %v473
      %1084 = vmatprep.subr.mxu0 0.0
      %1085 = vmatpush1.msra.mxu0 %v472
      %1086 = vmatprep.subr.mxu0 0.0
      %1087 = vmatpush1.msra.mxu0 %v471
      %1088 = vmatprep.subr.mxu0 0.0
      %1089 = vmatpush1.msra.mxu0 %v470
      %1090 = vmatprep.subr.mxu0 0.0
      %1091 = vmatpush1.msra.mxu0 %v469
      %1092 = vmatprep.subr.mxu0 0.0
      %1093 = vmatpush1.msra.mxu0 %v468
      %1094 = vmatprep.subr.mxu0 0.0
      %1095 = vmatpush1.msra.mxu0 %v467
      %1096 = vmatprep.subr.mxu0 0.0
      %1097 = vmatpush1.msra.mxu0 %v466
      %1098 = vmatprep.subr.mxu0 0.0
      %1099 = vmatpush1.msra.mxu0 %v465
      %1100 = vmatprep.subr.mxu0 0.0
      %1101 = vmatpush2.msra.mxu0 0.0
      %1102 = vmatprep.subr.mxu0 0.0
      %1103 = vmatpush2.msra.mxu0 0.0
      %1104 = vmatprep.subr.mxu0 0.0
      %1105 = vmatpush2.msra.mxu0 0.0
      %1106 = vmatprep.subr.mxu0 0.0
      %1107 = vmatpush2.msra.mxu0 0.0
      %1108 = vmatprep.subr.mxu0 0.0
      %1109 = vmatpush2.msra.mxu0 0.0
      %1110 = vmatprep.subr.mxu0 0.0
      %1111 = vmatpush2.msra.mxu0 0.0
      %1112 = vmatprep.subr.mxu0 0.0
      %1113 = vmatpush2.msra.mxu0 0.0
      %1114 = vmatprep.subr.mxu0 0.0
      %1115 = vmatpush2.msra.mxu0 0.0
      %1116 = vmatprep.subr.mxu0 0.0
      %1117 = vmatpush2.msra.mxu0 0.0
      %1118 = vmatprep.subr.mxu0 0.0
      %1119 = vmatpush2.msra.mxu0 0.0
      %1120 = vmatprep.subr.mxu0 0.0
      %1121 = vmatpush2.msra.mxu0 0.0
      %1122 = vmatprep.subr.mxu0 0.0
      %1123 = vmatpush2.msra.mxu0 0.0
      %1124 = vmatprep.subr.mxu0 0.0
      %1125 = vmatpush2.msra.mxu0 0.0
      %1126 = vmatprep.subr.mxu0 0.0
      %1127 = vmatpush2.msra.mxu0 0.0
      %1128 = vmatprep.subr.mxu0 0.0
      %1129 = vmatpush2.msra.mxu0 %v482
      %1130 = vmatprep.subr.mxu0 0.0
      %1131 = vmatpush2.msra.mxu0 %v481
      %1132 = vmatprep.mubr.f32.mxu0 %v492
      %1133 = vmatmul.mubr.f32.gmra.mxu0 %v179
      %v1134 = vpop.f32.mrf.mxu0
      %v1135 = vadd.f32 %v750, %v1134
      %v1136 = vpop.f32.mrf.mxu0
      %1137 = vmatprep.mubr.f32.mxu0 %v495
      %1138 = vmatmul.mubr.f32.gmra.mxu0 %v183
      %v1139 = vpop.f32.mrf.mxu0
      %v1140 = vadd.f32 %v755, %v1139
      %v1141 = vpop.f32.mrf.mxu0
      %1142 = vmatprep.mubr.f32.mxu0 %v498
      %1143 = vmatmul.mubr.f32.gmra.mxu0 %v187
      %v1144 = vpop.f32.mrf.mxu0
      %v1145 = vadd.f32 %v760, %v1144
      %v1146 = vpop.f32.mrf.mxu0
      %1147 = vmatprep.mubr.f32.mxu0 %v501
      %1148 = vmatmul.mubr.f32.gmra.mxu0 %v191
      %v1149 = vpop.f32.mrf.mxu0
      %v1150 = vadd.f32 %v765, %v1149
      %v1151 = vpop.f32.mrf.mxu0
      %1152 = vmatprep.mubr.f32.mxu0 %v504
      %1153 = vmatmul.mubr.f32.gmra.mxu0 %v195
      %v1154 = vpop.f32.mrf.mxu0
      %v1155 = vadd.f32 %v770, %v1154
      %v1156 = vpop.f32.mrf.mxu0
      %1157 = vmatprep.mubr.f32.mxu0 %v507
      %1158 = vmatmul.mubr.f32.gmra.mxu0 %v199
      %v1159 = vpop.f32.mrf.mxu0
      %v1160 = vadd.f32 %v775, %v1159
      %v1161 = vpop.f32.mrf.mxu0
      %1162 = vmatprep.mubr.f32.mxu0 %v510
      %1163 = vmatmul.mubr.f32.gmra.mxu0 %v203
      %v1164 = vpop.f32.mrf.mxu0
      %v1165 = vadd.f32 %v780, %v1164
      %v1166 = vpop.f32.mrf.mxu0
      %1167 = vmatprep.mubr.f32.mxu0 %v513
      %1168 = vmatmul.mubr.f32.gmra.mxu0 %v207
      %v1169 = vpop.f32.mrf.mxu0
      %v1170 = vadd.f32 %v785, %v1169
      %v1171 = vpop.f32.mrf.mxu0
      %1172 = vmatprep.mubr.f32.mxu0 %v516
      %1173 = vmatmul.mubr.f32.gmra.mxu0 %v211
      %v1174 = vpop.f32.mrf.mxu0
      %v1175 = vadd.f32 %v790, %v1174
      %v1176 = vpop.f32.mrf.mxu0
      %1177 = vmatprep.mubr.f32.mxu0 %v519
      %1178 = vmatmul.mubr.f32.gmra.mxu0 %v215
      %v1179 = vpop.f32.mrf.mxu0
      %v1180 = vadd.f32 %v795, %v1179
      %v1181 = vpop.f32.mrf.mxu0
      %1182 = vmatprep.mubr.f32.mxu0 %v522
      %1183 = vmatmul.mubr.f32.gmra.mxu0 %v219
      %v1184 = vpop.f32.mrf.mxu0
      %v1185 = vadd.f32 %v800, %v1184
      %v1186 = vpop.f32.mrf.mxu0
      %1187 = vmatprep.mubr.f32.mxu0 %v525
      %1188 = vmatmul.mubr.f32.gmra.mxu0 %v223
      %v1189 = vpop.f32.mrf.mxu0
      %v1190 = vadd.f32 %v805, %v1189
      %v1191 = vpop.f32.mrf.mxu0
      %1192 = vmatprep.mubr.f32.mxu0 %v528
      %1193 = vmatmul.mubr.f32.gmra.mxu0 %v227
      %v1194 = vpop.f32.mrf.mxu0
      %v1195 = vadd.f32 %v810, %v1194
      %v1196 = vpop.f32.mrf.mxu0
      %1197 = vmatprep.mubr.f32.mxu0 %v531
      %1198 = vmatmul.mubr.f32.gmra.mxu0 %v231
      %v1199 = vpop.f32.mrf.mxu0
      %v1200 = vadd.f32 %v815, %v1199
      %v1201 = vpop.f32.mrf.mxu0
      %1202 = vmatprep.mubr.f32.mxu0 %v534
      %1203 = vmatmul.mubr.f32.gmra.mxu0 %v235
      %v1204 = vpop.f32.mrf.mxu0
      %v1205 = vadd.f32 %v820, %v1204
      %v1206 = vpop.f32.mrf.mxu0
      %1207 = vmatprep.mubr.f32.mxu0 %v537
      %1208 = vmatmul.mubr.f32.gmra.mxu0 %v239
      %v1209 = vpop.f32.mrf.mxu0
      %v1210 = vadd.f32 %v825, %v1209
      %v1211 = vpop.f32.mrf.mxu0
      %1212 = vmatprep.mubr.f32.mxu0 %v540
      %1213 = vmatmul.mubr.f32.gmra.mxu0 %v243
      %v1214 = vpop.f32.mrf.mxu0
      %v1215 = vadd.f32 %v830, %v1214
      %v1216 = vpop.f32.mrf.mxu0
      %1217 = vmatprep.mubr.f32.mxu0 %v543
      %1218 = vmatmul.mubr.f32.gmra.mxu0 %v247
      %v1219 = vpop.f32.mrf.mxu0
      %v1220 = vadd.f32 %v835, %v1219
      %v1221 = vpop.f32.mrf.mxu0
      %1222 = vmatprep.mubr.f32.mxu0 %v546
      %1223 = vmatmul.mubr.f32.gmra.mxu0 %v251
      %v1224 = vpop.f32.mrf.mxu0
      %v1225 = vadd.f32 %v840, %v1224
      %v1226 = vpop.f32.mrf.mxu0
      %1227 = vmatprep.mubr.f32.mxu0 %v549
      %1228 = vmatmul.mubr.f32.gmra.mxu0 %v255
      %v1229 = vpop.f32.mrf.mxu0
      %v1230 = vadd.f32 %v845, %v1229
      %v1231 = vpop.f32.mrf.mxu0
      %1232 = vmatprep.mubr.f32.mxu0 %v552
      %1233 = vmatmul.mubr.f32.gmra.mxu0 %v259
      %v1234 = vpop.f32.mrf.mxu0
      %v1235 = vadd.f32 %v850, %v1234
      %v1236 = vpop.f32.mrf.mxu0
      %1237 = vmatprep.mubr.f32.mxu0 %v555
      %1238 = vmatmul.mubr.f32.gmra.mxu0 %v263
      %v1239 = vpop.f32.mrf.mxu0
      %v1240 = vadd.f32 %v855, %v1239
      %v1241 = vpop.f32.mrf.mxu0
      %1242 = vmatprep.mubr.f32.mxu0 %v558
      %1243 = vmatmul.mubr.f32.gmra.mxu0 %v267
      %v1244 = vpop.f32.mrf.mxu0
      %v1245 = vadd.f32 %v860, %v1244
      %v1246 = vpop.f32.mrf.mxu0
      %1247 = vmatprep.mubr.f32.mxu0 %v561
      %1248 = vmatmul.mubr.f32.gmra.mxu0 %v271
      %v1249 = vpop.f32.mrf.mxu0
      %v1250 = vadd.f32 %v865, %v1249
      %v1251 = vpop.f32.mrf.mxu0
      %1252 = vmatprep.mubr.f32.mxu0 %v564
      %1253 = vmatmul.mubr.f32.gmra.mxu0 %v275
      %v1254 = vpop.f32.mrf.mxu0
      %v1255 = vadd.f32 %v870, %v1254
      %v1256 = vpop.f32.mrf.mxu0
      %1257 = vmatprep.mubr.f32.mxu0 %v567
      %1258 = vmatmul.mubr.f32.gmra.mxu0 %v279
      %v1259 = vpop.f32.mrf.mxu0
      %v1260 = vadd.f32 %v875, %v1259
      %v1261 = vpop.f32.mrf.mxu0
      %1262 = vmatprep.mubr.f32.mxu0 %v570
      %1263 = vmatmul.mubr.f32.gmra.mxu0 %v283
      %v1264 = vpop.f32.mrf.mxu0
      %v1265 = vadd.f32 %v880, %v1264
      %v1266 = vpop.f32.mrf.mxu0
      %1267 = vmatprep.mubr.f32.mxu0 %v573
      %1268 = vmatmul.mubr.f32.gmra.mxu0 %v287
      %v1269 = vpop.f32.mrf.mxu0
      %v1270 = vadd.f32 %v885, %v1269
      %v1271 = vpop.f32.mrf.mxu0
      %1272 = vmatprep.mubr.f32.mxu0 %v576
      %1273 = vmatmul.mubr.f32.gmra.mxu0 %v291
      %v1274 = vpop.f32.mrf.mxu0
      %v1275 = vadd.f32 %v890, %v1274
      %v1276 = vpop.f32.mrf.mxu0
      %1277 = vmatprep.mubr.f32.mxu0 %v579
      %1278 = vmatmul.mubr.f32.gmra.mxu0 %v295
      %v1279 = vpop.f32.mrf.mxu0
      %v1280 = vadd.f32 %v895, %v1279
      %v1281 = vpop.f32.mrf.mxu0
      %1282 = vmatprep.mubr.f32.mxu0 %v582
      %1283 = vmatmul.mubr.f32.gmra.mxu0 %v299
      %v1284 = vpop.f32.mrf.mxu0
      %v1285 = vadd.f32 %v900, %v1284
      %v1286 = vpop.f32.mrf.mxu0
      %1287 = vmatprep.mubr.f32.mxu0 %v585
      %1288 = vmatmul.mubr.f32.gmra.mxu0 %v303
      %v1289 = vpop.f32.mrf.mxu0
      %v1290 = vadd.f32 %v905, %v1289
      %v1291 = vpop.f32.mrf.mxu0
      %1292 = vmatprep.mubr.f32.mxu0 %v588
      %1293 = vmatmul.mubr.f32.gmra.mxu0 %v307
      %v1294 = vpop.f32.mrf.mxu0
      %v1295 = vadd.f32 %v910, %v1294
      %v1296 = vpop.f32.mrf.mxu0
      %1297 = vmatprep.mubr.f32.mxu0 %v591
      %1298 = vmatmul.mubr.f32.gmra.mxu0 %v311
      %v1299 = vpop.f32.mrf.mxu0
      %v1300 = vadd.f32 %v915, %v1299
      %v1301 = vpop.f32.mrf.mxu0
      %1302 = vmatprep.mubr.f32.mxu0 %v594
      %1303 = vmatmul.mubr.f32.gmra.mxu0 %v315
      %v1304 = vpop.f32.mrf.mxu0
      %v1305 = vadd.f32 %v920, %v1304
      %v1306 = vpop.f32.mrf.mxu0
      %1307 = vmatprep.mubr.f32.mxu0 %v597
      %1308 = vmatmul.mubr.f32.gmra.mxu0 %v319
      %v1309 = vpop.f32.mrf.mxu0
      %v1310 = vadd.f32 %v925, %v1309
      %v1311 = vpop.f32.mrf.mxu0
      %1312 = vmatprep.mubr.f32.mxu0 %v600
      %1313 = vmatmul.mubr.f32.gmra.mxu0 %v323
      %v1314 = vpop.f32.mrf.mxu0
      %v1315 = vadd.f32 %v930, %v1314
      %v1316 = vpop.f32.mrf.mxu0
      %1317 = vmatprep.mubr.f32.mxu0 %v603
      %1318 = vmatmul.mubr.f32.gmra.mxu0 %v327
      %v1319 = vpop.f32.mrf.mxu0
      %v1320 = vadd.f32 %v935, %v1319
      %v1321 = vpop.f32.mrf.mxu0
      %1322 = vmatprep.mubr.f32.mxu0 %v606
      %1323 = vmatmul.mubr.f32.gmra.mxu0 %v331
      %v1324 = vpop.f32.mrf.mxu0
      %v1325 = vadd.f32 %v940, %v1324
      %v1326 = vpop.f32.mrf.mxu0
      %1327 = vmatprep.mubr.f32.mxu0 %v609
      %1328 = vmatmul.mubr.f32.gmra.mxu0 %v335
      %v1329 = vpop.f32.mrf.mxu0
      %v1330 = vadd.f32 %v945, %v1329
      %v1331 = vpop.f32.mrf.mxu0
      %1332 = vmatprep.mubr.f32.mxu0 %v612
      %1333 = vmatmul.mubr.f32.gmra.mxu0 %v339
      %v1334 = vpop.f32.mrf.mxu0
      %v1335 = vadd.f32 %v950, %v1334
      %v1336 = vpop.f32.mrf.mxu0
      %1337 = vmatprep.mubr.f32.mxu0 %v615
      %1338 = vmatmul.mubr.f32.gmra.mxu0 %v343
      %v1339 = vpop.f32.mrf.mxu0
      %v1340 = vadd.f32 %v955, %v1339
      %v1341 = vpop.f32.mrf.mxu0
      %1342 = vmatprep.mubr.f32.mxu0 %v618
      %1343 = vmatmul.mubr.f32.gmra.mxu0 %v347
      %v1344 = vpop.f32.mrf.mxu0
      %v1345 = vadd.f32 %v960, %v1344
      %v1346 = vpop.f32.mrf.mxu0
      %1347 = vmatprep.mubr.f32.mxu0 %v621
      %1348 = vmatmul.mubr.f32.gmra.mxu0 %v351
      %v1349 = vpop.f32.mrf.mxu0
      %v1350 = vadd.f32 %v965, %v1349
      %v1351 = vpop.f32.mrf.mxu0
      %1352 = vmatprep.mubr.f32.mxu0 %v624
      %1353 = vmatmul.mubr.f32.gmra.mxu0 %v355
      %v1354 = vpop.f32.mrf.mxu0
      %v1355 = vadd.f32 %v970, %v1354
      %v1356 = vpop.f32.mrf.mxu0
      %1357 = vmatprep.mubr.f32.mxu0 %v627
      %1358 = vmatmul.mubr.f32.gmra.mxu0 %v359
      %v1359 = vpop.f32.mrf.mxu0
      %v1360 = vadd.f32 %v975, %v1359
      %v1361 = vpop.f32.mrf.mxu0
      %1362 = vmatprep.mubr.f32.mxu0 %v630
      %1363 = vmatmul.mubr.f32.gmra.mxu0 %v363
      %v1364 = vpop.f32.mrf.mxu0
      %v1365 = vadd.f32 %v980, %v1364
      %v1366 = vpop.f32.mrf.mxu0
      %1367 = vmatprep.mubr.f32.mxu0 %v633
      %1368 = vmatmul.mubr.f32.gmra.mxu0 %v367
      %v1369 = vpop.f32.mrf.mxu0
      %v1370 = vadd.f32 %v985, %v1369
      %v1371 = vpop.f32.mrf.mxu0
      %1372 = vmatprep.mubr.f32.mxu0 %v636
      %1373 = vmatmul.mubr.f32.gmra.mxu0 %v371
      %v1374 = vpop.f32.mrf.mxu0
      %v1375 = vadd.f32 %v990, %v1374
      %v1376 = vpop.f32.mrf.mxu0
      %1377 = vmatprep.mubr.f32.mxu0 %v639
      %1378 = vmatmul.mubr.f32.gmra.mxu0 %v375
      %v1379 = vpop.f32.mrf.mxu0
      %v1380 = vadd.f32 %v995, %v1379
      %v1381 = vpop.f32.mrf.mxu0
      %1382 = vmatprep.mubr.f32.mxu0 %v642
      %1383 = vmatmul.mubr.f32.gmra.mxu0 %v379
      %v1384 = vpop.f32.mrf.mxu0
      %v1385 = vadd.f32 %v1000, %v1384
      %v1386 = vpop.f32.mrf.mxu0
      %1387 = vmatprep.mubr.f32.mxu0 %v645
      %1388 = vmatmul.mubr.f32.gmra.mxu0 %v383
      %v1389 = vpop.f32.mrf.mxu0
      %v1390 = vadd.f32 %v1005, %v1389
      %v1391 = vpop.f32.mrf.mxu0
      %1392 = vmatprep.mubr.f32.mxu0 %v648
      %1393 = vmatmul.mubr.f32.gmra.mxu0 %v387
      %v1394 = vpop.f32.mrf.mxu0
      %v1395 = vadd.f32 %v1010, %v1394
      %v1396 = vpop.f32.mrf.mxu0
      %1397 = vmatprep.mubr.f32.mxu0 %v651
      %1398 = vmatmul.mubr.f32.gmra.mxu0 %v391
      %v1399 = vpop.f32.mrf.mxu0
      %v1400 = vadd.f32 %v1015, %v1399
      %v1401 = vpop.f32.mrf.mxu0
      %1402 = vmatprep.mubr.f32.mxu0 %v654
      %1403 = vmatmul.mubr.f32.gmra.mxu0 %v395
      %v1404 = vpop.f32.mrf.mxu0
      %v1405 = vadd.f32 %v1020, %v1404
      %v1406 = vpop.f32.mrf.mxu0
      %1407 = vmatprep.mubr.f32.mxu0 %v657
      %1408 = vmatmul.mubr.f32.gmra.mxu0 %v399
      %v1409 = vpop.f32.mrf.mxu0
      %v1410 = vadd.f32 %v1025, %v1409
      %v1411 = vpop.f32.mrf.mxu0
      %1412 = vmatprep.mubr.f32.mxu0 %v660
      %1413 = vmatmul.mubr.f32.gmra.mxu0 %v403
      %v1414 = vpop.f32.mrf.mxu0
      %v1415 = vadd.f32 %v1030, %v1414
      %v1416 = vpop.f32.mrf.mxu0
      %1417 = vmatprep.mubr.f32.mxu0 %v663
      %1418 = vmatmul.mubr.f32.gmra.mxu0 %v407
      %v1419 = vpop.f32.mrf.mxu0
      %v1420 = vadd.f32 %v1035, %v1419
      %v1421 = vpop.f32.mrf.mxu0
      %1422 = vmatprep.mubr.f32.mxu0 %v666
      %1423 = vmatmul.mubr.f32.gmra.mxu0 %v411
      %v1424 = vpop.f32.mrf.mxu0
      %v1425 = vadd.f32 %v1040, %v1424
      %v1426 = vpop.f32.mrf.mxu0
      %1427 = vmatprep.mubr.f32.mxu0 %v669
      %1428 = vmatmul.mubr.f32.gmra.mxu0 %v415
      %v1429 = vpop.f32.mrf.mxu0
      %v1430 = vadd.f32 %v1045, %v1429
      %v1431 = vpop.f32.mrf.mxu0
      %1432 = vmatprep.mubr.f32.mxu0 %v672
      %1433 = vmatmul.mubr.f32.gmra.mxu0 %v419
      %v1434 = vpop.f32.mrf.mxu0
      %v1435 = vadd.f32 %v1050, %v1434
      %v1436 = vpop.f32.mrf.mxu0
      %1437 = vmatprep.mubr.f32.mxu0 %v675
      %1438 = vmatmul.mubr.f32.gmra.mxu0 %v423
      %v1439 = vpop.f32.mrf.mxu0
      %v1440 = vadd.f32 %v1055, %v1439
      %v1441 = vpop.f32.mrf.mxu0
      %1442 = vmatprep.mubr.f32.mxu0 %v678
      %1443 = vmatmul.mubr.f32.gmra.mxu0 %v427
      %v1444 = vpop.f32.mrf.mxu0
      %v1445 = vadd.f32 %v1060, %v1444
      %v1446 = vpop.f32.mrf.mxu0
      %1447 = vmatprep.mubr.f32.mxu0 %v681
      %1448 = vmatmul.mubr.f32.gmra.mxu0 %v431
      %v1449 = vpop.f32.mrf.mxu0
      %v1450 = vadd.f32 %v1065, %v1449
      %v1451 = vpop.f32.mrf.mxu0
      %1452 = vdwg.mxu0
      %v1453 = vmax.f32 %v1135, 0.0
      %v1454 = vmax.f32 %v1140, 0.0
      %v1455 = vmax.f32 %v1145, 0.0
      %v1456 = vmax.f32 %v1150, 0.0
      %v1457 = vmax.f32 %v1155, 0.0
      %v1458 = vmax.f32 %v1160, 0.0
      %v1459 = vmax.f32 %v1165, 0.0
      %v1460 = vmax.f32 %v1170, 0.0
      %v1461 = vmax.f32 %v1175, 0.0
      %v1462 = vmax.f32 %v1180, 0.0
      %v1463 = vmax.f32 %v1185, 0.0
      %v1464 = vmax.f32 %v1190, 0.0
      %v1465 = vmax.f32 %v1195, 0.0
      %v1466 = vmax.f32 %v1200, 0.0
      %v1467 = vmax.f32 %v1205, 0.0
      %v1468 = vmax.f32 %v1210, 0.0
      %v1469 = vmax.f32 %v1215, 0.0
      %v1470 = vmax.f32 %v1220, 0.0
      %v1471 = vmax.f32 %v1225, 0.0
      %v1472 = vmax.f32 %v1230, 0.0
      %v1473 = vmax.f32 %v1235, 0.0
      %v1474 = vmax.f32 %v1240, 0.0
      %v1475 = vmax.f32 %v1245, 0.0
      %v1476 = vmax.f32 %v1250, 0.0
      %v1477 = vmax.f32 %v1255, 0.0
      %v1478 = vmax.f32 %v1260, 0.0
      %v1479 = vmax.f32 %v1265, 0.0
      %v1480 = vmax.f32 %v1270, 0.0
      %v1481 = vmax.f32 %v1275, 0.0
      %v1482 = vmax.f32 %v1280, 0.0
      %v1483 = vmax.f32 %v1285, 0.0
      %v1484 = vmax.f32 %v1290, 0.0
      %v1485 = vmax.f32 %v1295, 0.0
      %v1486 = vmax.f32 %v1300, 0.0
      %v1487 = vmax.f32 %v1305, 0.0
      %v1488 = vmax.f32 %v1310, 0.0
      %v1489 = vmax.f32 %v1315, 0.0
      %v1490 = vmax.f32 %v1320, 0.0
      %v1491 = vmax.f32 %v1325, 0.0
      %v1492 = vmax.f32 %v1330, 0.0
      %v1493 = vmax.f32 %v1335, 0.0
      %v1494 = vmax.f32 %v1340, 0.0
      %v1495 = vmax.f32 %v1345, 0.0
      %v1496 = vmax.f32 %v1350, 0.0
      %v1497 = vmax.f32 %v1355, 0.0
      %v1498 = vmax.f32 %v1360, 0.0
      %v1499 = vmax.f32 %v1365, 0.0
      %v1500 = vmax.f32 %v1370, 0.0
      %v1501 = vmax.f32 %v1375, 0.0
      %v1502 = vmax.f32 %v1380, 0.0
      %v1503 = vmax.f32 %v1385, 0.0
      %v1504 = vmax.f32 %v1390, 0.0
      %v1505 = vmax.f32 %v1395, 0.0
      %v1506 = vmax.f32 %v1400, 0.0
      %v1507 = vmax.f32 %v1405, 0.0
      %v1508 = vmax.f32 %v1410, 0.0
      %v1509 = vmax.f32 %v1415, 0.0
      %v1510 = vmax.f32 %v1420, 0.0
      %v1511 = vmax.f32 %v1425, 0.0
      %v1512 = vmax.f32 %v1430, 0.0
      %v1513 = vmax.f32 %v1435, 0.0
      %v1514 = vmax.f32 %v1440, 0.0
      %v1515 = vmax.f32 %v1445, 0.0
      %v1516 = vmax.f32 %v1450, 0.0
      %1517 = vst.msk [vmem:[%s175] sm:$0xff] %vm490, %v1453
      %1518 = vst.msk [vmem:[%s175 + $0x8] sm:$0xff] %vm490, %v1454
      %1519 = vst.msk [vmem:[%s175 + $0x10] sm:$0xff] %vm490, %v1455
      %1520 = vst.msk [vmem:[%s175 + $0x18] sm:$0xff] %vm490, %v1456
      %1521 = vst.msk [vmem:[%s175 + $0x20] sm:$0xff] %vm490, %v1457
      %1522 = vst.msk [vmem:[%s175 + $0x28] sm:$0xff] %vm490, %v1458
      %1523 = vst.msk [vmem:[%s175 + $0x30] sm:$0xff] %vm490, %v1459
      %1524 = vst.msk [vmem:[%s175 + $0x38] sm:$0xff] %vm490, %v1460
      %1525 = vst.msk [vmem:[%s175 + $0x40] sm:$0xff] %vm490, %v1461
      %1526 = vst.msk [vmem:[%s175 + $0x48] sm:$0xff] %vm490, %v1462
      %1527 = vst.msk [vmem:[%s175 + $0x50] sm:$0xff] %vm490, %v1463
      %1528 = vst.msk [vmem:[%s175 + $0x58] sm:$0xff] %vm490, %v1464
      %1529 = vst.msk [vmem:[%s175 + $0x60] sm:$0xff] %vm490, %v1465
      %1530 = vst.msk [vmem:[%s175 + $0x68] sm:$0xff] %vm490, %v1466
      %1531 = vst.msk [vmem:[%s175 + $0x70] sm:$0xff] %vm490, %v1467
      %1532 = vst.msk [vmem:[%s175 + $0x78] sm:$0xff] %vm490, %v1468
      %1533 = vst.msk [vmem:[%s175 + $0x80] sm:$0xff] %vm490, %v1469
      %1534 = vst.msk [vmem:[%s175 + $0x88] sm:$0xff] %vm490, %v1470
      %1535 = vst.msk [vmem:[%s175 + $0x90] sm:$0xff] %vm490, %v1471
      %1536 = vst.msk [vmem:[%s175 + $0x98] sm:$0xff] %vm490, %v1472
      %1537 = vst.msk [vmem:[%s175 + $0xa0] sm:$0xff] %vm490, %v1473
      %1538 = vst.msk [vmem:[%s175 + $0xa8] sm:$0xff] %vm490, %v1474
      %1539 = vst.msk [vmem:[%s175 + $0xb0] sm:$0xff] %vm490, %v1475
      %1540 = vst.msk [vmem:[%s175 + $0xb8] sm:$0xff] %vm490, %v1476
      %1541 = vst.msk [vmem:[%s175 + $0xc0] sm:$0xff] %vm490, %v1477
      %1542 = vst.msk [vmem:[%s175 + $0xc8] sm:$0xff] %vm490, %v1478
      %1543 = vst.msk [vmem:[%s175 + $0xd0] sm:$0xff] %vm490, %v1479
      %1544 = vst.msk [vmem:[%s175 + $0xd8] sm:$0xff] %vm490, %v1480
      %1545 = vst.msk [vmem:[%s175 + $0xe0] sm:$0xff] %vm490, %v1481
      %1546 = vst.msk [vmem:[%s175 + $0xe8] sm:$0xff] %vm490, %v1482
      %1547 = vst.msk [vmem:[%s175 + $0xf0] sm:$0xff] %vm490, %v1483
      %1548 = vst.msk [vmem:[%s175 + $0xf8] sm:$0xff] %vm490, %v1484
      %1549 = vst.msk [vmem:[%s175 + $0x100] sm:$0xff] %vm490, %v1485
      %1550 = vst.msk [vmem:[%s175 + $0x108] sm:$0xff] %vm490, %v1486
      %1551 = vst.msk [vmem:[%s175 + $0x110] sm:$0xff] %vm490, %v1487
      %1552 = vst.msk [vmem:[%s175 + $0x118] sm:$0xff] %vm490, %v1488
      %1553 = vst.msk [vmem:[%s175 + $0x120] sm:$0xff] %vm490, %v1489
      %1554 = vst.msk [vmem:[%s175 + $0x128] sm:$0xff] %vm490, %v1490
      %1555 = vst.msk [vmem:[%s175 + $0x130] sm:$0xff] %vm490, %v1491
      %1556 = vst.msk [vmem:[%s175 + $0x138] sm:$0xff] %vm490, %v1492
      %1557 = vst.msk [vmem:[%s175 + $0x140] sm:$0xff] %vm490, %v1493
      %1558 = vst.msk [vmem:[%s175 + $0x148] sm:$0xff] %vm490, %v1494
      %1559 = vst.msk [vmem:[%s175 + $0x150] sm:$0xff] %vm490, %v1495
      %1560 = vst.msk [vmem:[%s175 + $0x158] sm:$0xff] %vm490, %v1496
      %1561 = vst.msk [vmem:[%s175 + $0x160] sm:$0xff] %vm490, %v1497
      %1562 = vst.msk [vmem:[%s175 + $0x168] sm:$0xff] %vm490, %v1498
      %1563 = vst.msk [vmem:[%s175 + $0x170] sm:$0xff] %vm490, %v1499
      %1564 = vst.msk [vmem:[%s175 + $0x178] sm:$0xff] %vm490, %v1500
      %1565 = vst.msk [vmem:[%s175 + $0x180] sm:$0xff] %vm490, %v1501
      %1566 = vst.msk [vmem:[%s175 + $0x188] sm:$0xff] %vm490, %v1502
      %1567 = vst.msk [vmem:[%s175 + $0x190] sm:$0xff] %vm490, %v1503
      %1568 = vst.msk [vmem:[%s175 + $0x198] sm:$0xff] %vm490, %v1504
      %1569 = vst.msk [vmem:[%s175 + $0x1a0] sm:$0xff] %vm490, %v1505
      %1570 = vst.msk [vmem:[%s175 + $0x1a8] sm:$0xff] %vm490, %v1506
      %1571 = vst.msk [vmem:[%s175 + $0x1b0] sm:$0xff] %vm490, %v1507
      %1572 = vst.msk [vmem:[%s175 + $0x1b8] sm:$0xff] %vm490, %v1508
      %1573 = vst.msk [vmem:[%s175 + $0x1c0] sm:$0xff] %vm490, %v1509
      %1574 = vst.msk [vmem:[%s175 + $0x1c8] sm:$0xff] %vm490, %v1510
      %1575 = vst.msk [vmem:[%s175 + $0x1d0] sm:$0xff] %vm490, %v1511
      %1576 = vst.msk [vmem:[%s175 + $0x1d8] sm:$0xff] %vm490, %v1512
      %1577 = vst.msk [vmem:[%s175 + $0x1e0] sm:$0xff] %vm490, %v1513
      %1578 = vst.msk [vmem:[%s175 + $0x1e8] sm:$0xff] %vm490, %v1514
      %1579 = vst.msk [vmem:[%s175 + $0x1f0] sm:$0xff] %vm490, %v1515
      %1580 = vst.msk [vmem:[%s175 + $0x1f8] sm:$0xff] %vm490, %v1516
      %s1581 = smul.u32 64, %s14
      %p1582 = scmp.lt.s32.totalorder %s1581, 511
      %s1583 = scalar_select %p1582, %s1581, 511
      %s1584 = smul.addr %s1583, 8
      %s1585 = scalar_lea.vmem %s3, %s1584
      // Predicated region
      $region33: #{forward.8} parent=31 // pred_check
        %p1586 = pneg %p100
      $region34: #{forward.8} parent=31 // pred_check_branch
        %1588 = sbr.rel (%p1586) target = $region36
      $region35: #{forward.8} parent=31 // pred_region
        %s1589 = smul.u32 64, %s14
      $region36: #{forward.8} parent=31 // pred_fallthru
        _
    $region32: #{forward.8} parent=5 // pred_fallthru
      _
    %p1590 = scmp.le.s32.totalorder 2, %s9
    // Predicated region
    $region37: #{forward.8} parent=5 // pred_check
      %p1591 = pneg %p1590
    $region38: #{forward.8} parent=5 // pred_check_branch
      %1593 = sbr.rel (%p1591) target = $region40
    $region39: #{forward.8} parent=5 // pred_region
      %s1594 = ssub.s32 %s9, 2
      // Predicated region
      $region41: #{forward.8} parent=39 // pred_check
        %p1595 = pneg %p106
      $region42: #{forward.8} parent=39 // pred_check_branch
        %1597 = sbr.rel (%p1595) target = $region44
      $region43: #{forward.8} parent=39 // pred_region
        %s1598 = smul.u32 64, %s15
        %p1599 = scmp.lt.s32.totalorder %s1598, 511
        %s1600 = scalar_select %p1599, %s1598, 511
        %s1601 = smul.addr %s1600, 8
        %s1602 = scalar_lea.vmem %s3, %s1601
      $region44: #{forward.8} parent=39 // pred_fallthru
        _
    $region40: #{forward.8} parent=5 // pred_fallthru
      _
  $region6: #{forward.8} parent=0 // loop_footer
    %s13 = sadd.s32 1, %s9
  $region7: #{forward.8} parent=0 // loop_footer_branch
    %8 = sbr.rel target = $region3
  $region8: #{forward.8} parent=0 // loop_exit
    _

// kernel: forward.9
$region0: #{forward.9}
  #allocation0 [shape = 'u32[]', space=smem, size = 0x4, offset = 0x4, fixed_abs, tag = 'smem constant byte address 0x4 - core index']
  #allocation1 [shape = 'u32[144,128]{1,0:T(1,128)}', space=vmem, size = 0x12000, scoped, tag = 'internal scratch']
  %s0 = inlined_call_operand.vmem [shape: f32[1024,400], index: 0, kind: input, shape index: {}]
  %s1 = inlined_call_operand.vmem [shape: f32[400,16], index: 1, kind: input, shape index: {}]
  %s2 = inlined_call_operand.vmem [shape: f32[1,16], index: 2, kind: input, shape index: {}]
  %s3 = inlined_call_operand.vmem [shape: f32[1024,16], index: 3, kind: output, shape index: {}]
  %s4 = sld [smem:[#allocation0]]
  $region45: #{forward.9} parent=0
    _
  %s6 = ssub.s32 1, %s4
  %s7 = scalar_select 0, %s6, %s4
  loop: start=0, step=1, limit=4
  $region2: #{forward.9} parent=0 // loop_pre_header
    _
  $region3: #{forward.9} parent=0 // loop_header
    %s9 = sphi 0, %s13
    %p10 = scmp.ge.s32.totalorder %s9, 4
    %s19 = sphi 0, %s21
    %s22 = sphi 0, %s19
    %s23 = sphi 0, %s22
    %s39 = sphi 0, %s23
    %s43 = sphi 0, %s43
    %s45 = sphi 0, %s43
    %s46 = sphi 0, %s45
    %s60 = sphi 0, %s46
    %s64 = sphi 0, %s64
    %s66 = sphi 0, %s64
    %s67 = sphi 0, %s66
    %s81 = sphi 0, %s67
    %s87 = sphi 0, %s89
    %s90 = sphi 0, %s87
    %s91 = sphi 0, %s90
    %s107 = sphi 0, %s91
  $region4: #{forward.9} parent=0 // loop_header_branch
    %12 = sbr.rel (%p10) target = $region8
  $region5: #{forward.9} parent=0 // loop_body
    %s14 = ssub.s32 %s9, 1
    %s15 = ssub.s32 %s9, 2
    %s16 = sadd.s32 %s9, 1
    %s17 = ssub.s32 %s9, %s16
    %p18 = scmp.eq.s32.totalorder %s17, 0
    %s20 = sadd.s32 %s19, 1
    %s21 = scalar_select %p18, %s19, %s20
    %p24 = pneg %p18
    %p25 = scmp.eq.s32.totalorder %s9, 1
    %p26 = por %p24, %p25
    %p27 = scmp.ne.s32.totalorder %s19, %s22
    %p28 = scmp.eq.s32.totalorder %s9, 0
    %p29 = por %p27, %p28
    %p30 = scmp.ne.s32.totalorder %s19, %s22
    %p31 = scmp.eq.s32.totalorder %s14, 1
    %p32 = por %p30, %p31
    %p33 = scmp.ne.s32.totalorder %s22, %s23
    %p34 = scmp.eq.s32.totalorder %s14, 0
    %p35 = por %p33, %p34
    %p36 = scmp.ne.s32.totalorder %s22, %s23
    %p37 = scmp.eq.s32.totalorder %s15, 1
    %p38 = por %p36, %p37
    %p40 = scmp.ne.s32.totalorder %s23, %s39
    %p41 = scmp.eq.s32.totalorder %s15, 0
    %p42 = por %p40, %p41
    %s44 = sadd.s32 %s43, 1
    %p47 = scmp.eq.s32.totalorder %s9, 1
    %p48 = scmp.ne.s32.totalorder %s43, %s45
    %p49 = scmp.eq.s32.totalorder %s9, 0
    %p50 = por %p48, %p49
    %p51 = scmp.ne.s32.totalorder %s43, %s45
    %p52 = scmp.eq.s32.totalorder %s14, 1
    %p53 = por %p51, %p52
    %p54 = scmp.ne.s32.totalorder %s45, %s46
    %p55 = scmp.eq.s32.totalorder %s14, 0
    %p56 = por %p54, %p55
    %p57 = scmp.ne.s32.totalorder %s45, %s46
    %p58 = scmp.eq.s32.totalorder %s15, 1
    %p59 = por %p57, %p58
    %p61 = scmp.ne.s32.totalorder %s46, %s60
    %p62 = scmp.eq.s32.totalorder %s15, 0
    %p63 = por %p61, %p62
    %s65 = sadd.s32 %s64, 1
    %p68 = scmp.eq.s32.totalorder %s9, 1
    %p69 = scmp.ne.s32.totalorder %s64, %s66
    %p70 = scmp.eq.s32.totalorder %s9, 0
    %p71 = por %p69, %p70
    %p72 = scmp.ne.s32.totalorder %s64, %s66
    %p73 = scmp.eq.s32.totalorder %s14, 1
    %p74 = por %p72, %p73
    %p75 = scmp.ne.s32.totalorder %s66, %s67
    %p76 = scmp.eq.s32.totalorder %s14, 0
    %p77 = por %p75, %p76
    %p78 = scmp.ne.s32.totalorder %s66, %s67
    %p79 = scmp.eq.s32.totalorder %s15, 1
    %p80 = por %p78, %p79
    %p82 = scmp.ne.s32.totalorder %s67, %s81
    %p83 = scmp.eq.s32.totalorder %s15, 0
    %p84 = por %p82, %p83
    %s85 = ssub.s32 %s9, %s16
    %p86 = scmp.eq.s32.totalorder %s85, 0
    %s88 = sadd.s32 %s87, 1
    %s89 = scalar_select %p86, %s87, %s88
    %p92 = pneg %p86
    %p93 = scmp.eq.s32.totalorder %s9, 1
    %p94 = por %p92, %p93
    %p95 = scmp.ne.s32.totalorder %s87, %s90
    %p96 = scmp.eq.s32.totalorder %s9, 0
    %p97 = por %p95, %p96
    %p98 = scmp.ne.s32.totalorder %s87, %s90
    %p99 = scmp.eq.s32.totalorder %s14, 1
    %p100 = por %p98, %p99
    %p101 = scmp.ne.s32.totalorder %s90, %s91
    %p102 = scmp.eq.s32.totalorder %s14, 0
    %p103 = por %p101, %p102
    %p104 = scmp.ne.s32.totalorder %s90, %s91
    %p105 = scmp.eq.s32.totalorder %s15, 1
    %p106 = por %p104, %p105
    %p108 = scmp.ne.s32.totalorder %s91, %s107
    %p109 = scmp.eq.s32.totalorder %s15, 0
    %p110 = por %p108, %p109
    %p111 = scmp.le.s32.totalorder 1, %s9
    %p112 = scmp.lt.s32.totalorder %s9, 3
    %p113 = pnand %p111, %p112
    %p114 = pneg %p113
    // Predicated region
    $region9: #{forward.9} parent=5 // pred_check
      _
    $region10: #{forward.9} parent=5 // pred_check_branch
      %116 = sbr.rel (%p113) target = $region12
    $region11: #{forward.9} parent=5 // pred_region
      %s117 = ssub.s32 %s9, 1
      // Predicated region
      $region13: #{forward.9} parent=11 // pred_check
        %p118 = pneg %p56
      $region14: #{forward.9} parent=11 // pred_check_branch
        %120 = sbr.rel (%p118) target = $region16
      $region15: #{forward.9} parent=11 // pred_region
        _
      $region16: #{forward.9} parent=11 // pred_fallthru
        _
      // Predicated region
      $region17: #{forward.9} parent=11 // pred_check
        %p121 = pneg %p77
      $region18: #{forward.9} parent=11 // pred_check_branch
        %123 = sbr.rel (%p121) target = $region20
      $region19: #{forward.9} parent=11 // pred_region
        _
      $region20: #{forward.9} parent=11 // pred_fallthru
        _
    $region12: #{forward.9} parent=5 // pred_fallthru
      _
    %p124 = scmp.lt.s32.totalorder %s9, 2
    // Predicated region
    $region21: #{forward.9} parent=5 // pred_check
      %p125 = pneg %p124
    $region22: #{forward.9} parent=5 // pred_check_branch
      %127 = sbr.rel (%p125) target = $region24
    $region23: #{forward.9} parent=5 // pred_region
      // Predicated region
      $region25: #{forward.9} parent=23 // pred_check
        %p128 = pneg %p29
      $region26: #{forward.9} parent=23 // pred_check_branch
        %130 = sbr.rel (%p128) target = $region28
      $region27: #{forward.9} parent=23 // pred_region
        %s131 = smul.u32 64, %s9
        %p132 = scmp.lt.s32.totalorder %s131, 127
        %s133 = scalar_select %p132, %s131, 127
        %s134 = smul.addr %s133, 4
        %s135 = smul.addr %s134, 8
        %s136 = scalar_lea.vmem %s0, %s135
        %s137 = smul.u32 64, %s9
      $region28: #{forward.9} parent=23 // pred_fallthru
        _
    $region24: #{forward.9} parent=5 // pred_fallthru
      _
    %p138 = scmp.le.s32.totalorder 1, %s9
    %p139 = scmp.lt.s32.totalorder %s9, 3
    %p140 = pnand %p138, %p139
    %p141 = pneg %p140
    // Predicated region
    $region29: #{forward.9} parent=5 // pred_check
      _
    $region30: #{forward.9} parent=5 // pred_check_branch
      %143 = sbr.rel (%p140) target = $region32
    $region31: #{forward.9} parent=5 // pred_region
      %s144 = ssub.s32 %s9, 1
      %s145 = smul.u32 64, %s14
      %p146 = scmp.lt.s32.totalorder %s145, 127
      %s147 = scalar_select %p146, %s145, 127
      %s148 = smul.addr %s147, 4
      %s149 = smul.addr %s148, 8
      %s150 = scalar_lea.vmem %s0, %s149
      %p151 = pneg %p35
      %p152 = pneg %p32
      %p153 = pneg %p56
      %p154 = pneg %p53
      %p155 = pneg %p77
      %p156 = pneg %p74
      %p157 = pneg %p103
      %p158 = pneg %p100
      %s159 = smul.u32 64, %s14
      %p160 = scmp.lt.s32.totalorder %s159, 127
      %s161 = scalar_select %p160, %s159, 127
      %s162 = smul.addr %s161, 8
      %s163 = scalar_lea.vmem %s3, %s162
      %s164 = smul.u32 64, %s14
      %p165 = scmp.lt.s32.totalorder %s164, 127
      %s166 = scalar_select %p165, %s164, 127
      %s167 = smul.addr %s166, 4
      %s168 = smul.addr %s167, 8
      %s169 = scalar_lea.vmem %s0, %s168
      %s170 = smul.u32 64, %s14
      %s171 = smul.u32 64, %s14
      %p172 = scmp.lt.s32.totalorder %s171, 127
      %s173 = scalar_select %p172, %s171, 127
      %s174 = smul.addr %s173, 8
      %s175 = scalar_lea.vmem %s3, %s174
      %s176 = smul.u32 64, %s14
      %v177 = vld [vmem:[%s169] sm:$0xff]
      %v178 = vld [vmem:[%s169 + $0x8] sm:$0xff]
      %v179 = vld [vmem:[%s169 + $0x10] sm:$0xff]
      %v180 = vld [vmem:[%s169 + $0x18] sm:$0xff]
      %v181 = vld [vmem:[%s169 + $0x20] sm:$0xff]
      %v182 = vld [vmem:[%s169 + $0x28] sm:$0xff]
      %v183 = vld [vmem:[%s169 + $0x30] sm:$0xff]
      %v184 = vld [vmem:[%s169 + $0x38] sm:$0xff]
      %v185 = vld [vmem:[%s169 + $0x40] sm:$0xff]
      %v186 = vld [vmem:[%s169 + $0x48] sm:$0xff]
      %v187 = vld [vmem:[%s169 + $0x50] sm:$0xff]
      %v188 = vld [vmem:[%s169 + $0x58] sm:$0xff]
      %v189 = vld [vmem:[%s169 + $0x60] sm:$0xff]
      %v190 = vld [vmem:[%s169 + $0x68] sm:$0xff]
      %v191 = vld [vmem:[%s169 + $0x70] sm:$0xff]
      %v192 = vld [vmem:[%s169 + $0x78] sm:$0xff]
      %v193 = vld [vmem:[%s169 + $0x80] sm:$0xff]
      %v194 = vld [vmem:[%s169 + $0x88] sm:$0xff]
      %v195 = vld [vmem:[%s169 + $0x90] sm:$0xff]
      %v196 = vld [vmem:[%s169 + $0x98] sm:$0xff]
      %v197 = vld [vmem:[%s169 + $0xa0] sm:$0xff]
      %v198 = vld [vmem:[%s169 + $0xa8] sm:$0xff]
      %v199 = vld [vmem:[%s169 + $0xb0] sm:$0xff]
      %v200 = vld [vmem:[%s169 + $0xb8] sm:$0xff]
      %v201 = vld [vmem:[%s169 + $0xc0] sm:$0xff]
      %v202 = vld [vmem:[%s169 + $0xc8] sm:$0xff]
      %v203 = vld [vmem:[%s169 + $0xd0] sm:$0xff]
      %v204 = vld [vmem:[%s169 + $0xd8] sm:$0xff]
      %v205 = vld [vmem:[%s169 + $0xe0] sm:$0xff]
      %v206 = vld [vmem:[%s169 + $0xe8] sm:$0xff]
      %v207 = vld [vmem:[%s169 + $0xf0] sm:$0xff]
      %v208 = vld [vmem:[%s169 + $0xf8] sm:$0xff]
      %v209 = vld [vmem:[%s169 + $0x100] sm:$0xff]
      %v210 = vld [vmem:[%s169 + $0x108] sm:$0xff]
      %v211 = vld [vmem:[%s169 + $0x110] sm:$0xff]
      %v212 = vld [vmem:[%s169 + $0x118] sm:$0xff]
      %v213 = vld [vmem:[%s169 + $0x120] sm:$0xff]
      %v214 = vld [vmem:[%s169 + $0x128] sm:$0xff]
      %v215 = vld [vmem:[%s169 + $0x130] sm:$0xff]
      %v216 = vld [vmem:[%s169 + $0x138] sm:$0xff]
      %v217 = vld [vmem:[%s169 + $0x140] sm:$0xff]
      %v218 = vld [vmem:[%s169 + $0x148] sm:$0xff]
      %v219 = vld [vmem:[%s169 + $0x150] sm:$0xff]
      %v220 = vld [vmem:[%s169 + $0x158] sm:$0xff]
      %v221 = vld [vmem:[%s169 + $0x160] sm:$0xff]
      %v222 = vld [vmem:[%s169 + $0x168] sm:$0xff]
      %v223 = vld [vmem:[%s169 + $0x170] sm:$0xff]
      %v224 = vld [vmem:[%s169 + $0x178] sm:$0xff]
      %v225 = vld [vmem:[%s169 + $0x180] sm:$0xff]
      %v226 = vld [vmem:[%s169 + $0x188] sm:$0xff]
      %v227 = vld [vmem:[%s169 + $0x190] sm:$0xff]
      %v228 = vld [vmem:[%s169 + $0x198] sm:$0xff]
      %v229 = vld [vmem:[%s169 + $0x1a0] sm:$0xff]
      %v230 = vld [vmem:[%s169 + $0x1a8] sm:$0xff]
      %v231 = vld [vmem:[%s169 + $0x1b0] sm:$0xff]
      %v232 = vld [vmem:[%s169 + $0x1b8] sm:$0xff]
      %v233 = vld [vmem:[%s169 + $0x1c0] sm:$0xff]
      %v234 = vld [vmem:[%s169 + $0x1c8] sm:$0xff]
      %v235 = vld [vmem:[%s169 + $0x1d0] sm:$0xff]
      %v236 = vld [vmem:[%s169 + $0x1d8] sm:$0xff]
      %v237 = vld [vmem:[%s169 + $0x1e0] sm:$0xff]
      %v238 = vld [vmem:[%s169 + $0x1e8] sm:$0xff]
      %v239 = vld [vmem:[%s169 + $0x1f0] sm:$0xff]
      %v240 = vld [vmem:[%s169 + $0x1f8] sm:$0xff]
      %v241 = vld [vmem:[%s169 + $0x200] sm:$0xff]
      %v242 = vld [vmem:[%s169 + $0x208] sm:$0xff]
      %v243 = vld [vmem:[%s169 + $0x210] sm:$0xff]
      %v244 = vld [vmem:[%s169 + $0x218] sm:$0xff]
      %v245 = vld [vmem:[%s169 + $0x220] sm:$0xff]
      %v246 = vld [vmem:[%s169 + $0x228] sm:$0xff]
      %v247 = vld [vmem:[%s169 + $0x230] sm:$0xff]
      %v248 = vld [vmem:[%s169 + $0x238] sm:$0xff]
      %v249 = vld [vmem:[%s169 + $0x240] sm:$0xff]
      %v250 = vld [vmem:[%s169 + $0x248] sm:$0xff]
      %v251 = vld [vmem:[%s169 + $0x250] sm:$0xff]
      %v252 = vld [vmem:[%s169 + $0x258] sm:$0xff]
      %v253 = vld [vmem:[%s169 + $0x260] sm:$0xff]
      %v254 = vld [vmem:[%s169 + $0x268] sm:$0xff]
      %v255 = vld [vmem:[%s169 + $0x270] sm:$0xff]
      %v256 = vld [vmem:[%s169 + $0x278] sm:$0xff]
      %v257 = vld [vmem:[%s169 + $0x280] sm:$0xff]
      %v258 = vld [vmem:[%s169 + $0x288] sm:$0xff]
      %v259 = vld [vmem:[%s169 + $0x290] sm:$0xff]
      %v260 = vld [vmem:[%s169 + $0x298] sm:$0xff]
      %v261 = vld [vmem:[%s169 + $0x2a0] sm:$0xff]
      %v262 = vld [vmem:[%s169 + $0x2a8] sm:$0xff]
      %v263 = vld [vmem:[%s169 + $0x2b0] sm:$0xff]
      %v264 = vld [vmem:[%s169 + $0x2b8] sm:$0xff]
      %v265 = vld [vmem:[%s169 + $0x2c0] sm:$0xff]
      %v266 = vld [vmem:[%s169 + $0x2c8] sm:$0xff]
      %v267 = vld [vmem:[%s169 + $0x2d0] sm:$0xff]
      %v268 = vld [vmem:[%s169 + $0x2d8] sm:$0xff]
      %v269 = vld [vmem:[%s169 + $0x2e0] sm:$0xff]
      %v270 = vld [vmem:[%s169 + $0x2e8] sm:$0xff]
      %v271 = vld [vmem:[%s169 + $0x2f0] sm:$0xff]
      %v272 = vld [vmem:[%s169 + $0x2f8] sm:$0xff]
      %v273 = vld [vmem:[%s169 + $0x300] sm:$0xff]
      %v274 = vld [vmem:[%s169 + $0x308] sm:$0xff]
      %v275 = vld [vmem:[%s169 + $0x310] sm:$0xff]
      %v276 = vld [vmem:[%s169 + $0x318] sm:$0xff]
      %v277 = vld [vmem:[%s169 + $0x320] sm:$0xff]
      %v278 = vld [vmem:[%s169 + $0x328] sm:$0xff]
      %v279 = vld [vmem:[%s169 + $0x330] sm:$0xff]
      %v280 = vld [vmem:[%s169 + $0x338] sm:$0xff]
      %v281 = vld [vmem:[%s169 + $0x340] sm:$0xff]
      %v282 = vld [vmem:[%s169 + $0x348] sm:$0xff]
      %v283 = vld [vmem:[%s169 + $0x350] sm:$0xff]
      %v284 = vld [vmem:[%s169 + $0x358] sm:$0xff]
      %v285 = vld [vmem:[%s169 + $0x360] sm:$0xff]
      %v286 = vld [vmem:[%s169 + $0x368] sm:$0xff]
      %v287 = vld [vmem:[%s169 + $0x370] sm:$0xff]
      %v288 = vld [vmem:[%s169 + $0x378] sm:$0xff]
      %v289 = vld [vmem:[%s169 + $0x380] sm:$0xff]
      %v290 = vld [vmem:[%s169 + $0x388] sm:$0xff]
      %v291 = vld [vmem:[%s169 + $0x390] sm:$0xff]
      %v292 = vld [vmem:[%s169 + $0x398] sm:$0xff]
      %v293 = vld [vmem:[%s169 + $0x3a0] sm:$0xff]
      %v294 = vld [vmem:[%s169 + $0x3a8] sm:$0xff]
      %v295 = vld [vmem:[%s169 + $0x3b0] sm:$0xff]
      %v296 = vld [vmem:[%s169 + $0x3b8] sm:$0xff]
      %v297 = vld [vmem:[%s169 + $0x3c0] sm:$0xff]
      %v298 = vld [vmem:[%s169 + $0x3c8] sm:$0xff]
      %v299 = vld [vmem:[%s169 + $0x3d0] sm:$0xff]
      %v300 = vld [vmem:[%s169 + $0x3d8] sm:$0xff]
      %v301 = vld [vmem:[%s169 + $0x3e0] sm:$0xff]
      %v302 = vld [vmem:[%s169 + $0x3e8] sm:$0xff]
      %v303 = vld [vmem:[%s169 + $0x3f0] sm:$0xff]
      %v304 = vld [vmem:[%s169 + $0x3f8] sm:$0xff]
      %v305 = vld [vmem:[%s169 + $0x400] sm:$0xff]
      %v306 = vld [vmem:[%s169 + $0x408] sm:$0xff]
      %v307 = vld [vmem:[%s169 + $0x410] sm:$0xff]
      %v308 = vld [vmem:[%s169 + $0x418] sm:$0xff]
      %v309 = vld [vmem:[%s169 + $0x420] sm:$0xff]
      %v310 = vld [vmem:[%s169 + $0x428] sm:$0xff]
      %v311 = vld [vmem:[%s169 + $0x430] sm:$0xff]
      %v312 = vld [vmem:[%s169 + $0x438] sm:$0xff]
      %v313 = vld [vmem:[%s169 + $0x440] sm:$0xff]
      %v314 = vld [vmem:[%s169 + $0x448] sm:$0xff]
      %v315 = vld [vmem:[%s169 + $0x450] sm:$0xff]
      %v316 = vld [vmem:[%s169 + $0x458] sm:$0xff]
      %v317 = vld [vmem:[%s169 + $0x460] sm:$0xff]
      %v318 = vld [vmem:[%s169 + $0x468] sm:$0xff]
      %v319 = vld [vmem:[%s169 + $0x470] sm:$0xff]
      %v320 = vld [vmem:[%s169 + $0x478] sm:$0xff]
      %v321 = vld [vmem:[%s169 + $0x480] sm:$0xff]
      %v322 = vld [vmem:[%s169 + $0x488] sm:$0xff]
      %v323 = vld [vmem:[%s169 + $0x490] sm:$0xff]
      %v324 = vld [vmem:[%s169 + $0x498] sm:$0xff]
      %v325 = vld [vmem:[%s169 + $0x4a0] sm:$0xff]
      %v326 = vld [vmem:[%s169 + $0x4a8] sm:$0xff]
      %v327 = vld [vmem:[%s169 + $0x4b0] sm:$0xff]
      %v328 = vld [vmem:[%s169 + $0x4b8] sm:$0xff]
      %v329 = vld [vmem:[%s169 + $0x4c0] sm:$0xff]
      %v330 = vld [vmem:[%s169 + $0x4c8] sm:$0xff]
      %v331 = vld [vmem:[%s169 + $0x4d0] sm:$0xff]
      %v332 = vld [vmem:[%s169 + $0x4d8] sm:$0xff]
      %v333 = vld [vmem:[%s169 + $0x4e0] sm:$0xff]
      %v334 = vld [vmem:[%s169 + $0x4e8] sm:$0xff]
      %v335 = vld [vmem:[%s169 + $0x4f0] sm:$0xff]
      %v336 = vld [vmem:[%s169 + $0x4f8] sm:$0xff]
      %v337 = vld [vmem:[%s169 + $0x500] sm:$0xff]
      %v338 = vld [vmem:[%s169 + $0x508] sm:$0xff]
      %v339 = vld [vmem:[%s169 + $0x510] sm:$0xff]
      %v340 = vld [vmem:[%s169 + $0x518] sm:$0xff]
      %v341 = vld [vmem:[%s169 + $0x520] sm:$0xff]
      %v342 = vld [vmem:[%s169 + $0x528] sm:$0xff]
      %v343 = vld [vmem:[%s169 + $0x530] sm:$0xff]
      %v344 = vld [vmem:[%s169 + $0x538] sm:$0xff]
      %v345 = vld [vmem:[%s169 + $0x540] sm:$0xff]
      %v346 = vld [vmem:[%s169 + $0x548] sm:$0xff]
      %v347 = vld [vmem:[%s169 + $0x550] sm:$0xff]
      %v348 = vld [vmem:[%s169 + $0x558] sm:$0xff]
      %v349 = vld [vmem:[%s169 + $0x560] sm:$0xff]
      %v350 = vld [vmem:[%s169 + $0x568] sm:$0xff]
      %v351 = vld [vmem:[%s169 + $0x570] sm:$0xff]
      %v352 = vld [vmem:[%s169 + $0x578] sm:$0xff]
      %v353 = vld [vmem:[%s169 + $0x580] sm:$0xff]
      %v354 = vld [vmem:[%s169 + $0x588] sm:$0xff]
      %v355 = vld [vmem:[%s169 + $0x590] sm:$0xff]
      %v356 = vld [vmem:[%s169 + $0x598] sm:$0xff]
      %v357 = vld [vmem:[%s169 + $0x5a0] sm:$0xff]
      %v358 = vld [vmem:[%s169 + $0x5a8] sm:$0xff]
      %v359 = vld [vmem:[%s169 + $0x5b0] sm:$0xff]
      %v360 = vld [vmem:[%s169 + $0x5b8] sm:$0xff]
      %v361 = vld [vmem:[%s169 + $0x5c0] sm:$0xff]
      %v362 = vld [vmem:[%s169 + $0x5c8] sm:$0xff]
      %v363 = vld [vmem:[%s169 + $0x5d0] sm:$0xff]
      %v364 = vld [vmem:[%s169 + $0x5d8] sm:$0xff]
      %v365 = vld [vmem:[%s169 + $0x5e0] sm:$0xff]
      %v366 = vld [vmem:[%s169 + $0x5e8] sm:$0xff]
      %v367 = vld [vmem:[%s169 + $0x5f0] sm:$0xff]
      %v368 = vld [vmem:[%s169 + $0x5f8] sm:$0xff]
      %v369 = vld [vmem:[%s169 + $0x600] sm:$0xff]
      %v370 = vld [vmem:[%s169 + $0x608] sm:$0xff]
      %v371 = vld [vmem:[%s169 + $0x610] sm:$0xff]
      %v372 = vld [vmem:[%s169 + $0x618] sm:$0xff]
      %v373 = vld [vmem:[%s169 + $0x620] sm:$0xff]
      %v374 = vld [vmem:[%s169 + $0x628] sm:$0xff]
      %v375 = vld [vmem:[%s169 + $0x630] sm:$0xff]
      %v376 = vld [vmem:[%s169 + $0x638] sm:$0xff]
      %v377 = vld [vmem:[%s169 + $0x640] sm:$0xff]
      %v378 = vld [vmem:[%s169 + $0x648] sm:$0xff]
      %v379 = vld [vmem:[%s169 + $0x650] sm:$0xff]
      %v380 = vld [vmem:[%s169 + $0x658] sm:$0xff]
      %v381 = vld [vmem:[%s169 + $0x660] sm:$0xff]
      %v382 = vld [vmem:[%s169 + $0x668] sm:$0xff]
      %v383 = vld [vmem:[%s169 + $0x670] sm:$0xff]
      %v384 = vld [vmem:[%s169 + $0x678] sm:$0xff]
      %v385 = vld [vmem:[%s169 + $0x680] sm:$0xff]
      %v386 = vld [vmem:[%s169 + $0x688] sm:$0xff]
      %v387 = vld [vmem:[%s169 + $0x690] sm:$0xff]
      %v388 = vld [vmem:[%s169 + $0x698] sm:$0xff]
      %v389 = vld [vmem:[%s169 + $0x6a0] sm:$0xff]
      %v390 = vld [vmem:[%s169 + $0x6a8] sm:$0xff]
      %v391 = vld [vmem:[%s169 + $0x6b0] sm:$0xff]
      %v392 = vld [vmem:[%s169 + $0x6b8] sm:$0xff]
      %v393 = vld [vmem:[%s169 + $0x6c0] sm:$0xff]
      %v394 = vld [vmem:[%s169 + $0x6c8] sm:$0xff]
      %v395 = vld [vmem:[%s169 + $0x6d0] sm:$0xff]
      %v396 = vld [vmem:[%s169 + $0x6d8] sm:$0xff]
      %v397 = vld [vmem:[%s169 + $0x6e0] sm:$0xff]
      %v398 = vld [vmem:[%s169 + $0x6e8] sm:$0xff]
      %v399 = vld [vmem:[%s169 + $0x6f0] sm:$0xff]
      %v400 = vld [vmem:[%s169 + $0x6f8] sm:$0xff]
      %v401 = vld [vmem:[%s169 + $0x700] sm:$0xff]
      %v402 = vld [vmem:[%s169 + $0x708] sm:$0xff]
      %v403 = vld [vmem:[%s169 + $0x710] sm:$0xff]
      %v404 = vld [vmem:[%s169 + $0x718] sm:$0xff]
      %v405 = vld [vmem:[%s169 + $0x720] sm:$0xff]
      %v406 = vld [vmem:[%s169 + $0x728] sm:$0xff]
      %v407 = vld [vmem:[%s169 + $0x730] sm:$0xff]
      %v408 = vld [vmem:[%s169 + $0x738] sm:$0xff]
      %v409 = vld [vmem:[%s169 + $0x740] sm:$0xff]
      %v410 = vld [vmem:[%s169 + $0x748] sm:$0xff]
      %v411 = vld [vmem:[%s169 + $0x750] sm:$0xff]
      %v412 = vld [vmem:[%s169 + $0x758] sm:$0xff]
      %v413 = vld [vmem:[%s169 + $0x760] sm:$0xff]
      %v414 = vld [vmem:[%s169 + $0x768] sm:$0xff]
      %v415 = vld [vmem:[%s169 + $0x770] sm:$0xff]
      %v416 = vld [vmem:[%s169 + $0x778] sm:$0xff]
      %v417 = vld [vmem:[%s169 + $0x780] sm:$0xff]
      %v418 = vld [vmem:[%s169 + $0x788] sm:$0xff]
      %v419 = vld [vmem:[%s169 + $0x790] sm:$0xff]
      %v420 = vld [vmem:[%s169 + $0x798] sm:$0xff]
      %v421 = vld [vmem:[%s169 + $0x7a0] sm:$0xff]
      %v422 = vld [vmem:[%s169 + $0x7a8] sm:$0xff]
      %v423 = vld [vmem:[%s169 + $0x7b0] sm:$0xff]
      %v424 = vld [vmem:[%s169 + $0x7b8] sm:$0xff]
      %v425 = vld [vmem:[%s169 + $0x7c0] sm:$0xff]
      %v426 = vld [vmem:[%s169 + $0x7c8] sm:$0xff]
      %v427 = vld [vmem:[%s169 + $0x7d0] sm:$0xff]
      %v428 = vld [vmem:[%s169 + $0x7d8] sm:$0xff]
      %v429 = vld [vmem:[%s169 + $0x7e0] sm:$0xff]
      %v430 = vld [vmem:[%s169 + $0x7e8] sm:$0xff]
      %v431 = vld [vmem:[%s169 + $0x7f0] sm:$0xff]
      %v432 = vld [vmem:[%s169 + $0x7f8] sm:$0xff]
      %v433 = vld [vmem:[%s1] sm:$0xff]
      %v434 = vld [vmem:[%s1 + $0x8] sm:$0xff]
      %v435 = vld [vmem:[%s1 + $0x10] sm:$0xff]
      %v436 = vld [vmem:[%s1 + $0x18] sm:$0xff]
      %v437 = vld [vmem:[%s1 + $0x20] sm:$0xff]
      %v438 = vld [vmem:[%s1 + $0x28] sm:$0xff]
      %v439 = vld [vmem:[%s1 + $0x30] sm:$0xff]
      %v440 = vld [vmem:[%s1 + $0x38] sm:$0xff]
      %v441 = vld [vmem:[%s1 + $0x40] sm:$0xff]
      %v442 = vld [vmem:[%s1 + $0x48] sm:$0xff]
      %v443 = vld [vmem:[%s1 + $0x50] sm:$0xff]
      %v444 = vld [vmem:[%s1 + $0x58] sm:$0xff]
      %v445 = vld [vmem:[%s1 + $0x60] sm:$0xff]
      %v446 = vld [vmem:[%s1 + $0x68] sm:$0xff]
      %v447 = vld [vmem:[%s1 + $0x70] sm:$0xff]
      %v448 = vld [vmem:[%s1 + $0x78] sm:$0xff]
      %v449 = vld [vmem:[%s1 + $0x80] sm:$0xff]
      %v450 = vld [vmem:[%s1 + $0x88] sm:$0xff]
      %v451 = vld [vmem:[%s1 + $0x90] sm:$0xff]
      %v452 = vld [vmem:[%s1 + $0x98] sm:$0xff]
      %v453 = vld [vmem:[%s1 + $0xa0] sm:$0xff]
      %v454 = vld [vmem:[%s1 + $0xa8] sm:$0xff]
      %v455 = vld [vmem:[%s1 + $0xb0] sm:$0xff]
      %v456 = vld [vmem:[%s1 + $0xb8] sm:$0xff]
      %v457 = vld [vmem:[%s1 + $0xc0] sm:$0xff]
      %v458 = vld [vmem:[%s1 + $0xc8] sm:$0xff]
      %v459 = vld [vmem:[%s1 + $0xd0] sm:$0xff]
      %v460 = vld [vmem:[%s1 + $0xd8] sm:$0xff]
      %v461 = vld [vmem:[%s1 + $0xe0] sm:$0xff]
      %v462 = vld [vmem:[%s1 + $0xe8] sm:$0xff]
      %v463 = vld [vmem:[%s1 + $0xf0] sm:$0xff]
      %v464 = vld [vmem:[%s1 + $0xf8] sm:$0xff]
      %v465 = vld [vmem:[%s1 + $0x100] sm:$0xff]
      %v466 = vld [vmem:[%s1 + $0x108] sm:$0xff]
      %v467 = vld [vmem:[%s1 + $0x110] sm:$0xff]
      %v468 = vld [vmem:[%s1 + $0x118] sm:$0xff]
      %v469 = vld [vmem:[%s1 + $0x120] sm:$0xff]
      %v470 = vld [vmem:[%s1 + $0x128] sm:$0xff]
      %v471 = vld [vmem:[%s1 + $0x130] sm:$0xff]
      %v472 = vld [vmem:[%s1 + $0x138] sm:$0xff]
      %v473 = vld [vmem:[%s1 + $0x140] sm:$0xff]
      %v474 = vld [vmem:[%s1 + $0x148] sm:$0xff]
      %v475 = vld [vmem:[%s1 + $0x150] sm:$0xff]
      %v476 = vld [vmem:[%s1 + $0x158] sm:$0xff]
      %v477 = vld [vmem:[%s1 + $0x160] sm:$0xff]
      %v478 = vld [vmem:[%s1 + $0x168] sm:$0xff]
      %v479 = vld [vmem:[%s1 + $0x170] sm:$0xff]
      %v480 = vld [vmem:[%s1 + $0x178] sm:$0xff]
      %v481 = vld [vmem:[%s1 + $0x180] sm:$0xff]
      %v482 = vld [vmem:[%s1 + $0x188] sm:$0xff]
      %v483 = vld [vmem:[%s2] sm:$0x1]
      %v485 = vlaneseq
      %v486 = vshrl.u32 %v485, 7
      %v487 = vsub.s32 0, %v486
      %v488 = vrot.slane %v483, %v487
      %vm490 = vcmask 130048
      %v492 = vsel %vm490, %v180, 0
      %v495 = vsel %vm490, %v184, 0
      %v498 = vsel %vm490, %v188, 0
      %v501 = vsel %vm490, %v192, 0
      %v504 = vsel %vm490, %v196, 0
      %v507 = vsel %vm490, %v200, 0
      %v510 = vsel %vm490, %v204, 0
      %v513 = vsel %vm490, %v208, 0
      %v516 = vsel %vm490, %v212, 0
      %v519 = vsel %vm490, %v216, 0
      %v522 = vsel %vm490, %v220, 0
      %v525 = vsel %vm490, %v224, 0
      %v528 = vsel %vm490, %v228, 0
      %v531 = vsel %vm490, %v232, 0
      %v534 = vsel %vm490, %v236, 0
      %v537 = vsel %vm490, %v240, 0
      %v540 = vsel %vm490, %v244, 0
      %v543 = vsel %vm490, %v248, 0
      %v546 = vsel %vm490, %v252, 0
      %v549 = vsel %vm490, %v256, 0
      %v552 = vsel %vm490, %v260, 0
      %v555 = vsel %vm490, %v264, 0
      %v558 = vsel %vm490, %v268, 0
      %v561 = vsel %vm490, %v272, 0
      %v564 = vsel %vm490, %v276, 0
      %v567 = vsel %vm490, %v280, 0
      %v570 = vsel %vm490, %v284, 0
      %v573 = vsel %vm490, %v288, 0
      %v576 = vsel %vm490, %v292, 0
      %v579 = vsel %vm490, %v296, 0
      %v582 = vsel %vm490, %v300, 0
      %v585 = vsel %vm490, %v304, 0
      %v588 = vsel %vm490, %v308, 0
      %v591 = vsel %vm490, %v312, 0
      %v594 = vsel %vm490, %v316, 0
      %v597 = vsel %vm490, %v320, 0
      %v600 = vsel %vm490, %v324, 0
      %v603 = vsel %vm490, %v328, 0
      %v606 = vsel %vm490, %v332, 0
      %v609 = vsel %vm490, %v336, 0
      %v612 = vsel %vm490, %v340, 0
      %v615 = vsel %vm490, %v344, 0
      %v618 = vsel %vm490, %v348, 0
      %v621 = vsel %vm490, %v352, 0
      %v624 = vsel %vm490, %v356, 0
      %v627 = vsel %vm490, %v360, 0
      %v630 = vsel %vm490, %v364, 0
      %v633 = vsel %vm490, %v368, 0
      %v636 = vsel %vm490, %v372, 0
      %v639 = vsel %vm490, %v376, 0
      %v642 = vsel %vm490, %v380, 0
      %v645 = vsel %vm490, %v384, 0
      %v648 = vsel %vm490, %v388, 0
      %v651 = vsel %vm490, %v392, 0
      %v654 = vsel %vm490, %v396, 0
      %v657 = vsel %vm490, %v400, 0
      %v660 = vsel %vm490, %v404, 0
      %v663 = vsel %vm490, %v408, 0
      %v666 = vsel %vm490, %v412, 0
      %v669 = vsel %vm490, %v416, 0
      %v672 = vsel %vm490, %v420, 0
      %v675 = vsel %vm490, %v424, 0
      %v678 = vsel %vm490, %v428, 0
      %v681 = vsel %vm490, %v432, 0
      %683 = vmatprep.subr.mxu0 0.0
      %684 = vmatpush1.msra.mxu0 %v448
      %685 = vmatprep.subr.mxu0 0.0
      %686 = vmatpush1.msra.mxu0 %v447
      %687 = vmatprep.subr.mxu0 0.0
      %688 = vmatpush1.msra.mxu0 %v446
      %689 = vmatprep.subr.mxu0 0.0
      %690 = vmatpush1.msra.mxu0 %v445
      %691 = vmatprep.subr.mxu0 0.0
      %692 = vmatpush1.msra.mxu0 %v444
      %693 = vmatprep.subr.mxu0 0.0
      %694 = vmatpush1.msra.mxu0 %v443
      %695 = vmatprep.subr.mxu0 0.0
      %696 = vmatpush1.msra.mxu0 %v442
      %697 = vmatprep.subr.mxu0 0.0
      %698 = vmatpush1.msra.mxu0 %v441
      %699 = vmatprep.subr.mxu0 0.0
      %700 = vmatpush1.msra.mxu0 %v440
      %701 = vmatprep.subr.mxu0 0.0
      %702 = vmatpush1.msra.mxu0 %v439
      %703 = vmatprep.subr.mxu0 0.0
      %704 = vmatpush1.msra.mxu0 %v438
      %705 = vmatprep.subr.mxu0 0.0
      %706 = vmatpush1.msra.mxu0 %v437
      %707 = vmatprep.subr.mxu0 0.0
      %708 = vmatpush1.msra.mxu0 %v436
      %709 = vmatprep.subr.mxu0 0.0
      %710 = vmatpush1.msra.mxu0 %v435
      %711 = vmatprep.subr.mxu0 0.0
      %712 = vmatpush1.msra.mxu0 %v434
      %713 = vmatprep.subr.mxu0 0.0
      %714 = vmatpush1.msra.mxu0 %v433
      %715 = vmatprep.subr.mxu0 0.0
      %716 = vmatpush2.msra.mxu0 %v464
      %717 = vmatprep.subr.mxu0 0.0
      %718 = vmatpush2.msra.mxu0 %v463
      %719 = vmatprep.subr.mxu0 0.0
      %720 = vmatpush2.msra.mxu0 %v462
      %721 = vmatprep.subr.mxu0 0.0
      %722 = vmatpush2.msra.mxu0 %v461
      %723 = vmatprep.subr.mxu0 0.0
      %724 = vmatpush2.msra.mxu0 %v460
      %725 = vmatprep.subr.mxu0 0.0
      %726 = vmatpush2.msra.mxu0 %v459
      %727 = vmatprep.subr.mxu0 0.0
      %728 = vmatpush2.msra.mxu0 %v458
      %729 = vmatprep.subr.mxu0 0.0
      %730 = vmatpush2.msra.mxu0 %v457
      %731 = vmatprep.subr.mxu0 0.0
      %732 = vmatpush2.msra.mxu0 %v456
      %733 = vmatprep.subr.mxu0 0.0
      %734 = vmatpush2.msra.mxu0 %v455
      %735 = vmatprep.subr.mxu0 0.0
      %736 = vmatpush2.msra.mxu0 %v454
      %737 = vmatprep.subr.mxu0 0.0
      %738 = vmatpush2.msra.mxu0 %v453
      %739 = vmatprep.subr.mxu0 0.0
      %740 = vmatpush2.msra.mxu0 %v452
      %741 = vmatprep.subr.mxu0 0.0
      %742 = vmatpush2.msra.mxu0 %v451
      %743 = vmatprep.subr.mxu0 0.0
      %744 = vmatpush2.msra.mxu0 %v450
      %745 = vmatprep.subr.mxu0 0.0
      %746 = vmatpush2.msra.mxu0 %v449
      %747 = vmatprep.mubr.f32.mxu0 %v178
      %748 = vmatmul.mubr.f32.gmra.mxu0 %v177
      %v749 = vpop.f32.mrf.mxu0
      %v750 = vadd.f32 %v488, %v749
      %v751 = vpop.f32.mrf.mxu0
      %752 = vmatprep.mubr.f32.mxu0 %v182
      %753 = vmatmul.mubr.f32.gmra.mxu0 %v181
      %v754 = vpop.f32.mrf.mxu0
      %v755 = vadd.f32 %v488, %v754
      %v756 = vpop.f32.mrf.mxu0
      %757 = vmatprep.mubr.f32.mxu0 %v186
      %758 = vmatmul.mubr.f32.gmra.mxu0 %v185
      %v759 = vpop.f32.mrf.mxu0
      %v760 = vadd.f32 %v488, %v759
      %v761 = vpop.f32.mrf.mxu0
      %762 = vmatprep.mubr.f32.mxu0 %v190
      %763 = vmatmul.mubr.f32.gmra.mxu0 %v189
      %v764 = vpop.f32.mrf.mxu0
      %v765 = vadd.f32 %v488, %v764
      %v766 = vpop.f32.mrf.mxu0
      %767 = vmatprep.mubr.f32.mxu0 %v194
      %768 = vmatmul.mubr.f32.gmra.mxu0 %v193
      %v769 = vpop.f32.mrf.mxu0
      %v770 = vadd.f32 %v488, %v769
      %v771 = vpop.f32.mrf.mxu0
      %772 = vmatprep.mubr.f32.mxu0 %v198
      %773 = vmatmul.mubr.f32.gmra.mxu0 %v197
      %v774 = vpop.f32.mrf.mxu0
      %v775 = vadd.f32 %v488, %v774
      %v776 = vpop.f32.mrf.mxu0
      %777 = vmatprep.mubr.f32.mxu0 %v202
      %778 = vmatmul.mubr.f32.gmra.mxu0 %v201
      %v779 = vpop.f32.mrf.mxu0
      %v780 = vadd.f32 %v488, %v779
      %v781 = vpop.f32.mrf.mxu0
      %782 = vmatprep.mubr.f32.mxu0 %v206
      %783 = vmatmul.mubr.f32.gmra.mxu0 %v205
      %v784 = vpop.f32.mrf.mxu0
      %v785 = vadd.f32 %v488, %v784
      %v786 = vpop.f32.mrf.mxu0
      %787 = vmatprep.mubr.f32.mxu0 %v210
      %788 = vmatmul.mubr.f32.gmra.mxu0 %v209
      %v789 = vpop.f32.mrf.mxu0
      %v790 = vadd.f32 %v488, %v789
      %v791 = vpop.f32.mrf.mxu0
      %792 = vmatprep.mubr.f32.mxu0 %v214
      %793 = vmatmul.mubr.f32.gmra.mxu0 %v213
      %v794 = vpop.f32.mrf.mxu0
      %v795 = vadd.f32 %v488, %v794
      %v796 = vpop.f32.mrf.mxu0
      %797 = vmatprep.mubr.f32.mxu0 %v218
      %798 = vmatmul.mubr.f32.gmra.mxu0 %v217
      %v799 = vpop.f32.mrf.mxu0
      %v800 = vadd.f32 %v488, %v799
      %v801 = vpop.f32.mrf.mxu0
      %802 = vmatprep.mubr.f32.mxu0 %v222
      %803 = vmatmul.mubr.f32.gmra.mxu0 %v221
      %v804 = vpop.f32.mrf.mxu0
      %v805 = vadd.f32 %v488, %v804
      %v806 = vpop.f32.mrf.mxu0
      %807 = vmatprep.mubr.f32.mxu0 %v226
      %808 = vmatmul.mubr.f32.gmra.mxu0 %v225
      %v809 = vpop.f32.mrf.mxu0
      %v810 = vadd.f32 %v488, %v809
      %v811 = vpop.f32.mrf.mxu0
      %812 = vmatprep.mubr.f32.mxu0 %v230
      %813 = vmatmul.mubr.f32.gmra.mxu0 %v229
      %v814 = vpop.f32.mrf.mxu0
      %v815 = vadd.f32 %v488, %v814
      %v816 = vpop.f32.mrf.mxu0
      %817 = vmatprep.mubr.f32.mxu0 %v234
      %818 = vmatmul.mubr.f32.gmra.mxu0 %v233
      %v819 = vpop.f32.mrf.mxu0
      %v820 = vadd.f32 %v488, %v819
      %v821 = vpop.f32.mrf.mxu0
      %822 = vmatprep.mubr.f32.mxu0 %v238
      %823 = vmatmul.mubr.f32.gmra.mxu0 %v237
      %v824 = vpop.f32.mrf.mxu0
      %v825 = vadd.f32 %v488, %v824
      %v826 = vpop.f32.mrf.mxu0
      %827 = vmatprep.mubr.f32.mxu0 %v242
      %828 = vmatmul.mubr.f32.gmra.mxu0 %v241
      %v829 = vpop.f32.mrf.mxu0
      %v830 = vadd.f32 %v488, %v829
      %v831 = vpop.f32.mrf.mxu0
      %832 = vmatprep.mubr.f32.mxu0 %v246
      %833 = vmatmul.mubr.f32.gmra.mxu0 %v245
      %v834 = vpop.f32.mrf.mxu0
      %v835 = vadd.f32 %v488, %v834
      %v836 = vpop.f32.mrf.mxu0
      %837 = vmatprep.mubr.f32.mxu0 %v250
      %838 = vmatmul.mubr.f32.gmra.mxu0 %v249
      %v839 = vpop.f32.mrf.mxu0
      %v840 = vadd.f32 %v488, %v839
      %v841 = vpop.f32.mrf.mxu0
      %842 = vmatprep.mubr.f32.mxu0 %v254
      %843 = vmatmul.mubr.f32.gmra.mxu0 %v253
      %v844 = vpop.f32.mrf.mxu0
      %v845 = vadd.f32 %v488, %v844
      %v846 = vpop.f32.mrf.mxu0
      %847 = vmatprep.mubr.f32.mxu0 %v258
      %848 = vmatmul.mubr.f32.gmra.mxu0 %v257
      %v849 = vpop.f32.mrf.mxu0
      %v850 = vadd.f32 %v488, %v849
      %v851 = vpop.f32.mrf.mxu0
      %852 = vmatprep.mubr.f32.mxu0 %v262
      %853 = vmatmul.mubr.f32.gmra.mxu0 %v261
      %v854 = vpop.f32.mrf.mxu0
      %v855 = vadd.f32 %v488, %v854
      %v856 = vpop.f32.mrf.mxu0
      %857 = vmatprep.mubr.f32.mxu0 %v266
      %858 = vmatmul.mubr.f32.gmra.mxu0 %v265
      %v859 = vpop.f32.mrf.mxu0
      %v860 = vadd.f32 %v488, %v859
      %v861 = vpop.f32.mrf.mxu0
      %862 = vmatprep.mubr.f32.mxu0 %v270
      %863 = vmatmul.mubr.f32.gmra.mxu0 %v269
      %v864 = vpop.f32.mrf.mxu0
      %v865 = vadd.f32 %v488, %v864
      %v866 = vpop.f32.mrf.mxu0
      %867 = vmatprep.mubr.f32.mxu0 %v274
      %868 = vmatmul.mubr.f32.gmra.mxu0 %v273
      %v869 = vpop.f32.mrf.mxu0
      %v870 = vadd.f32 %v488, %v869
      %v871 = vpop.f32.mrf.mxu0
      %872 = vmatprep.mubr.f32.mxu0 %v278
      %873 = vmatmul.mubr.f32.gmra.mxu0 %v277
      %v874 = vpop.f32.mrf.mxu0
      %v875 = vadd.f32 %v488, %v874
      %v876 = vpop.f32.mrf.mxu0
      %877 = vmatprep.mubr.f32.mxu0 %v282
      %878 = vmatmul.mubr.f32.gmra.mxu0 %v281
      %v879 = vpop.f32.mrf.mxu0
      %v880 = vadd.f32 %v488, %v879
      %v881 = vpop.f32.mrf.mxu0
      %882 = vmatprep.mubr.f32.mxu0 %v286
      %883 = vmatmul.mubr.f32.gmra.mxu0 %v285
      %v884 = vpop.f32.mrf.mxu0
      %v885 = vadd.f32 %v488, %v884
      %v886 = vpop.f32.mrf.mxu0
      %887 = vmatprep.mubr.f32.mxu0 %v290
      %888 = vmatmul.mubr.f32.gmra.mxu0 %v289
      %v889 = vpop.f32.mrf.mxu0
      %v890 = vadd.f32 %v488, %v889
      %v891 = vpop.f32.mrf.mxu0
      %892 = vmatprep.mubr.f32.mxu0 %v294
      %893 = vmatmul.mubr.f32.gmra.mxu0 %v293
      %v894 = vpop.f32.mrf.mxu0
      %v895 = vadd.f32 %v488, %v894
      %v896 = vpop.f32.mrf.mxu0
      %897 = vmatprep.mubr.f32.mxu0 %v298
      %898 = vmatmul.mubr.f32.gmra.mxu0 %v297
      %v899 = vpop.f32.mrf.mxu0
      %v900 = vadd.f32 %v488, %v899
      %v901 = vpop.f32.mrf.mxu0
      %902 = vmatprep.mubr.f32.mxu0 %v302
      %903 = vmatmul.mubr.f32.gmra.mxu0 %v301
      %v904 = vpop.f32.mrf.mxu0
      %v905 = vadd.f32 %v488, %v904
      %v906 = vpop.f32.mrf.mxu0
      %907 = vmatprep.mubr.f32.mxu0 %v306
      %908 = vmatmul.mubr.f32.gmra.mxu0 %v305
      %v909 = vpop.f32.mrf.mxu0
      %v910 = vadd.f32 %v488, %v909
      %v911 = vpop.f32.mrf.mxu0
      %912 = vmatprep.mubr.f32.mxu0 %v310
      %913 = vmatmul.mubr.f32.gmra.mxu0 %v309
      %v914 = vpop.f32.mrf.mxu0
      %v915 = vadd.f32 %v488, %v914
      %v916 = vpop.f32.mrf.mxu0
      %917 = vmatprep.mubr.f32.mxu0 %v314
      %918 = vmatmul.mubr.f32.gmra.mxu0 %v313
      %v919 = vpop.f32.mrf.mxu0
      %v920 = vadd.f32 %v488, %v919
      %v921 = vpop.f32.mrf.mxu0
      %922 = vmatprep.mubr.f32.mxu0 %v318
      %923 = vmatmul.mubr.f32.gmra.mxu0 %v317
      %v924 = vpop.f32.mrf.mxu0
      %v925 = vadd.f32 %v488, %v924
      %v926 = vpop.f32.mrf.mxu0
      %927 = vmatprep.mubr.f32.mxu0 %v322
      %928 = vmatmul.mubr.f32.gmra.mxu0 %v321
      %v929 = vpop.f32.mrf.mxu0
      %v930 = vadd.f32 %v488, %v929
      %v931 = vpop.f32.mrf.mxu0
      %932 = vmatprep.mubr.f32.mxu0 %v326
      %933 = vmatmul.mubr.f32.gmra.mxu0 %v325
      %v934 = vpop.f32.mrf.mxu0
      %v935 = vadd.f32 %v488, %v934
      %v936 = vpop.f32.mrf.mxu0
      %937 = vmatprep.mubr.f32.mxu0 %v330
      %938 = vmatmul.mubr.f32.gmra.mxu0 %v329
      %v939 = vpop.f32.mrf.mxu0
      %v940 = vadd.f32 %v488, %v939
      %v941 = vpop.f32.mrf.mxu0
      %942 = vmatprep.mubr.f32.mxu0 %v334
      %943 = vmatmul.mubr.f32.gmra.mxu0 %v333
      %v944 = vpop.f32.mrf.mxu0
      %v945 = vadd.f32 %v488, %v944
      %v946 = vpop.f32.mrf.mxu0
      %947 = vmatprep.mubr.f32.mxu0 %v338
      %948 = vmatmul.mubr.f32.gmra.mxu0 %v337
      %v949 = vpop.f32.mrf.mxu0
      %v950 = vadd.f32 %v488, %v949
      %v951 = vpop.f32.mrf.mxu0
      %952 = vmatprep.mubr.f32.mxu0 %v342
      %953 = vmatmul.mubr.f32.gmra.mxu0 %v341
      %v954 = vpop.f32.mrf.mxu0
      %v955 = vadd.f32 %v488, %v954
      %v956 = vpop.f32.mrf.mxu0
      %957 = vmatprep.mubr.f32.mxu0 %v346
      %958 = vmatmul.mubr.f32.gmra.mxu0 %v345
      %v959 = vpop.f32.mrf.mxu0
      %v960 = vadd.f32 %v488, %v959
      %v961 = vpop.f32.mrf.mxu0
      %962 = vmatprep.mubr.f32.mxu0 %v350
      %963 = vmatmul.mubr.f32.gmra.mxu0 %v349
      %v964 = vpop.f32.mrf.mxu0
      %v965 = vadd.f32 %v488, %v964
      %v966 = vpop.f32.mrf.mxu0
      %967 = vmatprep.mubr.f32.mxu0 %v354
      %968 = vmatmul.mubr.f32.gmra.mxu0 %v353
      %v969 = vpop.f32.mrf.mxu0
      %v970 = vadd.f32 %v488, %v969
      %v971 = vpop.f32.mrf.mxu0
      %972 = vmatprep.mubr.f32.mxu0 %v358
      %973 = vmatmul.mubr.f32.gmra.mxu0 %v357
      %v974 = vpop.f32.mrf.mxu0
      %v975 = vadd.f32 %v488, %v974
      %v976 = vpop.f32.mrf.mxu0
      %977 = vmatprep.mubr.f32.mxu0 %v362
      %978 = vmatmul.mubr.f32.gmra.mxu0 %v361
      %v979 = vpop.f32.mrf.mxu0
      %v980 = vadd.f32 %v488, %v979
      %v981 = vpop.f32.mrf.mxu0
      %982 = vmatprep.mubr.f32.mxu0 %v366
      %983 = vmatmul.mubr.f32.gmra.mxu0 %v365
      %v984 = vpop.f32.mrf.mxu0
      %v985 = vadd.f32 %v488, %v984
      %v986 = vpop.f32.mrf.mxu0
      %987 = vmatprep.mubr.f32.mxu0 %v370
      %988 = vmatmul.mubr.f32.gmra.mxu0 %v369
      %v989 = vpop.f32.mrf.mxu0
      %v990 = vadd.f32 %v488, %v989
      %v991 = vpop.f32.mrf.mxu0
      %992 = vmatprep.mubr.f32.mxu0 %v374
      %993 = vmatmul.mubr.f32.gmra.mxu0 %v373
      %v994 = vpop.f32.mrf.mxu0
      %v995 = vadd.f32 %v488, %v994
      %v996 = vpop.f32.mrf.mxu0
      %997 = vmatprep.mubr.f32.mxu0 %v378
      %998 = vmatmul.mubr.f32.gmra.mxu0 %v377
      %v999 = vpop.f32.mrf.mxu0
      %v1000 = vadd.f32 %v488, %v999
      %v1001 = vpop.f32.mrf.mxu0
      %1002 = vmatprep.mubr.f32.mxu0 %v382
      %1003 = vmatmul.mubr.f32.gmra.mxu0 %v381
      %v1004 = vpop.f32.mrf.mxu0
      %v1005 = vadd.f32 %v488, %v1004
      %v1006 = vpop.f32.mrf.mxu0
      %1007 = vmatprep.mubr.f32.mxu0 %v386
      %1008 = vmatmul.mubr.f32.gmra.mxu0 %v385
      %v1009 = vpop.f32.mrf.mxu0
      %v1010 = vadd.f32 %v488, %v1009
      %v1011 = vpop.f32.mrf.mxu0
      %1012 = vmatprep.mubr.f32.mxu0 %v390
      %1013 = vmatmul.mubr.f32.gmra.mxu0 %v389
      %v1014 = vpop.f32.mrf.mxu0
      %v1015 = vadd.f32 %v488, %v1014
      %v1016 = vpop.f32.mrf.mxu0
      %1017 = vmatprep.mubr.f32.mxu0 %v394
      %1018 = vmatmul.mubr.f32.gmra.mxu0 %v393
      %v1019 = vpop.f32.mrf.mxu0
      %v1020 = vadd.f32 %v488, %v1019
      %v1021 = vpop.f32.mrf.mxu0
      %1022 = vmatprep.mubr.f32.mxu0 %v398
      %1023 = vmatmul.mubr.f32.gmra.mxu0 %v397
      %v1024 = vpop.f32.mrf.mxu0
      %v1025 = vadd.f32 %v488, %v1024
      %v1026 = vpop.f32.mrf.mxu0
      %1027 = vmatprep.mubr.f32.mxu0 %v402
      %1028 = vmatmul.mubr.f32.gmra.mxu0 %v401
      %v1029 = vpop.f32.mrf.mxu0
      %v1030 = vadd.f32 %v488, %v1029
      %v1031 = vpop.f32.mrf.mxu0
      %1032 = vmatprep.mubr.f32.mxu0 %v406
      %1033 = vmatmul.mubr.f32.gmra.mxu0 %v405
      %v1034 = vpop.f32.mrf.mxu0
      %v1035 = vadd.f32 %v488, %v1034
      %v1036 = vpop.f32.mrf.mxu0
      %1037 = vmatprep.mubr.f32.mxu0 %v410
      %1038 = vmatmul.mubr.f32.gmra.mxu0 %v409
      %v1039 = vpop.f32.mrf.mxu0
      %v1040 = vadd.f32 %v488, %v1039
      %v1041 = vpop.f32.mrf.mxu0
      %1042 = vmatprep.mubr.f32.mxu0 %v414
      %1043 = vmatmul.mubr.f32.gmra.mxu0 %v413
      %v1044 = vpop.f32.mrf.mxu0
      %v1045 = vadd.f32 %v488, %v1044
      %v1046 = vpop.f32.mrf.mxu0
      %1047 = vmatprep.mubr.f32.mxu0 %v418
      %1048 = vmatmul.mubr.f32.gmra.mxu0 %v417
      %v1049 = vpop.f32.mrf.mxu0
      %v1050 = vadd.f32 %v488, %v1049
      %v1051 = vpop.f32.mrf.mxu0
      %1052 = vmatprep.mubr.f32.mxu0 %v422
      %1053 = vmatmul.mubr.f32.gmra.mxu0 %v421
      %v1054 = vpop.f32.mrf.mxu0
      %v1055 = vadd.f32 %v488, %v1054
      %v1056 = vpop.f32.mrf.mxu0
      %1057 = vmatprep.mubr.f32.mxu0 %v426
      %1058 = vmatmul.mubr.f32.gmra.mxu0 %v425
      %v1059 = vpop.f32.mrf.mxu0
      %v1060 = vadd.f32 %v488, %v1059
      %v1061 = vpop.f32.mrf.mxu0
      %1062 = vmatprep.mubr.f32.mxu0 %v430
      %1063 = vmatmul.mubr.f32.gmra.mxu0 %v429
      %v1064 = vpop.f32.mrf.mxu0
      %v1065 = vadd.f32 %v488, %v1064
      %v1066 = vpop.f32.mrf.mxu0
      %1067 = vdwg.mxu0
      %1068 = vmatprep.subr.mxu0 0.0
      %1069 = vmatpush1.msra.mxu0 %v480
      %1070 = vmatprep.subr.mxu0 0.0
      %1071 = vmatpush1.msra.mxu0 %v479
      %1072 = vmatprep.subr.mxu0 0.0
      %1073 = vmatpush1.msra.mxu0 %v478
      %1074 = vmatprep.subr.mxu0 0.0
      %1075 = vmatpush1.msra.mxu0 %v477
      %1076 = vmatprep.subr.mxu0 0.0
      %1077 = vmatpush1.msra.mxu0 %v476
      %1078 = vmatprep.subr.mxu0 0.0
      %1079 = vmatpush1.msra.mxu0 %v475
      %1080 = vmatprep.subr.mxu0 0.0
      %1081 = vmatpush1.msra.mxu0 %v474
      %1082 = vmatprep.subr.mxu0 0.0
      %1083 = vmatpush1.msra.mxu0 %v473
      %1084 = vmatprep.subr.mxu0 0.0
      %1085 = vmatpush1.msra.mxu0 %v472
      %1086 = vmatprep.subr.mxu0 0.0
      %1087 = vmatpush1.msra.mxu0 %v471
      %1088 = vmatprep.subr.mxu0 0.0
      %1089 = vmatpush1.msra.mxu0 %v470
      %1090 = vmatprep.subr.mxu0 0.0
      %1091 = vmatpush1.msra.mxu0 %v469
      %1092 = vmatprep.subr.mxu0 0.0
      %1093 = vmatpush1.msra.mxu0 %v468
      %1094 = vmatprep.subr.mxu0 0.0
      %1095 = vmatpush1.msra.mxu0 %v467
      %1096 = vmatprep.subr.mxu0 0.0
      %1097 = vmatpush1.msra.mxu0 %v466
      %1098 = vmatprep.subr.mxu0 0.0
      %1099 = vmatpush1.msra.mxu0 %v465
      %1100 = vmatprep.subr.mxu0 0.0
      %1101 = vmatpush2.msra.mxu0 0.0
      %1102 = vmatprep.subr.mxu0 0.0
      %1103 = vmatpush2.msra.mxu0 0.0
      %1104 = vmatprep.subr.mxu0 0.0
      %1105 = vmatpush2.msra.mxu0 0.0
      %1106 = vmatprep.subr.mxu0 0.0
      %1107 = vmatpush2.msra.mxu0 0.0
      %1108 = vmatprep.subr.mxu0 0.0
      %1109 = vmatpush2.msra.mxu0 0.0
      %1110 = vmatprep.subr.mxu0 0.0
      %1111 = vmatpush2.msra.mxu0 0.0
      %1112 = vmatprep.subr.mxu0 0.0
      %1113 = vmatpush2.msra.mxu0 0.0
      %1114 = vmatprep.subr.mxu0 0.0
      %1115 = vmatpush2.msra.mxu0 0.0
      %1116 = vmatprep.subr.mxu0 0.0
      %1117 = vmatpush2.msra.mxu0 0.0
      %1118 = vmatprep.subr.mxu0 0.0
      %1119 = vmatpush2.msra.mxu0 0.0
      %1120 = vmatprep.subr.mxu0 0.0
      %1121 = vmatpush2.msra.mxu0 0.0
      %1122 = vmatprep.subr.mxu0 0.0
      %1123 = vmatpush2.msra.mxu0 0.0
      %1124 = vmatprep.subr.mxu0 0.0
      %1125 = vmatpush2.msra.mxu0 0.0
      %1126 = vmatprep.subr.mxu0 0.0
      %1127 = vmatpush2.msra.mxu0 0.0
      %1128 = vmatprep.subr.mxu0 0.0
      %1129 = vmatpush2.msra.mxu0 %v482
      %1130 = vmatprep.subr.mxu0 0.0
      %1131 = vmatpush2.msra.mxu0 %v481
      %1132 = vmatprep.mubr.f32.mxu0 %v492
      %1133 = vmatmul.mubr.f32.gmra.mxu0 %v179
      %v1134 = vpop.f32.mrf.mxu0
      %v1135 = vadd.f32 %v750, %v1134
      %v1136 = vpop.f32.mrf.mxu0
      %1137 = vmatprep.mubr.f32.mxu0 %v495
      %1138 = vmatmul.mubr.f32.gmra.mxu0 %v183
      %v1139 = vpop.f32.mrf.mxu0
      %v1140 = vadd.f32 %v755, %v1139
      %v1141 = vpop.f32.mrf.mxu0
      %1142 = vmatprep.mubr.f32.mxu0 %v498
      %1143 = vmatmul.mubr.f32.gmra.mxu0 %v187
      %v1144 = vpop.f32.mrf.mxu0
      %v1145 = vadd.f32 %v760, %v1144
      %v1146 = vpop.f32.mrf.mxu0
      %1147 = vmatprep.mubr.f32.mxu0 %v501
      %1148 = vmatmul.mubr.f32.gmra.mxu0 %v191
      %v1149 = vpop.f32.mrf.mxu0
      %v1150 = vadd.f32 %v765, %v1149
      %v1151 = vpop.f32.mrf.mxu0
      %1152 = vmatprep.mubr.f32.mxu0 %v504
      %1153 = vmatmul.mubr.f32.gmra.mxu0 %v195
      %v1154 = vpop.f32.mrf.mxu0
      %v1155 = vadd.f32 %v770, %v1154
      %v1156 = vpop.f32.mrf.mxu0
      %1157 = vmatprep.mubr.f32.mxu0 %v507
      %1158 = vmatmul.mubr.f32.gmra.mxu0 %v199
      %v1159 = vpop.f32.mrf.mxu0
      %v1160 = vadd.f32 %v775, %v1159
      %v1161 = vpop.f32.mrf.mxu0
      %1162 = vmatprep.mubr.f32.mxu0 %v510
      %1163 = vmatmul.mubr.f32.gmra.mxu0 %v203
      %v1164 = vpop.f32.mrf.mxu0
      %v1165 = vadd.f32 %v780, %v1164
      %v1166 = vpop.f32.mrf.mxu0
      %1167 = vmatprep.mubr.f32.mxu0 %v513
      %1168 = vmatmul.mubr.f32.gmra.mxu0 %v207
      %v1169 = vpop.f32.mrf.mxu0
      %v1170 = vadd.f32 %v785, %v1169
      %v1171 = vpop.f32.mrf.mxu0
      %1172 = vmatprep.mubr.f32.mxu0 %v516
      %1173 = vmatmul.mubr.f32.gmra.mxu0 %v211
      %v1174 = vpop.f32.mrf.mxu0
      %v1175 = vadd.f32 %v790, %v1174
      %v1176 = vpop.f32.mrf.mxu0
      %1177 = vmatprep.mubr.f32.mxu0 %v519
      %1178 = vmatmul.mubr.f32.gmra.mxu0 %v215
      %v1179 = vpop.f32.mrf.mxu0
      %v1180 = vadd.f32 %v795, %v1179
      %v1181 = vpop.f32.mrf.mxu0
      %1182 = vmatprep.mubr.f32.mxu0 %v522
      %1183 = vmatmul.mubr.f32.gmra.mxu0 %v219
      %v1184 = vpop.f32.mrf.mxu0
      %v1185 = vadd.f32 %v800, %v1184
      %v1186 = vpop.f32.mrf.mxu0
      %1187 = vmatprep.mubr.f32.mxu0 %v525
      %1188 = vmatmul.mubr.f32.gmra.mxu0 %v223
      %v1189 = vpop.f32.mrf.mxu0
      %v1190 = vadd.f32 %v805, %v1189
      %v1191 = vpop.f32.mrf.mxu0
      %1192 = vmatprep.mubr.f32.mxu0 %v528
      %1193 = vmatmul.mubr.f32.gmra.mxu0 %v227
      %v1194 = vpop.f32.mrf.mxu0
      %v1195 = vadd.f32 %v810, %v1194
      %v1196 = vpop.f32.mrf.mxu0
      %1197 = vmatprep.mubr.f32.mxu0 %v531
      %1198 = vmatmul.mubr.f32.gmra.mxu0 %v231
      %v1199 = vpop.f32.mrf.mxu0
      %v1200 = vadd.f32 %v815, %v1199
      %v1201 = vpop.f32.mrf.mxu0
      %1202 = vmatprep.mubr.f32.mxu0 %v534
      %1203 = vmatmul.mubr.f32.gmra.mxu0 %v235
      %v1204 = vpop.f32.mrf.mxu0
      %v1205 = vadd.f32 %v820, %v1204
      %v1206 = vpop.f32.mrf.mxu0
      %1207 = vmatprep.mubr.f32.mxu0 %v537
      %1208 = vmatmul.mubr.f32.gmra.mxu0 %v239
      %v1209 = vpop.f32.mrf.mxu0
      %v1210 = vadd.f32 %v825, %v1209
      %v1211 = vpop.f32.mrf.mxu0
      %1212 = vmatprep.mubr.f32.mxu0 %v540
      %1213 = vmatmul.mubr.f32.gmra.mxu0 %v243
      %v1214 = vpop.f32.mrf.mxu0
      %v1215 = vadd.f32 %v830, %v1214
      %v1216 = vpop.f32.mrf.mxu0
      %1217 = vmatprep.mubr.f32.mxu0 %v543
      %1218 = vmatmul.mubr.f32.gmra.mxu0 %v247
      %v1219 = vpop.f32.mrf.mxu0
      %v1220 = vadd.f32 %v835, %v1219
      %v1221 = vpop.f32.mrf.mxu0
      %1222 = vmatprep.mubr.f32.mxu0 %v546
      %1223 = vmatmul.mubr.f32.gmra.mxu0 %v251
      %v1224 = vpop.f32.mrf.mxu0
      %v1225 = vadd.f32 %v840, %v1224
      %v1226 = vpop.f32.mrf.mxu0
      %1227 = vmatprep.mubr.f32.mxu0 %v549
      %1228 = vmatmul.mubr.f32.gmra.mxu0 %v255
      %v1229 = vpop.f32.mrf.mxu0
      %v1230 = vadd.f32 %v845, %v1229
      %v1231 = vpop.f32.mrf.mxu0
      %1232 = vmatprep.mubr.f32.mxu0 %v552
      %1233 = vmatmul.mubr.f32.gmra.mxu0 %v259
      %v1234 = vpop.f32.mrf.mxu0
      %v1235 = vadd.f32 %v850, %v1234
      %v1236 = vpop.f32.mrf.mxu0
      %1237 = vmatprep.mubr.f32.mxu0 %v555
      %1238 = vmatmul.mubr.f32.gmra.mxu0 %v263
      %v1239 = vpop.f32.mrf.mxu0
      %v1240 = vadd.f32 %v855, %v1239
      %v1241 = vpop.f32.mrf.mxu0
      %1242 = vmatprep.mubr.f32.mxu0 %v558
      %1243 = vmatmul.mubr.f32.gmra.mxu0 %v267
      %v1244 = vpop.f32.mrf.mxu0
      %v1245 = vadd.f32 %v860, %v1244
      %v1246 = vpop.f32.mrf.mxu0
      %1247 = vmatprep.mubr.f32.mxu0 %v561
      %1248 = vmatmul.mubr.f32.gmra.mxu0 %v271
      %v1249 = vpop.f32.mrf.mxu0
      %v1250 = vadd.f32 %v865, %v1249
      %v1251 = vpop.f32.mrf.mxu0
      %1252 = vmatprep.mubr.f32.mxu0 %v564
      %1253 = vmatmul.mubr.f32.gmra.mxu0 %v275
      %v1254 = vpop.f32.mrf.mxu0
      %v1255 = vadd.f32 %v870, %v1254
      %v1256 = vpop.f32.mrf.mxu0
      %1257 = vmatprep.mubr.f32.mxu0 %v567
      %1258 = vmatmul.mubr.f32.gmra.mxu0 %v279
      %v1259 = vpop.f32.mrf.mxu0
      %v1260 = vadd.f32 %v875, %v1259
      %v1261 = vpop.f32.mrf.mxu0
      %1262 = vmatprep.mubr.f32.mxu0 %v570
      %1263 = vmatmul.mubr.f32.gmra.mxu0 %v283
      %v1264 = vpop.f32.mrf.mxu0
      %v1265 = vadd.f32 %v880, %v1264
      %v1266 = vpop.f32.mrf.mxu0
      %1267 = vmatprep.mubr.f32.mxu0 %v573
      %1268 = vmatmul.mubr.f32.gmra.mxu0 %v287
      %v1269 = vpop.f32.mrf.mxu0
      %v1270 = vadd.f32 %v885, %v1269
      %v1271 = vpop.f32.mrf.mxu0
      %1272 = vmatprep.mubr.f32.mxu0 %v576
      %1273 = vmatmul.mubr.f32.gmra.mxu0 %v291
      %v1274 = vpop.f32.mrf.mxu0
      %v1275 = vadd.f32 %v890, %v1274
      %v1276 = vpop.f32.mrf.mxu0
      %1277 = vmatprep.mubr.f32.mxu0 %v579
      %1278 = vmatmul.mubr.f32.gmra.mxu0 %v295
      %v1279 = vpop.f32.mrf.mxu0
      %v1280 = vadd.f32 %v895, %v1279
      %v1281 = vpop.f32.mrf.mxu0
      %1282 = vmatprep.mubr.f32.mxu0 %v582
      %1283 = vmatmul.mubr.f32.gmra.mxu0 %v299
      %v1284 = vpop.f32.mrf.mxu0
      %v1285 = vadd.f32 %v900, %v1284
      %v1286 = vpop.f32.mrf.mxu0
      %1287 = vmatprep.mubr.f32.mxu0 %v585
      %1288 = vmatmul.mubr.f32.gmra.mxu0 %v303
      %v1289 = vpop.f32.mrf.mxu0
      %v1290 = vadd.f32 %v905, %v1289
      %v1291 = vpop.f32.mrf.mxu0
      %1292 = vmatprep.mubr.f32.mxu0 %v588
      %1293 = vmatmul.mubr.f32.gmra.mxu0 %v307
      %v1294 = vpop.f32.mrf.mxu0
      %v1295 = vadd.f32 %v910, %v1294
      %v1296 = vpop.f32.mrf.mxu0
      %1297 = vmatprep.mubr.f32.mxu0 %v591
      %1298 = vmatmul.mubr.f32.gmra.mxu0 %v311
      %v1299 = vpop.f32.mrf.mxu0
      %v1300 = vadd.f32 %v915, %v1299
      %v1301 = vpop.f32.mrf.mxu0
      %1302 = vmatprep.mubr.f32.mxu0 %v594
      %1303 = vmatmul.mubr.f32.gmra.mxu0 %v315
      %v1304 = vpop.f32.mrf.mxu0
      %v1305 = vadd.f32 %v920, %v1304
      %v1306 = vpop.f32.mrf.mxu0
      %1307 = vmatprep.mubr.f32.mxu0 %v597
      %1308 = vmatmul.mubr.f32.gmra.mxu0 %v319
      %v1309 = vpop.f32.mrf.mxu0
      %v1310 = vadd.f32 %v925, %v1309
      %v1311 = vpop.f32.mrf.mxu0
      %1312 = vmatprep.mubr.f32.mxu0 %v600
      %1313 = vmatmul.mubr.f32.gmra.mxu0 %v323
      %v1314 = vpop.f32.mrf.mxu0
      %v1315 = vadd.f32 %v930, %v1314
      %v1316 = vpop.f32.mrf.mxu0
      %1317 = vmatprep.mubr.f32.mxu0 %v603
      %1318 = vmatmul.mubr.f32.gmra.mxu0 %v327
      %v1319 = vpop.f32.mrf.mxu0
      %v1320 = vadd.f32 %v935, %v1319
      %v1321 = vpop.f32.mrf.mxu0
      %1322 = vmatprep.mubr.f32.mxu0 %v606
      %1323 = vmatmul.mubr.f32.gmra.mxu0 %v331
      %v1324 = vpop.f32.mrf.mxu0
      %v1325 = vadd.f32 %v940, %v1324
      %v1326 = vpop.f32.mrf.mxu0
      %1327 = vmatprep.mubr.f32.mxu0 %v609
      %1328 = vmatmul.mubr.f32.gmra.mxu0 %v335
      %v1329 = vpop.f32.mrf.mxu0
      %v1330 = vadd.f32 %v945, %v1329
      %v1331 = vpop.f32.mrf.mxu0
      %1332 = vmatprep.mubr.f32.mxu0 %v612
      %1333 = vmatmul.mubr.f32.gmra.mxu0 %v339
      %v1334 = vpop.f32.mrf.mxu0
      %v1335 = vadd.f32 %v950, %v1334
      %v1336 = vpop.f32.mrf.mxu0
      %1337 = vmatprep.mubr.f32.mxu0 %v615
      %1338 = vmatmul.mubr.f32.gmra.mxu0 %v343
      %v1339 = vpop.f32.mrf.mxu0
      %v1340 = vadd.f32 %v955, %v1339
      %v1341 = vpop.f32.mrf.mxu0
      %1342 = vmatprep.mubr.f32.mxu0 %v618
      %1343 = vmatmul.mubr.f32.gmra.mxu0 %v347
      %v1344 = vpop.f32.mrf.mxu0
      %v1345 = vadd.f32 %v960, %v1344
      %v1346 = vpop.f32.mrf.mxu0
      %1347 = vmatprep.mubr.f32.mxu0 %v621
      %1348 = vmatmul.mubr.f32.gmra.mxu0 %v351
      %v1349 = vpop.f32.mrf.mxu0
      %v1350 = vadd.f32 %v965, %v1349
      %v1351 = vpop.f32.mrf.mxu0
      %1352 = vmatprep.mubr.f32.mxu0 %v624
      %1353 = vmatmul.mubr.f32.gmra.mxu0 %v355
      %v1354 = vpop.f32.mrf.mxu0
      %v1355 = vadd.f32 %v970, %v1354
      %v1356 = vpop.f32.mrf.mxu0
      %1357 = vmatprep.mubr.f32.mxu0 %v627
      %1358 = vmatmul.mubr.f32.gmra.mxu0 %v359
      %v1359 = vpop.f32.mrf.mxu0
      %v1360 = vadd.f32 %v975, %v1359
      %v1361 = vpop.f32.mrf.mxu0
      %1362 = vmatprep.mubr.f32.mxu0 %v630
      %1363 = vmatmul.mubr.f32.gmra.mxu0 %v363
      %v1364 = vpop.f32.mrf.mxu0
      %v1365 = vadd.f32 %v980, %v1364
      %v1366 = vpop.f32.mrf.mxu0
      %1367 = vmatprep.mubr.f32.mxu0 %v633
      %1368 = vmatmul.mubr.f32.gmra.mxu0 %v367
      %v1369 = vpop.f32.mrf.mxu0
      %v1370 = vadd.f32 %v985, %v1369
      %v1371 = vpop.f32.mrf.mxu0
      %1372 = vmatprep.mubr.f32.mxu0 %v636
      %1373 = vmatmul.mubr.f32.gmra.mxu0 %v371
      %v1374 = vpop.f32.mrf.mxu0
      %v1375 = vadd.f32 %v990, %v1374
      %v1376 = vpop.f32.mrf.mxu0
      %1377 = vmatprep.mubr.f32.mxu0 %v639
      %1378 = vmatmul.mubr.f32.gmra.mxu0 %v375
      %v1379 = vpop.f32.mrf.mxu0
      %v1380 = vadd.f32 %v995, %v1379
      %v1381 = vpop.f32.mrf.mxu0
      %1382 = vmatprep.mubr.f32.mxu0 %v642
      %1383 = vmatmul.mubr.f32.gmra.mxu0 %v379
      %v1384 = vpop.f32.mrf.mxu0
      %v1385 = vadd.f32 %v1000, %v1384
      %v1386 = vpop.f32.mrf.mxu0
      %1387 = vmatprep.mubr.f32.mxu0 %v645
      %1388 = vmatmul.mubr.f32.gmra.mxu0 %v383
      %v1389 = vpop.f32.mrf.mxu0
      %v1390 = vadd.f32 %v1005, %v1389
      %v1391 = vpop.f32.mrf.mxu0
      %1392 = vmatprep.mubr.f32.mxu0 %v648
      %1393 = vmatmul.mubr.f32.gmra.mxu0 %v387
      %v1394 = vpop.f32.mrf.mxu0
      %v1395 = vadd.f32 %v1010, %v1394
      %v1396 = vpop.f32.mrf.mxu0
      %1397 = vmatprep.mubr.f32.mxu0 %v651
      %1398 = vmatmul.mubr.f32.gmra.mxu0 %v391
      %v1399 = vpop.f32.mrf.mxu0
      %v1400 = vadd.f32 %v1015, %v1399
      %v1401 = vpop.f32.mrf.mxu0
      %1402 = vmatprep.mubr.f32.mxu0 %v654
      %1403 = vmatmul.mubr.f32.gmra.mxu0 %v395
      %v1404 = vpop.f32.mrf.mxu0
      %v1405 = vadd.f32 %v1020, %v1404
      %v1406 = vpop.f32.mrf.mxu0
      %1407 = vmatprep.mubr.f32.mxu0 %v657
      %1408 = vmatmul.mubr.f32.gmra.mxu0 %v399
      %v1409 = vpop.f32.mrf.mxu0
      %v1410 = vadd.f32 %v1025, %v1409
      %v1411 = vpop.f32.mrf.mxu0
      %1412 = vmatprep.mubr.f32.mxu0 %v660
      %1413 = vmatmul.mubr.f32.gmra.mxu0 %v403
      %v1414 = vpop.f32.mrf.mxu0
      %v1415 = vadd.f32 %v1030, %v1414
      %v1416 = vpop.f32.mrf.mxu0
      %1417 = vmatprep.mubr.f32.mxu0 %v663
      %1418 = vmatmul.mubr.f32.gmra.mxu0 %v407
      %v1419 = vpop.f32.mrf.mxu0
      %v1420 = vadd.f32 %v1035, %v1419
      %v1421 = vpop.f32.mrf.mxu0
      %1422 = vmatprep.mubr.f32.mxu0 %v666
      %1423 = vmatmul.mubr.f32.gmra.mxu0 %v411
      %v1424 = vpop.f32.mrf.mxu0
      %v1425 = vadd.f32 %v1040, %v1424
      %v1426 = vpop.f32.mrf.mxu0
      %1427 = vmatprep.mubr.f32.mxu0 %v669
      %1428 = vmatmul.mubr.f32.gmra.mxu0 %v415
      %v1429 = vpop.f32.mrf.mxu0
      %v1430 = vadd.f32 %v1045, %v1429
      %v1431 = vpop.f32.mrf.mxu0
      %1432 = vmatprep.mubr.f32.mxu0 %v672
      %1433 = vmatmul.mubr.f32.gmra.mxu0 %v419
      %v1434 = vpop.f32.mrf.mxu0
      %v1435 = vadd.f32 %v1050, %v1434
      %v1436 = vpop.f32.mrf.mxu0
      %1437 = vmatprep.mubr.f32.mxu0 %v675
      %1438 = vmatmul.mubr.f32.gmra.mxu0 %v423
      %v1439 = vpop.f32.mrf.mxu0
      %v1440 = vadd.f32 %v1055, %v1439
      %v1441 = vpop.f32.mrf.mxu0
      %1442 = vmatprep.mubr.f32.mxu0 %v678
      %1443 = vmatmul.mubr.f32.gmra.mxu0 %v427
      %v1444 = vpop.f32.mrf.mxu0
      %v1445 = vadd.f32 %v1060, %v1444
      %v1446 = vpop.f32.mrf.mxu0
      %1447 = vmatprep.mubr.f32.mxu0 %v681
      %1448 = vmatmul.mubr.f32.gmra.mxu0 %v431
      %v1449 = vpop.f32.mrf.mxu0
      %v1450 = vadd.f32 %v1065, %v1449
      %v1451 = vpop.f32.mrf.mxu0
      %1452 = vdwg.mxu0
      %v1453 = vmax.f32 %v1135, 0.0
      %v1454 = vmax.f32 %v1140, 0.0
      %v1455 = vmax.f32 %v1145, 0.0
      %v1456 = vmax.f32 %v1150, 0.0
      %v1457 = vmax.f32 %v1155, 0.0
      %v1458 = vmax.f32 %v1160, 0.0
      %v1459 = vmax.f32 %v1165, 0.0
      %v1460 = vmax.f32 %v1170, 0.0
      %v1461 = vmax.f32 %v1175, 0.0
      %v1462 = vmax.f32 %v1180, 0.0
      %v1463 = vmax.f32 %v1185, 0.0
      %v1464 = vmax.f32 %v1190, 0.0
      %v1465 = vmax.f32 %v1195, 0.0
      %v1466 = vmax.f32 %v1200, 0.0
      %v1467 = vmax.f32 %v1205, 0.0
      %v1468 = vmax.f32 %v1210, 0.0
      %v1469 = vmax.f32 %v1215, 0.0
      %v1470 = vmax.f32 %v1220, 0.0
      %v1471 = vmax.f32 %v1225, 0.0
      %v1472 = vmax.f32 %v1230, 0.0
      %v1473 = vmax.f32 %v1235, 0.0
      %v1474 = vmax.f32 %v1240, 0.0
      %v1475 = vmax.f32 %v1245, 0.0
      %v1476 = vmax.f32 %v1250, 0.0
      %v1477 = vmax.f32 %v1255, 0.0
      %v1478 = vmax.f32 %v1260, 0.0
      %v1479 = vmax.f32 %v1265, 0.0
      %v1480 = vmax.f32 %v1270, 0.0
      %v1481 = vmax.f32 %v1275, 0.0
      %v1482 = vmax.f32 %v1280, 0.0
      %v1483 = vmax.f32 %v1285, 0.0
      %v1484 = vmax.f32 %v1290, 0.0
      %v1485 = vmax.f32 %v1295, 0.0
      %v1486 = vmax.f32 %v1300, 0.0
      %v1487 = vmax.f32 %v1305, 0.0
      %v1488 = vmax.f32 %v1310, 0.0
      %v1489 = vmax.f32 %v1315, 0.0
      %v1490 = vmax.f32 %v1320, 0.0
      %v1491 = vmax.f32 %v1325, 0.0
      %v1492 = vmax.f32 %v1330, 0.0
      %v1493 = vmax.f32 %v1335, 0.0
      %v1494 = vmax.f32 %v1340, 0.0
      %v1495 = vmax.f32 %v1345, 0.0
      %v1496 = vmax.f32 %v1350, 0.0
      %v1497 = vmax.f32 %v1355, 0.0
      %v1498 = vmax.f32 %v1360, 0.0
      %v1499 = vmax.f32 %v1365, 0.0
      %v1500 = vmax.f32 %v1370, 0.0
      %v1501 = vmax.f32 %v1375, 0.0
      %v1502 = vmax.f32 %v1380, 0.0
      %v1503 = vmax.f32 %v1385, 0.0
      %v1504 = vmax.f32 %v1390, 0.0
      %v1505 = vmax.f32 %v1395, 0.0
      %v1506 = vmax.f32 %v1400, 0.0
      %v1507 = vmax.f32 %v1405, 0.0
      %v1508 = vmax.f32 %v1410, 0.0
      %v1509 = vmax.f32 %v1415, 0.0
      %v1510 = vmax.f32 %v1420, 0.0
      %v1511 = vmax.f32 %v1425, 0.0
      %v1512 = vmax.f32 %v1430, 0.0
      %v1513 = vmax.f32 %v1435, 0.0
      %v1514 = vmax.f32 %v1440, 0.0
      %v1515 = vmax.f32 %v1445, 0.0
      %v1516 = vmax.f32 %v1450, 0.0
      %1517 = vst.msk [vmem:[%s175] sm:$0xff] %vm490, %v1453
      %1518 = vst.msk [vmem:[%s175 + $0x8] sm:$0xff] %vm490, %v1454
      %1519 = vst.msk [vmem:[%s175 + $0x10] sm:$0xff] %vm490, %v1455
      %1520 = vst.msk [vmem:[%s175 + $0x18] sm:$0xff] %vm490, %v1456
      %1521 = vst.msk [vmem:[%s175 + $0x20] sm:$0xff] %vm490, %v1457
      %1522 = vst.msk [vmem:[%s175 + $0x28] sm:$0xff] %vm490, %v1458
      %1523 = vst.msk [vmem:[%s175 + $0x30] sm:$0xff] %vm490, %v1459
      %1524 = vst.msk [vmem:[%s175 + $0x38] sm:$0xff] %vm490, %v1460
      %1525 = vst.msk [vmem:[%s175 + $0x40] sm:$0xff] %vm490, %v1461
      %1526 = vst.msk [vmem:[%s175 + $0x48] sm:$0xff] %vm490, %v1462
      %1527 = vst.msk [vmem:[%s175 + $0x50] sm:$0xff] %vm490, %v1463
      %1528 = vst.msk [vmem:[%s175 + $0x58] sm:$0xff] %vm490, %v1464
      %1529 = vst.msk [vmem:[%s175 + $0x60] sm:$0xff] %vm490, %v1465
      %1530 = vst.msk [vmem:[%s175 + $0x68] sm:$0xff] %vm490, %v1466
      %1531 = vst.msk [vmem:[%s175 + $0x70] sm:$0xff] %vm490, %v1467
      %1532 = vst.msk [vmem:[%s175 + $0x78] sm:$0xff] %vm490, %v1468
      %1533 = vst.msk [vmem:[%s175 + $0x80] sm:$0xff] %vm490, %v1469
      %1534 = vst.msk [vmem:[%s175 + $0x88] sm:$0xff] %vm490, %v1470
      %1535 = vst.msk [vmem:[%s175 + $0x90] sm:$0xff] %vm490, %v1471
      %1536 = vst.msk [vmem:[%s175 + $0x98] sm:$0xff] %vm490, %v1472
      %1537 = vst.msk [vmem:[%s175 + $0xa0] sm:$0xff] %vm490, %v1473
      %1538 = vst.msk [vmem:[%s175 + $0xa8] sm:$0xff] %vm490, %v1474
      %1539 = vst.msk [vmem:[%s175 + $0xb0] sm:$0xff] %vm490, %v1475
      %1540 = vst.msk [vmem:[%s175 + $0xb8] sm:$0xff] %vm490, %v1476
      %1541 = vst.msk [vmem:[%s175 + $0xc0] sm:$0xff] %vm490, %v1477
      %1542 = vst.msk [vmem:[%s175 + $0xc8] sm:$0xff] %vm490, %v1478
      %1543 = vst.msk [vmem:[%s175 + $0xd0] sm:$0xff] %vm490, %v1479
      %1544 = vst.msk [vmem:[%s175 + $0xd8] sm:$0xff] %vm490, %v1480
      %1545 = vst.msk [vmem:[%s175 + $0xe0] sm:$0xff] %vm490, %v1481
      %1546 = vst.msk [vmem:[%s175 + $0xe8] sm:$0xff] %vm490, %v1482
      %1547 = vst.msk [vmem:[%s175 + $0xf0] sm:$0xff] %vm490, %v1483
      %1548 = vst.msk [vmem:[%s175 + $0xf8] sm:$0xff] %vm490, %v1484
      %1549 = vst.msk [vmem:[%s175 + $0x100] sm:$0xff] %vm490, %v1485
      %1550 = vst.msk [vmem:[%s175 + $0x108] sm:$0xff] %vm490, %v1486
      %1551 = vst.msk [vmem:[%s175 + $0x110] sm:$0xff] %vm490, %v1487
      %1552 = vst.msk [vmem:[%s175 + $0x118] sm:$0xff] %vm490, %v1488
      %1553 = vst.msk [vmem:[%s175 + $0x120] sm:$0xff] %vm490, %v1489
      %1554 = vst.msk [vmem:[%s175 + $0x128] sm:$0xff] %vm490, %v1490
      %1555 = vst.msk [vmem:[%s175 + $0x130] sm:$0xff] %vm490, %v1491
      %1556 = vst.msk [vmem:[%s175 + $0x138] sm:$0xff] %vm490, %v1492
      %1557 = vst.msk [vmem:[%s175 + $0x140] sm:$0xff] %vm490, %v1493
      %1558 = vst.msk [vmem:[%s175 + $0x148] sm:$0xff] %vm490, %v1494
      %1559 = vst.msk [vmem:[%s175 + $0x150] sm:$0xff] %vm490, %v1495
      %1560 = vst.msk [vmem:[%s175 + $0x158] sm:$0xff] %vm490, %v1496
      %1561 = vst.msk [vmem:[%s175 + $0x160] sm:$0xff] %vm490, %v1497
      %1562 = vst.msk [vmem:[%s175 + $0x168] sm:$0xff] %vm490, %v1498
      %1563 = vst.msk [vmem:[%s175 + $0x170] sm:$0xff] %vm490, %v1499
      %1564 = vst.msk [vmem:[%s175 + $0x178] sm:$0xff] %vm490, %v1500
      %1565 = vst.msk [vmem:[%s175 + $0x180] sm:$0xff] %vm490, %v1501
      %1566 = vst.msk [vmem:[%s175 + $0x188] sm:$0xff] %vm490, %v1502
      %1567 = vst.msk [vmem:[%s175 + $0x190] sm:$0xff] %vm490, %v1503
      %1568 = vst.msk [vmem:[%s175 + $0x198] sm:$0xff] %vm490, %v1504
      %1569 = vst.msk [vmem:[%s175 + $0x1a0] sm:$0xff] %vm490, %v1505
      %1570 = vst.msk [vmem:[%s175 + $0x1a8] sm:$0xff] %vm490, %v1506
      %1571 = vst.msk [vmem:[%s175 + $0x1b0] sm:$0xff] %vm490, %v1507
      %1572 = vst.msk [vmem:[%s175 + $0x1b8] sm:$0xff] %vm490, %v1508
      %1573 = vst.msk [vmem:[%s175 + $0x1c0] sm:$0xff] %vm490, %v1509
      %1574 = vst.msk [vmem:[%s175 + $0x1c8] sm:$0xff] %vm490, %v1510
      %1575 = vst.msk [vmem:[%s175 + $0x1d0] sm:$0xff] %vm490, %v1511
      %1576 = vst.msk [vmem:[%s175 + $0x1d8] sm:$0xff] %vm490, %v1512
      %1577 = vst.msk [vmem:[%s175 + $0x1e0] sm:$0xff] %vm490, %v1513
      %1578 = vst.msk [vmem:[%s175 + $0x1e8] sm:$0xff] %vm490, %v1514
      %1579 = vst.msk [vmem:[%s175 + $0x1f0] sm:$0xff] %vm490, %v1515
      %1580 = vst.msk [vmem:[%s175 + $0x1f8] sm:$0xff] %vm490, %v1516
      %s1581 = smul.u32 64, %s14
      %p1582 = scmp.lt.s32.totalorder %s1581, 127
      %s1583 = scalar_select %p1582, %s1581, 127
      %s1584 = smul.addr %s1583, 8
      %s1585 = scalar_lea.vmem %s3, %s1584
      // Predicated region
      $region33: #{forward.9} parent=31 // pred_check
        %p1586 = pneg %p100
      $region34: #{forward.9} parent=31 // pred_check_branch
        %1588 = sbr.rel (%p1586) target = $region36
      $region35: #{forward.9} parent=31 // pred_region
        %s1589 = smul.u32 64, %s14
      $region36: #{forward.9} parent=31 // pred_fallthru
        _
    $region32: #{forward.9} parent=5 // pred_fallthru
      _
    %p1590 = scmp.le.s32.totalorder 2, %s9
    // Predicated region
    $region37: #{forward.9} parent=5 // pred_check
      %p1591 = pneg %p1590
    $region38: #{forward.9} parent=5 // pred_check_branch
      %1593 = sbr.rel (%p1591) target = $region40
    $region39: #{forward.9} parent=5 // pred_region
      %s1594 = ssub.s32 %s9, 2
      // Predicated region
      $region41: #{forward.9} parent=39 // pred_check
        %p1595 = pneg %p106
      $region42: #{forward.9} parent=39 // pred_check_branch
        %1597 = sbr.rel (%p1595) target = $region44
      $region43: #{forward.9} parent=39 // pred_region
        %s1598 = smul.u32 64, %s15
        %p1599 = scmp.lt.s32.totalorder %s1598, 127
        %s1600 = scalar_select %p1599, %s1598, 127
        %s1601 = smul.addr %s1600, 8
        %s1602 = scalar_lea.vmem %s3, %s1601
      $region44: #{forward.9} parent=39 // pred_fallthru
        _
    $region40: #{forward.9} parent=5 // pred_fallthru
      _
  $region6: #{forward.9} parent=0 // loop_footer
    %s13 = sadd.s32 1, %s9
  $region7: #{forward.9} parent=0 // loop_footer_branch
    %8 = sbr.rel target = $region3
  $region8: #{forward.9} parent=0 // loop_exit
    _

// kernel: forward.10
$region0: #{forward.10}
  #allocation0 [shape = 'u32[]', space=smem, size = 0x4, offset = 0x4, fixed_abs, tag = 'smem constant byte address 0x4 - core index']
  #allocation1 [shape = 'u32[144,128]{1,0:T(1,128)}', space=vmem, size = 0x12000, scoped, tag = 'internal scratch']
  %s0 = inlined_call_operand.vmem [shape: f32[128,400], index: 0, kind: input, shape index: {}]
  %s1 = inlined_call_operand.vmem [shape: f32[400,16], index: 1, kind: input, shape index: {}]
  %s2 = inlined_call_operand.vmem [shape: f32[1,16], index: 2, kind: input, shape index: {}]
  %s3 = inlined_call_operand.vmem [shape: f32[128,16], index: 3, kind: output, shape index: {}]
  %s4 = sld [smem:[#allocation0]]
  $region22: #{forward.10} parent=0
    _
  %s6 = ssub.s32 1, %s4
  %s7 = scalar_select 0, %s6, %s4
  // Predicated region
  $region2: #{forward.10} parent=0 // pred_check
    _
  $region3: #{forward.10} parent=0 // pred_check_branch
    %9 = sbr.rel (0) target = $region5
  $region4: #{forward.10} parent=0 // pred_region
    _
  $region5: #{forward.10} parent=0 // pred_fallthru
    _
  // Predicated region
  $region6: #{forward.10} parent=0 // pred_check
    _
  $region7: #{forward.10} parent=0 // pred_check_branch
    %11 = sbr.rel (0) target = $region9
  $region8: #{forward.10} parent=0 // pred_region
    _
  $region9: #{forward.10} parent=0 // pred_fallthru
    _
  // Predicated region
  $region10: #{forward.10} parent=0 // pred_check
    _
  $region11: #{forward.10} parent=0 // pred_check_branch
    %13 = sbr.rel (0) target = $region13
  $region12: #{forward.10} parent=0 // pred_region
    _
  $region13: #{forward.10} parent=0 // pred_fallthru
    _
  %v14 = vld [vmem:[%s0] sm:$0xff]
  %v15 = vld [vmem:[%s0 + $0x8] sm:$0xff]
  %v16 = vld [vmem:[%s0 + $0x10] sm:$0xff]
  %v17 = vld [vmem:[%s0 + $0x18] sm:$0xff]
  %v18 = vld [vmem:[%s0 + $0x20] sm:$0xff]
  %v19 = vld [vmem:[%s0 + $0x28] sm:$0xff]
  %v20 = vld [vmem:[%s0 + $0x30] sm:$0xff]
  %v21 = vld [vmem:[%s0 + $0x38] sm:$0xff]
  %v22 = vld [vmem:[%s0 + $0x40] sm:$0xff]
  %v23 = vld [vmem:[%s0 + $0x48] sm:$0xff]
  %v24 = vld [vmem:[%s0 + $0x50] sm:$0xff]
  %v25 = vld [vmem:[%s0 + $0x58] sm:$0xff]
  %v26 = vld [vmem:[%s0 + $0x60] sm:$0xff]
  %v27 = vld [vmem:[%s0 + $0x68] sm:$0xff]
  %v28 = vld [vmem:[%s0 + $0x70] sm:$0xff]
  %v29 = vld [vmem:[%s0 + $0x78] sm:$0xff]
  %v30 = vld [vmem:[%s0 + $0x80] sm:$0xff]
  %v31 = vld [vmem:[%s0 + $0x88] sm:$0xff]
  %v32 = vld [vmem:[%s0 + $0x90] sm:$0xff]
  %v33 = vld [vmem:[%s0 + $0x98] sm:$0xff]
  %v34 = vld [vmem:[%s0 + $0xa0] sm:$0xff]
  %v35 = vld [vmem:[%s0 + $0xa8] sm:$0xff]
  %v36 = vld [vmem:[%s0 + $0xb0] sm:$0xff]
  %v37 = vld [vmem:[%s0 + $0xb8] sm:$0xff]
  %v38 = vld [vmem:[%s0 + $0xc0] sm:$0xff]
  %v39 = vld [vmem:[%s0 + $0xc8] sm:$0xff]
  %v40 = vld [vmem:[%s0 + $0xd0] sm:$0xff]
  %v41 = vld [vmem:[%s0 + $0xd8] sm:$0xff]
  %v42 = vld [vmem:[%s0 + $0xe0] sm:$0xff]
  %v43 = vld [vmem:[%s0 + $0xe8] sm:$0xff]
  %v44 = vld [vmem:[%s0 + $0xf0] sm:$0xff]
  %v45 = vld [vmem:[%s0 + $0xf8] sm:$0xff]
  %v46 = vld [vmem:[%s0 + $0x100] sm:$0xff]
  %v47 = vld [vmem:[%s0 + $0x108] sm:$0xff]
  %v48 = vld [vmem:[%s0 + $0x110] sm:$0xff]
  %v49 = vld [vmem:[%s0 + $0x118] sm:$0xff]
  %v50 = vld [vmem:[%s0 + $0x120] sm:$0xff]
  %v51 = vld [vmem:[%s0 + $0x128] sm:$0xff]
  %v52 = vld [vmem:[%s0 + $0x130] sm:$0xff]
  %v53 = vld [vmem:[%s0 + $0x138] sm:$0xff]
  %v54 = vld [vmem:[%s0 + $0x140] sm:$0xff]
  %v55 = vld [vmem:[%s0 + $0x148] sm:$0xff]
  %v56 = vld [vmem:[%s0 + $0x150] sm:$0xff]
  %v57 = vld [vmem:[%s0 + $0x158] sm:$0xff]
  %v58 = vld [vmem:[%s0 + $0x160] sm:$0xff]
  %v59 = vld [vmem:[%s0 + $0x168] sm:$0xff]
  %v60 = vld [vmem:[%s0 + $0x170] sm:$0xff]
  %v61 = vld [vmem:[%s0 + $0x178] sm:$0xff]
  %v62 = vld [vmem:[%s0 + $0x180] sm:$0xff]
  %v63 = vld [vmem:[%s0 + $0x188] sm:$0xff]
  %v64 = vld [vmem:[%s0 + $0x190] sm:$0xff]
  %v65 = vld [vmem:[%s0 + $0x198] sm:$0xff]
  %v66 = vld [vmem:[%s0 + $0x1a0] sm:$0xff]
  %v67 = vld [vmem:[%s0 + $0x1a8] sm:$0xff]
  %v68 = vld [vmem:[%s0 + $0x1b0] sm:$0xff]
  %v69 = vld [vmem:[%s0 + $0x1b8] sm:$0xff]
  %v70 = vld [vmem:[%s0 + $0x1c0] sm:$0xff]
  %v71 = vld [vmem:[%s0 + $0x1c8] sm:$0xff]
  %v72 = vld [vmem:[%s0 + $0x1d0] sm:$0xff]
  %v73 = vld [vmem:[%s0 + $0x1d8] sm:$0xff]
  %v74 = vld [vmem:[%s0 + $0x1e0] sm:$0xff]
  %v75 = vld [vmem:[%s0 + $0x1e8] sm:$0xff]
  %v76 = vld [vmem:[%s0 + $0x1f0] sm:$0xff]
  %v77 = vld [vmem:[%s0 + $0x1f8] sm:$0xff]
  %v78 = vld [vmem:[%s1] sm:$0xff]
  %v79 = vld [vmem:[%s1 + $0x8] sm:$0xff]
  %v80 = vld [vmem:[%s1 + $0x10] sm:$0xff]
  %v81 = vld [vmem:[%s1 + $0x18] sm:$0xff]
  %v82 = vld [vmem:[%s1 + $0x20] sm:$0xff]
  %v83 = vld [vmem:[%s1 + $0x28] sm:$0xff]
  %v84 = vld [vmem:[%s1 + $0x30] sm:$0xff]
  %v85 = vld [vmem:[%s1 + $0x38] sm:$0xff]
  %v86 = vld [vmem:[%s1 + $0x40] sm:$0xff]
  %v87 = vld [vmem:[%s1 + $0x48] sm:$0xff]
  %v88 = vld [vmem:[%s1 + $0x50] sm:$0xff]
  %v89 = vld [vmem:[%s1 + $0x58] sm:$0xff]
  %v90 = vld [vmem:[%s1 + $0x60] sm:$0xff]
  %v91 = vld [vmem:[%s1 + $0x68] sm:$0xff]
  %v92 = vld [vmem:[%s1 + $0x70] sm:$0xff]
  %v93 = vld [vmem:[%s1 + $0x78] sm:$0xff]
  %v94 = vld [vmem:[%s1 + $0x80] sm:$0xff]
  %v95 = vld [vmem:[%s1 + $0x88] sm:$0xff]
  %v96 = vld [vmem:[%s1 + $0x90] sm:$0xff]
  %v97 = vld [vmem:[%s1 + $0x98] sm:$0xff]
  %v98 = vld [vmem:[%s1 + $0xa0] sm:$0xff]
  %v99 = vld [vmem:[%s1 + $0xa8] sm:$0xff]
  %v100 = vld [vmem:[%s1 + $0xb0] sm:$0xff]
  %v101 = vld [vmem:[%s1 + $0xb8] sm:$0xff]
  %v102 = vld [vmem:[%s1 + $0xc0] sm:$0xff]
  %v103 = vld [vmem:[%s1 + $0xc8] sm:$0xff]
  %v104 = vld [vmem:[%s1 + $0xd0] sm:$0xff]
  %v105 = vld [vmem:[%s1 + $0xd8] sm:$0xff]
  %v106 = vld [vmem:[%s1 + $0xe0] sm:$0xff]
  %v107 = vld [vmem:[%s1 + $0xe8] sm:$0xff]
  %v108 = vld [vmem:[%s1 + $0xf0] sm:$0xff]
  %v109 = vld [vmem:[%s1 + $0xf8] sm:$0xff]
  %v110 = vld [vmem:[%s1 + $0x100] sm:$0xff]
  %v111 = vld [vmem:[%s1 + $0x108] sm:$0xff]
  %v112 = vld [vmem:[%s1 + $0x110] sm:$0xff]
  %v113 = vld [vmem:[%s1 + $0x118] sm:$0xff]
  %v114 = vld [vmem:[%s1 + $0x120] sm:$0xff]
  %v115 = vld [vmem:[%s1 + $0x128] sm:$0xff]
  %v116 = vld [vmem:[%s1 + $0x130] sm:$0xff]
  %v117 = vld [vmem:[%s1 + $0x138] sm:$0xff]
  %v118 = vld [vmem:[%s1 + $0x140] sm:$0xff]
  %v119 = vld [vmem:[%s1 + $0x148] sm:$0xff]
  %v120 = vld [vmem:[%s1 + $0x150] sm:$0xff]
  %v121 = vld [vmem:[%s1 + $0x158] sm:$0xff]
  %v122 = vld [vmem:[%s1 + $0x160] sm:$0xff]
  %v123 = vld [vmem:[%s1 + $0x168] sm:$0xff]
  %v124 = vld [vmem:[%s1 + $0x170] sm:$0xff]
  %v125 = vld [vmem:[%s1 + $0x178] sm:$0xff]
  %v126 = vld [vmem:[%s1 + $0x180] sm:$0xff]
  %v127 = vld [vmem:[%s1 + $0x188] sm:$0xff]
  %v128 = vld [vmem:[%s2] sm:$0x1]
  %v130 = vlaneseq
  %v131 = vshrl.u32 %v130, 7
  %v132 = vsub.s32 0, %v131
  %v133 = vrot.slane %v128, %v132
  %vm135 = vcmask 130048
  %v137 = vsel %vm135, %v17, 0
  %v140 = vsel %vm135, %v21, 0
  %v143 = vsel %vm135, %v25, 0
  %v146 = vsel %vm135, %v29, 0
  %v149 = vsel %vm135, %v33, 0
  %v152 = vsel %vm135, %v37, 0
  %v155 = vsel %vm135, %v41, 0
  %v158 = vsel %vm135, %v45, 0
  %v161 = vsel %vm135, %v49, 0
  %v164 = vsel %vm135, %v53, 0
  %v167 = vsel %vm135, %v57, 0
  %v170 = vsel %vm135, %v61, 0
  %v173 = vsel %vm135, %v65, 0
  %v176 = vsel %vm135, %v69, 0
  %v179 = vsel %vm135, %v73, 0
  %v182 = vsel %vm135, %v77, 0
  %184 = vmatprep.subr.mxu0 0.0
  %185 = vmatpush1.msra.mxu0 %v93
  %186 = vmatprep.subr.mxu0 0.0
  %187 = vmatpush1.msra.mxu0 %v92
  %188 = vmatprep.subr.mxu0 0.0
  %189 = vmatpush1.msra.mxu0 %v91
  %190 = vmatprep.subr.mxu0 0.0
  %191 = vmatpush1.msra.mxu0 %v90
  %192 = vmatprep.subr.mxu0 0.0
  %193 = vmatpush1.msra.mxu0 %v89
  %194 = vmatprep.subr.mxu0 0.0
  %195 = vmatpush1.msra.mxu0 %v88
  %196 = vmatprep.subr.mxu0 0.0
  %197 = vmatpush1.msra.mxu0 %v87
  %198 = vmatprep.subr.mxu0 0.0
  %199 = vmatpush1.msra.mxu0 %v86
  %200 = vmatprep.subr.mxu0 0.0
  %201 = vmatpush1.msra.mxu0 %v85
  %202 = vmatprep.subr.mxu0 0.0
  %203 = vmatpush1.msra.mxu0 %v84
  %204 = vmatprep.subr.mxu0 0.0
  %205 = vmatpush1.msra.mxu0 %v83
  %206 = vmatprep.subr.mxu0 0.0
  %207 = vmatpush1.msra.mxu0 %v82
  %208 = vmatprep.subr.mxu0 0.0
  %209 = vmatpush1.msra.mxu0 %v81
  %210 = vmatprep.subr.mxu0 0.0
  %211 = vmatpush1.msra.mxu0 %v80
  %212 = vmatprep.subr.mxu0 0.0
  %213 = vmatpush1.msra.mxu0 %v79
  %214 = vmatprep.subr.mxu0 0.0
  %215 = vmatpush1.msra.mxu0 %v78
  %216 = vmatprep.subr.mxu0 0.0
  %217 = vmatpush2.msra.mxu0 %v109
  %218 = vmatprep.subr.mxu0 0.0
  %219 = vmatpush2.msra.mxu0 %v108
  %220 = vmatprep.subr.mxu0 0.0
  %221 = vmatpush2.msra.mxu0 %v107
  %222 = vmatprep.subr.mxu0 0.0
  %223 = vmatpush2.msra.mxu0 %v106
  %224 = vmatprep.subr.mxu0 0.0
  %225 = vmatpush2.msra.mxu0 %v105
  %226 = vmatprep.subr.mxu0 0.0
  %227 = vmatpush2.msra.mxu0 %v104
  %228 = vmatprep.subr.mxu0 0.0
  %229 = vmatpush2.msra.mxu0 %v103
  %230 = vmatprep.subr.mxu0 0.0
  %231 = vmatpush2.msra.mxu0 %v102
  %232 = vmatprep.subr.mxu0 0.0
  %233 = vmatpush2.msra.mxu0 %v101
  %234 = vmatprep.subr.mxu0 0.0
  %235 = vmatpush2.msra.mxu0 %v100
  %236 = vmatprep.subr.mxu0 0.0
  %237 = vmatpush2.msra.mxu0 %v99
  %238 = vmatprep.subr.mxu0 0.0
  %239 = vmatpush2.msra.mxu0 %v98
  %240 = vmatprep.subr.mxu0 0.0
  %241 = vmatpush2.msra.mxu0 %v97
  %242 = vmatprep.subr.mxu0 0.0
  %243 = vmatpush2.msra.mxu0 %v96
  %244 = vmatprep.subr.mxu0 0.0
  %245 = vmatpush2.msra.mxu0 %v95
  %246 = vmatprep.subr.mxu0 0.0
  %247 = vmatpush2.msra.mxu0 %v94
  %248 = vmatprep.mubr.f32.mxu0 %v15
  %249 = vmatmul.mubr.f32.gmra.mxu0 %v14
  %v250 = vpop.f32.mrf.mxu0
  %v251 = vadd.f32 %v133, %v250
  %v252 = vpop.f32.mrf.mxu0
  %253 = vmatprep.mubr.f32.mxu0 %v19
  %254 = vmatmul.mubr.f32.gmra.mxu0 %v18
  %v255 = vpop.f32.mrf.mxu0
  %v256 = vadd.f32 %v133, %v255
  %v257 = vpop.f32.mrf.mxu0
  %258 = vmatprep.mubr.f32.mxu0 %v23
  %259 = vmatmul.mubr.f32.gmra.mxu0 %v22
  %v260 = vpop.f32.mrf.mxu0
  %v261 = vadd.f32 %v133, %v260
  %v262 = vpop.f32.mrf.mxu0
  %263 = vmatprep.mubr.f32.mxu0 %v27
  %264 = vmatmul.mubr.f32.gmra.mxu0 %v26
  %v265 = vpop.f32.mrf.mxu0
  %v266 = vadd.f32 %v133, %v265
  %v267 = vpop.f32.mrf.mxu0
  %268 = vmatprep.mubr.f32.mxu0 %v31
  %269 = vmatmul.mubr.f32.gmra.mxu0 %v30
  %v270 = vpop.f32.mrf.mxu0
  %v271 = vadd.f32 %v133, %v270
  %v272 = vpop.f32.mrf.mxu0
  %273 = vmatprep.mubr.f32.mxu0 %v35
  %274 = vmatmul.mubr.f32.gmra.mxu0 %v34
  %v275 = vpop.f32.mrf.mxu0
  %v276 = vadd.f32 %v133, %v275
  %v277 = vpop.f32.mrf.mxu0
  %278 = vmatprep.mubr.f32.mxu0 %v39
  %279 = vmatmul.mubr.f32.gmra.mxu0 %v38
  %v280 = vpop.f32.mrf.mxu0
  %v281 = vadd.f32 %v133, %v280
  %v282 = vpop.f32.mrf.mxu0
  %283 = vmatprep.mubr.f32.mxu0 %v43
  %284 = vmatmul.mubr.f32.gmra.mxu0 %v42
  %v285 = vpop.f32.mrf.mxu0
  %v286 = vadd.f32 %v133, %v285
  %v287 = vpop.f32.mrf.mxu0
  %288 = vmatprep.mubr.f32.mxu0 %v47
  %289 = vmatmul.mubr.f32.gmra.mxu0 %v46
  %v290 = vpop.f32.mrf.mxu0
  %v291 = vadd.f32 %v133, %v290
  %v292 = vpop.f32.mrf.mxu0
  %293 = vmatprep.mubr.f32.mxu0 %v51
  %294 = vmatmul.mubr.f32.gmra.mxu0 %v50
  %v295 = vpop.f32.mrf.mxu0
  %v296 = vadd.f32 %v133, %v295
  %v297 = vpop.f32.mrf.mxu0
  %298 = vmatprep.mubr.f32.mxu0 %v55
  %299 = vmatmul.mubr.f32.gmra.mxu0 %v54
  %v300 = vpop.f32.mrf.mxu0
  %v301 = vadd.f32 %v133, %v300
  %v302 = vpop.f32.mrf.mxu0
  %303 = vmatprep.mubr.f32.mxu0 %v59
  %304 = vmatmul.mubr.f32.gmra.mxu0 %v58
  %v305 = vpop.f32.mrf.mxu0
  %v306 = vadd.f32 %v133, %v305
  %v307 = vpop.f32.mrf.mxu0
  %308 = vmatprep.mubr.f32.mxu0 %v63
  %309 = vmatmul.mubr.f32.gmra.mxu0 %v62
  %v310 = vpop.f32.mrf.mxu0
  %v311 = vadd.f32 %v133, %v310
  %v312 = vpop.f32.mrf.mxu0
  %313 = vmatprep.mubr.f32.mxu0 %v67
  %314 = vmatmul.mubr.f32.gmra.mxu0 %v66
  %v315 = vpop.f32.mrf.mxu0
  %v316 = vadd.f32 %v133, %v315
  %v317 = vpop.f32.mrf.mxu0
  %318 = vmatprep.mubr.f32.mxu0 %v71
  %319 = vmatmul.mubr.f32.gmra.mxu0 %v70
  %v320 = vpop.f32.mrf.mxu0
  %v321 = vadd.f32 %v133, %v320
  %v322 = vpop.f32.mrf.mxu0
  %323 = vmatprep.mubr.f32.mxu0 %v75
  %324 = vmatmul.mubr.f32.gmra.mxu0 %v74
  %v325 = vpop.f32.mrf.mxu0
  %v326 = vadd.f32 %v133, %v325
  %v327 = vpop.f32.mrf.mxu0
  %328 = vdwg.mxu0
  %329 = vmatprep.subr.mxu0 0.0
  %330 = vmatpush1.msra.mxu0 %v125
  %331 = vmatprep.subr.mxu0 0.0
  %332 = vmatpush1.msra.mxu0 %v124
  %333 = vmatprep.subr.mxu0 0.0
  %334 = vmatpush1.msra.mxu0 %v123
  %335 = vmatprep.subr.mxu0 0.0
  %336 = vmatpush1.msra.mxu0 %v122
  %337 = vmatprep.subr.mxu0 0.0
  %338 = vmatpush1.msra.mxu0 %v121
  %339 = vmatprep.subr.mxu0 0.0
  %340 = vmatpush1.msra.mxu0 %v120
  %341 = vmatprep.subr.mxu0 0.0
  %342 = vmatpush1.msra.mxu0 %v119
  %343 = vmatprep.subr.mxu0 0.0
  %344 = vmatpush1.msra.mxu0 %v118
  %345 = vmatprep.subr.mxu0 0.0
  %346 = vmatpush1.msra.mxu0 %v117
  %347 = vmatprep.subr.mxu0 0.0
  %348 = vmatpush1.msra.mxu0 %v116
  %349 = vmatprep.subr.mxu0 0.0
  %350 = vmatpush1.msra.mxu0 %v115
  %351 = vmatprep.subr.mxu0 0.0
  %352 = vmatpush1.msra.mxu0 %v114
  %353 = vmatprep.subr.mxu0 0.0
  %354 = vmatpush1.msra.mxu0 %v113
  %355 = vmatprep.subr.mxu0 0.0
  %356 = vmatpush1.msra.mxu0 %v112
  %357 = vmatprep.subr.mxu0 0.0
  %358 = vmatpush1.msra.mxu0 %v111
  %359 = vmatprep.subr.mxu0 0.0
  %360 = vmatpush1.msra.mxu0 %v110
  %361 = vmatprep.subr.mxu0 0.0
  %362 = vmatpush2.msra.mxu0 0.0
  %363 = vmatprep.subr.mxu0 0.0
  %364 = vmatpush2.msra.mxu0 0.0
  %365 = vmatprep.subr.mxu0 0.0
  %366 = vmatpush2.msra.mxu0 0.0
  %367 = vmatprep.subr.mxu0 0.0
  %368 = vmatpush2.msra.mxu0 0.0
  %369 = vmatprep.subr.mxu0 0.0
  %370 = vmatpush2.msra.mxu0 0.0
  %371 = vmatprep.subr.mxu0 0.0
  %372 = vmatpush2.msra.mxu0 0.0
  %373 = vmatprep.subr.mxu0 0.0
  %374 = vmatpush2.msra.mxu0 0.0
  %375 = vmatprep.subr.mxu0 0.0
  %376 = vmatpush2.msra.mxu0 0.0
  %377 = vmatprep.subr.mxu0 0.0
  %378 = vmatpush2.msra.mxu0 0.0
  %379 = vmatprep.subr.mxu0 0.0
  %380 = vmatpush2.msra.mxu0 0.0
  %381 = vmatprep.subr.mxu0 0.0
  %382 = vmatpush2.msra.mxu0 0.0
  %383 = vmatprep.subr.mxu0 0.0
  %384 = vmatpush2.msra.mxu0 0.0
  %385 = vmatprep.subr.mxu0 0.0
  %386 = vmatpush2.msra.mxu0 0.0
  %387 = vmatprep.subr.mxu0 0.0
  %388 = vmatpush2.msra.mxu0 0.0
  %389 = vmatprep.subr.mxu0 0.0
  %390 = vmatpush2.msra.mxu0 %v127
  %391 = vmatprep.subr.mxu0 0.0
  %392 = vmatpush2.msra.mxu0 %v126
  %393 = vmatprep.mubr.f32.mxu0 %v137
  %394 = vmatmul.mubr.f32.gmra.mxu0 %v16
  %v395 = vpop.f32.mrf.mxu0
  %v396 = vadd.f32 %v251, %v395
  %v397 = vpop.f32.mrf.mxu0
  %398 = vmatprep.mubr.f32.mxu0 %v140
  %399 = vmatmul.mubr.f32.gmra.mxu0 %v20
  %v400 = vpop.f32.mrf.mxu0
  %v401 = vadd.f32 %v256, %v400
  %v402 = vpop.f32.mrf.mxu0
  %403 = vmatprep.mubr.f32.mxu0 %v143
  %404 = vmatmul.mubr.f32.gmra.mxu0 %v24
  %v405 = vpop.f32.mrf.mxu0
  %v406 = vadd.f32 %v261, %v405
  %v407 = vpop.f32.mrf.mxu0
  %408 = vmatprep.mubr.f32.mxu0 %v146
  %409 = vmatmul.mubr.f32.gmra.mxu0 %v28
  %v410 = vpop.f32.mrf.mxu0
  %v411 = vadd.f32 %v266, %v410
  %v412 = vpop.f32.mrf.mxu0
  %413 = vmatprep.mubr.f32.mxu0 %v149
  %414 = vmatmul.mubr.f32.gmra.mxu0 %v32
  %v415 = vpop.f32.mrf.mxu0
  %v416 = vadd.f32 %v271, %v415
  %v417 = vpop.f32.mrf.mxu0
  %418 = vmatprep.mubr.f32.mxu0 %v152
  %419 = vmatmul.mubr.f32.gmra.mxu0 %v36
  %v420 = vpop.f32.mrf.mxu0
  %v421 = vadd.f32 %v276, %v420
  %v422 = vpop.f32.mrf.mxu0
  %423 = vmatprep.mubr.f32.mxu0 %v155
  %424 = vmatmul.mubr.f32.gmra.mxu0 %v40
  %v425 = vpop.f32.mrf.mxu0
  %v426 = vadd.f32 %v281, %v425
  %v427 = vpop.f32.mrf.mxu0
  %428 = vmatprep.mubr.f32.mxu0 %v158
  %429 = vmatmul.mubr.f32.gmra.mxu0 %v44
  %v430 = vpop.f32.mrf.mxu0
  %v431 = vadd.f32 %v286, %v430
  %v432 = vpop.f32.mrf.mxu0
  %433 = vmatprep.mubr.f32.mxu0 %v161
  %434 = vmatmul.mubr.f32.gmra.mxu0 %v48
  %v435 = vpop.f32.mrf.mxu0
  %v436 = vadd.f32 %v291, %v435
  %v437 = vpop.f32.mrf.mxu0
  %438 = vmatprep.mubr.f32.mxu0 %v164
  %439 = vmatmul.mubr.f32.gmra.mxu0 %v52
  %v440 = vpop.f32.mrf.mxu0
  %v441 = vadd.f32 %v296, %v440
  %v442 = vpop.f32.mrf.mxu0
  %443 = vmatprep.mubr.f32.mxu0 %v167
  %444 = vmatmul.mubr.f32.gmra.mxu0 %v56
  %v445 = vpop.f32.mrf.mxu0
  %v446 = vadd.f32 %v301, %v445
  %v447 = vpop.f32.mrf.mxu0
  %448 = vmatprep.mubr.f32.mxu0 %v170
  %449 = vmatmul.mubr.f32.gmra.mxu0 %v60
  %v450 = vpop.f32.mrf.mxu0
  %v451 = vadd.f32 %v306, %v450
  %v452 = vpop.f32.mrf.mxu0
  %453 = vmatprep.mubr.f32.mxu0 %v173
  %454 = vmatmul.mubr.f32.gmra.mxu0 %v64
  %v455 = vpop.f32.mrf.mxu0
  %v456 = vadd.f32 %v311, %v455
  %v457 = vpop.f32.mrf.mxu0
  %458 = vmatprep.mubr.f32.mxu0 %v176
  %459 = vmatmul.mubr.f32.gmra.mxu0 %v68
  %v460 = vpop.f32.mrf.mxu0
  %v461 = vadd.f32 %v316, %v460
  %v462 = vpop.f32.mrf.mxu0
  %463 = vmatprep.mubr.f32.mxu0 %v179
  %464 = vmatmul.mubr.f32.gmra.mxu0 %v72
  %v465 = vpop.f32.mrf.mxu0
  %v466 = vadd.f32 %v321, %v465
  %v467 = vpop.f32.mrf.mxu0
  %468 = vmatprep.mubr.f32.mxu0 %v182
  %469 = vmatmul.mubr.f32.gmra.mxu0 %v76
  %v470 = vpop.f32.mrf.mxu0
  %v471 = vadd.f32 %v326, %v470
  %v472 = vpop.f32.mrf.mxu0
  %473 = vdwg.mxu0
  %v474 = vmax.f32 %v396, 0.0
  %v475 = vmax.f32 %v401, 0.0
  %v476 = vmax.f32 %v406, 0.0
  %v477 = vmax.f32 %v411, 0.0
  %v478 = vmax.f32 %v416, 0.0
  %v479 = vmax.f32 %v421, 0.0
  %v480 = vmax.f32 %v426, 0.0
  %v481 = vmax.f32 %v431, 0.0
  %v482 = vmax.f32 %v436, 0.0
  %v483 = vmax.f32 %v441, 0.0
  %v484 = vmax.f32 %v446, 0.0
  %v485 = vmax.f32 %v451, 0.0
  %v486 = vmax.f32 %v456, 0.0
  %v487 = vmax.f32 %v461, 0.0
  %v488 = vmax.f32 %v466, 0.0
  %v489 = vmax.f32 %v471, 0.0
  %490 = vst.msk [vmem:[%s3] sm:$0xff] %vm135, %v474
  %491 = vst.msk [vmem:[%s3 + $0x8] sm:$0xff] %vm135, %v475
  %492 = vst.msk [vmem:[%s3 + $0x10] sm:$0xff] %vm135, %v476
  %493 = vst.msk [vmem:[%s3 + $0x18] sm:$0xff] %vm135, %v477
  %494 = vst.msk [vmem:[%s3 + $0x20] sm:$0xff] %vm135, %v478
  %495 = vst.msk [vmem:[%s3 + $0x28] sm:$0xff] %vm135, %v479
  %496 = vst.msk [vmem:[%s3 + $0x30] sm:$0xff] %vm135, %v480
  %497 = vst.msk [vmem:[%s3 + $0x38] sm:$0xff] %vm135, %v481
  %498 = vst.msk [vmem:[%s3 + $0x40] sm:$0xff] %vm135, %v482
  %499 = vst.msk [vmem:[%s3 + $0x48] sm:$0xff] %vm135, %v483
  %500 = vst.msk [vmem:[%s3 + $0x50] sm:$0xff] %vm135, %v484
  %501 = vst.msk [vmem:[%s3 + $0x58] sm:$0xff] %vm135, %v485
  %502 = vst.msk [vmem:[%s3 + $0x60] sm:$0xff] %vm135, %v486
  %503 = vst.msk [vmem:[%s3 + $0x68] sm:$0xff] %vm135, %v487
  %504 = vst.msk [vmem:[%s3 + $0x70] sm:$0xff] %vm135, %v488
  %505 = vst.msk [vmem:[%s3 + $0x78] sm:$0xff] %vm135, %v489
  // Predicated region
  $region14: #{forward.10} parent=0 // pred_check
    _
  $region15: #{forward.10} parent=0 // pred_check_branch
    %507 = sbr.rel (0) target = $region17
  $region16: #{forward.10} parent=0 // pred_region
    _
  $region17: #{forward.10} parent=0 // pred_fallthru
    _
  // Predicated region
  $region18: #{forward.10} parent=0 // pred_check
    _
  $region19: #{forward.10} parent=0 // pred_check_branch
    %509 = sbr.rel (0) target = $region21
  $region20: #{forward.10} parent=0 // pred_region
    _
  $region21: #{forward.10} parent=0 // pred_fallthru
    _

// kernel: forward.11
$region0: #{forward.11}
  #allocation0 [shape = 'u32[]', space=smem, size = 0x4, offset = 0x4, fixed_abs, tag = 'smem constant byte address 0x4 - core index']
  #allocation1 [shape = 'u32[144,128]{1,0:T(1,128)}', space=vmem, size = 0x12000, scoped, tag = 'internal scratch']
  %s0 = inlined_call_operand.vmem [shape: f32[8,400], index: 0, kind: input, shape index: {}]
  %s1 = inlined_call_operand.vmem [shape: f32[400,16], index: 1, kind: input, shape index: {}]
  %s2 = inlined_call_operand.vmem [shape: f32[1,16], index: 2, kind: input, shape index: {}]
  %s3 = inlined_call_operand.vmem [shape: f32[8,16], index: 3, kind: output, shape index: {}]
  %s4 = sld [smem:[#allocation0]]
  $region22: #{forward.11} parent=0
    _
  %s6 = ssub.s32 1, %s4
  %s7 = scalar_select 0, %s6, %s4
  // Predicated region
  $region2: #{forward.11} parent=0 // pred_check
    _
  $region3: #{forward.11} parent=0 // pred_check_branch
    %9 = sbr.rel (0) target = $region5
  $region4: #{forward.11} parent=0 // pred_region
    _
  $region5: #{forward.11} parent=0 // pred_fallthru
    _
  // Predicated region
  $region6: #{forward.11} parent=0 // pred_check
    _
  $region7: #{forward.11} parent=0 // pred_check_branch
    %11 = sbr.rel (0) target = $region9
  $region8: #{forward.11} parent=0 // pred_region
    _
  $region9: #{forward.11} parent=0 // pred_fallthru
    _
  // Predicated region
  $region10: #{forward.11} parent=0 // pred_check
    _
  $region11: #{forward.11} parent=0 // pred_check_branch
    %13 = sbr.rel (0) target = $region13
  $region12: #{forward.11} parent=0 // pred_region
    _
  $region13: #{forward.11} parent=0 // pred_fallthru
    _
  %v14 = vld [vmem:[%s0] sm:$0xff]
  %v15 = vld [vmem:[%s0 + $0x8] sm:$0xff]
  %v16 = vld [vmem:[%s0 + $0x10] sm:$0xff]
  %v17 = vld [vmem:[%s0 + $0x18] sm:$0xff]
  %v18 = vld [vmem:[%s1] sm:$0xff]
  %v19 = vld [vmem:[%s1 + $0x8] sm:$0xff]
  %v20 = vld [vmem:[%s1 + $0x10] sm:$0xff]
  %v21 = vld [vmem:[%s1 + $0x18] sm:$0xff]
  %v22 = vld [vmem:[%s1 + $0x20] sm:$0xff]
  %v23 = vld [vmem:[%s1 + $0x28] sm:$0xff]
  %v24 = vld [vmem:[%s1 + $0x30] sm:$0xff]
  %v25 = vld [vmem:[%s1 + $0x38] sm:$0xff]
  %v26 = vld [vmem:[%s1 + $0x40] sm:$0xff]
  %v27 = vld [vmem:[%s1 + $0x48] sm:$0xff]
  %v28 = vld [vmem:[%s1 + $0x50] sm:$0xff]
  %v29 = vld [vmem:[%s1 + $0x58] sm:$0xff]
  %v30 = vld [vmem:[%s1 + $0x60] sm:$0xff]
  %v31 = vld [vmem:[%s1 + $0x68] sm:$0xff]
  %v32 = vld [vmem:[%s1 + $0x70] sm:$0xff]
  %v33 = vld [vmem:[%s1 + $0x78] sm:$0xff]
  %v34 = vld [vmem:[%s1 + $0x80] sm:$0xff]
  %v35 = vld [vmem:[%s1 + $0x88] sm:$0xff]
  %v36 = vld [vmem:[%s1 + $0x90] sm:$0xff]
  %v37 = vld [vmem:[%s1 + $0x98] sm:$0xff]
  %v38 = vld [vmem:[%s1 + $0xa0] sm:$0xff]
  %v39 = vld [vmem:[%s1 + $0xa8] sm:$0xff]
  %v40 = vld [vmem:[%s1 + $0xb0] sm:$0xff]
  %v41 = vld [vmem:[%s1 + $0xb8] sm:$0xff]
  %v42 = vld [vmem:[%s1 + $0xc0] sm:$0xff]
  %v43 = vld [vmem:[%s1 + $0xc8] sm:$0xff]
  %v44 = vld [vmem:[%s1 + $0xd0] sm:$0xff]
  %v45 = vld [vmem:[%s1 + $0xd8] sm:$0xff]
  %v46 = vld [vmem:[%s1 + $0xe0] sm:$0xff]
  %v47 = vld [vmem:[%s1 + $0xe8] sm:$0xff]
  %v48 = vld [vmem:[%s1 + $0xf0] sm:$0xff]
  %v49 = vld [vmem:[%s1 + $0xf8] sm:$0xff]
  %v50 = vld [vmem:[%s1 + $0x100] sm:$0xff]
  %v51 = vld [vmem:[%s1 + $0x108] sm:$0xff]
  %v52 = vld [vmem:[%s1 + $0x110] sm:$0xff]
  %v53 = vld [vmem:[%s1 + $0x118] sm:$0xff]
  %v54 = vld [vmem:[%s1 + $0x120] sm:$0xff]
  %v55 = vld [vmem:[%s1 + $0x128] sm:$0xff]
  %v56 = vld [vmem:[%s1 + $0x130] sm:$0xff]
  %v57 = vld [vmem:[%s1 + $0x138] sm:$0xff]
  %v58 = vld [vmem:[%s1 + $0x140] sm:$0xff]
  %v59 = vld [vmem:[%s1 + $0x148] sm:$0xff]
  %v60 = vld [vmem:[%s1 + $0x150] sm:$0xff]
  %v61 = vld [vmem:[%s1 + $0x158] sm:$0xff]
  %v62 = vld [vmem:[%s1 + $0x160] sm:$0xff]
  %v63 = vld [vmem:[%s1 + $0x168] sm:$0xff]
  %v64 = vld [vmem:[%s1 + $0x170] sm:$0xff]
  %v65 = vld [vmem:[%s1 + $0x178] sm:$0xff]
  %v66 = vld [vmem:[%s1 + $0x180] sm:$0xff]
  %v67 = vld [vmem:[%s1 + $0x188] sm:$0xff]
  %v68 = vld [vmem:[%s2] sm:$0x1]
  %v70 = vlaneseq
  %v71 = vshrl.u32 %v70, 7
  %v72 = vsub.s32 0, %v71
  %v73 = vrot.slane %v68, %v72
  %vm75 = vcmask 130048
  %v77 = vsel %vm75, %v17, 0
  %79 = vmatprep.subr.mxu0 0.0
  %80 = vmatpush1.msra.mxu0 %v33
  %81 = vmatprep.subr.mxu0 0.0
  %82 = vmatpush1.msra.mxu0 %v32
  %83 = vmatprep.subr.mxu0 0.0
  %84 = vmatpush1.msra.mxu0 %v31
  %85 = vmatprep.subr.mxu0 0.0
  %86 = vmatpush1.msra.mxu0 %v30
  %87 = vmatprep.subr.mxu0 0.0
  %88 = vmatpush1.msra.mxu0 %v29
  %89 = vmatprep.subr.mxu0 0.0
  %90 = vmatpush1.msra.mxu0 %v28
  %91 = vmatprep.subr.mxu0 0.0
  %92 = vmatpush1.msra.mxu0 %v27
  %93 = vmatprep.subr.mxu0 0.0
  %94 = vmatpush1.msra.mxu0 %v26
  %95 = vmatprep.subr.mxu0 0.0
  %96 = vmatpush1.msra.mxu0 %v25
  %97 = vmatprep.subr.mxu0 0.0
  %98 = vmatpush1.msra.mxu0 %v24
  %99 = vmatprep.subr.mxu0 0.0
  %100 = vmatpush1.msra.mxu0 %v23
  %101 = vmatprep.subr.mxu0 0.0
  %102 = vmatpush1.msra.mxu0 %v22
  %103 = vmatprep.subr.mxu0 0.0
  %104 = vmatpush1.msra.mxu0 %v21
  %105 = vmatprep.subr.mxu0 0.0
  %106 = vmatpush1.msra.mxu0 %v20
  %107 = vmatprep.subr.mxu0 0.0
  %108 = vmatpush1.msra.mxu0 %v19
  %109 = vmatprep.subr.mxu0 0.0
  %110 = vmatpush1.msra.mxu0 %v18
  %111 = vmatprep.subr.mxu0 0.0
  %112 = vmatpush2.msra.mxu0 %v49
  %113 = vmatprep.subr.mxu0 0.0
  %114 = vmatpush2.msra.mxu0 %v48
  %115 = vmatprep.subr.mxu0 0.0
  %116 = vmatpush2.msra.mxu0 %v47
  %117 = vmatprep.subr.mxu0 0.0
  %118 = vmatpush2.msra.mxu0 %v46
  %119 = vmatprep.subr.mxu0 0.0
  %120 = vmatpush2.msra.mxu0 %v45
  %121 = vmatprep.subr.mxu0 0.0
  %122 = vmatpush2.msra.mxu0 %v44
  %123 = vmatprep.subr.mxu0 0.0
  %124 = vmatpush2.msra.mxu0 %v43
  %125 = vmatprep.subr.mxu0 0.0
  %126 = vmatpush2.msra.mxu0 %v42
  %127 = vmatprep.subr.mxu0 0.0
  %128 = vmatpush2.msra.mxu0 %v41
  %129 = vmatprep.subr.mxu0 0.0
  %130 = vmatpush2.msra.mxu0 %v40
  %131 = vmatprep.subr.mxu0 0.0
  %132 = vmatpush2.msra.mxu0 %v39
  %133 = vmatprep.subr.mxu0 0.0
  %134 = vmatpush2.msra.mxu0 %v38
  %135 = vmatprep.subr.mxu0 0.0
  %136 = vmatpush2.msra.mxu0 %v37
  %137 = vmatprep.subr.mxu0 0.0
  %138 = vmatpush2.msra.mxu0 %v36
  %139 = vmatprep.subr.mxu0 0.0
  %140 = vmatpush2.msra.mxu0 %v35
  %141 = vmatprep.subr.mxu0 0.0
  %142 = vmatpush2.msra.mxu0 %v34
  %143 = vmatprep.mubr.f32.mxu0 %v15
  %144 = vmatmul.mubr.f32.gmra.mxu0 %v14
  %v145 = vpop.f32.mrf.mxu0
  %v146 = vadd.f32 %v73, %v145
  %v147 = vpop.f32.mrf.mxu0
  %148 = vdwg.mxu0
  %149 = vmatprep.subr.mxu0 0.0
  %150 = vmatpush1.msra.mxu0 %v65
  %151 = vmatprep.subr.mxu0 0.0
  %152 = vmatpush1.msra.mxu0 %v64
  %153 = vmatprep.subr.mxu0 0.0
  %154 = vmatpush1.msra.mxu0 %v63
  %155 = vmatprep.subr.mxu0 0.0
  %156 = vmatpush1.msra.mxu0 %v62
  %157 = vmatprep.subr.mxu0 0.0
  %158 = vmatpush1.msra.mxu0 %v61
  %159 = vmatprep.subr.mxu0 0.0
  %160 = vmatpush1.msra.mxu0 %v60
  %161 = vmatprep.subr.mxu0 0.0
  %162 = vmatpush1.msra.mxu0 %v59
  %163 = vmatprep.subr.mxu0 0.0
  %164 = vmatpush1.msra.mxu0 %v58
  %165 = vmatprep.subr.mxu0 0.0
  %166 = vmatpush1.msra.mxu0 %v57
  %167 = vmatprep.subr.mxu0 0.0
  %168 = vmatpush1.msra.mxu0 %v56
  %169 = vmatprep.subr.mxu0 0.0
  %170 = vmatpush1.msra.mxu0 %v55
  %171 = vmatprep.subr.mxu0 0.0
  %172 = vmatpush1.msra.mxu0 %v54
  %173 = vmatprep.subr.mxu0 0.0
  %174 = vmatpush1.msra.mxu0 %v53
  %175 = vmatprep.subr.mxu0 0.0
  %176 = vmatpush1.msra.mxu0 %v52
  %177 = vmatprep.subr.mxu0 0.0
  %178 = vmatpush1.msra.mxu0 %v51
  %179 = vmatprep.subr.mxu0 0.0
  %180 = vmatpush1.msra.mxu0 %v50
  %181 = vmatprep.subr.mxu0 0.0
  %182 = vmatpush2.msra.mxu0 0.0
  %183 = vmatprep.subr.mxu0 0.0
  %184 = vmatpush2.msra.mxu0 0.0
  %185 = vmatprep.subr.mxu0 0.0
  %186 = vmatpush2.msra.mxu0 0.0
  %187 = vmatprep.subr.mxu0 0.0
  %188 = vmatpush2.msra.mxu0 0.0
  %189 = vmatprep.subr.mxu0 0.0
  %190 = vmatpush2.msra.mxu0 0.0
  %191 = vmatprep.subr.mxu0 0.0
  %192 = vmatpush2.msra.mxu0 0.0
  %193 = vmatprep.subr.mxu0 0.0
  %194 = vmatpush2.msra.mxu0 0.0
  %195 = vmatprep.subr.mxu0 0.0
  %196 = vmatpush2.msra.mxu0 0.0
  %197 = vmatprep.subr.mxu0 0.0
  %198 = vmatpush2.msra.mxu0 0.0
  %199 = vmatprep.subr.mxu0 0.0
  %200 = vmatpush2.msra.mxu0 0.0
  %201 = vmatprep.subr.mxu0 0.0
  %202 = vmatpush2.msra.mxu0 0.0
  %203 = vmatprep.subr.mxu0 0.0
  %204 = vmatpush2.msra.mxu0 0.0
  %205 = vmatprep.subr.mxu0 0.0
  %206 = vmatpush2.msra.mxu0 0.0
  %207 = vmatprep.subr.mxu0 0.0
  %208 = vmatpush2.msra.mxu0 0.0
  %209 = vmatprep.subr.mxu0 0.0
  %210 = vmatpush2.msra.mxu0 %v67
  %211 = vmatprep.subr.mxu0 0.0
  %212 = vmatpush2.msra.mxu0 %v66
  %213 = vmatprep.mubr.f32.mxu0 %v77
  %214 = vmatmul.mubr.f32.gmra.mxu0 %v16
  %v215 = vpop.f32.mrf.mxu0
  %v216 = vadd.f32 %v146, %v215
  %v217 = vpop.f32.mrf.mxu0
  %218 = vdwg.mxu0
  %v219 = vmax.f32 %v216, 0.0
  %220 = vst.msk [vmem:[%s3] sm:$0xff] %vm75, %v219
  // Predicated region
  $region14: #{forward.11} parent=0 // pred_check
    _
  $region15: #{forward.11} parent=0 // pred_check_branch
    %222 = sbr.rel (0) target = $region17
  $region16: #{forward.11} parent=0 // pred_region
    _
  $region17: #{forward.11} parent=0 // pred_fallthru
    _
  // Predicated region
  $region18: #{forward.11} parent=0 // pred_check
    _
  $region19: #{forward.11} parent=0 // pred_check_branch
    %224 = sbr.rel (0) target = $region21
  $region20: #{forward.11} parent=0 // pred_region
    _
  $region21: #{forward.11} parent=0 // pred_fallthru
    _

// kernel: forward.12
$region0: #{forward.12}
  #allocation0 [shape = 'u32[]', space=smem, size = 0x4, offset = 0x4, fixed_abs, tag = 'smem constant byte address 0x4 - core index']
  #allocation1 [shape = 'u32[144,128]{1,0:T(1,128)}', space=vmem, size = 0x12000, scoped, tag = 'internal scratch']
  %s0 = inlined_call_operand.vmem [shape: f32[8,16], index: 0, kind: input, shape index: {}]
  %s1 = inlined_call_operand.vmem [shape: f32[16,256], index: 1, kind: input, shape index: {}]
  %s2 = inlined_call_operand.vmem [shape: f32[1,256], index: 2, kind: input, shape index: {}]
  %s3 = inlined_call_operand.vmem [shape: f32[8,256], index: 3, kind: output, shape index: {}]
  %s4 = sld [smem:[#allocation0]]
  $region22: #{forward.12} parent=0
    _
  %s6 = ssub.s32 1, %s4
  %s7 = scalar_select 0, %s6, %s4
  // Predicated region
  $region2: #{forward.12} parent=0 // pred_check
    _
  $region3: #{forward.12} parent=0 // pred_check_branch
    %9 = sbr.rel (0) target = $region5
  $region4: #{forward.12} parent=0 // pred_region
    _
  $region5: #{forward.12} parent=0 // pred_fallthru
    _
  // Predicated region
  $region6: #{forward.12} parent=0 // pred_check
    _
  $region7: #{forward.12} parent=0 // pred_check_branch
    %11 = sbr.rel (0) target = $region9
  $region8: #{forward.12} parent=0 // pred_region
    _
  $region9: #{forward.12} parent=0 // pred_fallthru
    _
  // Predicated region
  $region10: #{forward.12} parent=0 // pred_check
    _
  $region11: #{forward.12} parent=0 // pred_check_branch
    %13 = sbr.rel (0) target = $region13
  $region12: #{forward.12} parent=0 // pred_region
    _
  $region13: #{forward.12} parent=0 // pred_fallthru
    _
  %v14 = vld [vmem:[%s0] sm:$0xff]
  %v15 = vld [vmem:[%s1] sm:$0xff]
  %v16 = vld [vmem:[%s1 + $0x8] sm:$0xff]
  %v17 = vld [vmem:[%s1 + $0x10] sm:$0xff]
  %v18 = vld [vmem:[%s1 + $0x18] sm:$0xff]
  %v19 = vld [vmem:[%s2] sm:$0x3]
  %v21 = vlaneseq
  %v22 = vshrl.u32 %v21, 7
  %v23 = vsub.s32 0, %v22
  %v24 = vrot.slane %v19, %v23
  %v25 = vlaneseq
  %v26 = vshrl.u32 %v25, 7
  %v27 = vsub.s32 1, %v26
  %v28 = vrot.slane %v19, %v27
  %vm31 = vcmask 130048
  %v33 = vsel %vm31, %v14, 0
  %35 = vmatprep.subr.mxu0 0.0
  %36 = vmatpush1.msra.mxu0 0.0
  %37 = vmatprep.subr.mxu0 0.0
  %38 = vmatpush1.msra.mxu0 0.0
  %39 = vmatprep.subr.mxu0 0.0
  %40 = vmatpush1.msra.mxu0 0.0
  %41 = vmatprep.subr.mxu0 0.0
  %42 = vmatpush1.msra.mxu0 0.0
  %43 = vmatprep.subr.mxu0 0.0
  %44 = vmatpush1.msra.mxu0 0.0
  %45 = vmatprep.subr.mxu0 0.0
  %46 = vmatpush1.msra.mxu0 0.0
  %47 = vmatprep.subr.mxu0 0.0
  %48 = vmatpush1.msra.mxu0 0.0
  %49 = vmatprep.subr.mxu0 0.0
  %50 = vmatpush1.msra.mxu0 0.0
  %51 = vmatprep.subr.mxu0 0.0
  %52 = vmatpush1.msra.mxu0 0.0
  %53 = vmatprep.subr.mxu0 0.0
  %54 = vmatpush1.msra.mxu0 0.0
  %55 = vmatprep.subr.mxu0 0.0
  %56 = vmatpush1.msra.mxu0 0.0
  %57 = vmatprep.subr.mxu0 0.0
  %58 = vmatpush1.msra.mxu0 0.0
  %59 = vmatprep.subr.mxu0 0.0
  %60 = vmatpush1.msra.mxu0 0.0
  %61 = vmatprep.subr.mxu0 0.0
  %62 = vmatpush1.msra.mxu0 0.0
  %63 = vmatprep.subr.mxu0 %v18
  %64 = vmatpush1.msra.mxu0 %v17
  %65 = vmatprep.subr.mxu0 %v16
  %66 = vmatpush1.msra.mxu0 %v15
  %67 = vmatprep.subr.mxu0 0.0
  %68 = vmatpush2.msra.mxu0 0.0
  %69 = vmatprep.subr.mxu0 0.0
  %70 = vmatpush2.msra.mxu0 0.0
  %71 = vmatprep.subr.mxu0 0.0
  %72 = vmatpush2.msra.mxu0 0.0
  %73 = vmatprep.subr.mxu0 0.0
  %74 = vmatpush2.msra.mxu0 0.0
  %75 = vmatprep.subr.mxu0 0.0
  %76 = vmatpush2.msra.mxu0 0.0
  %77 = vmatprep.subr.mxu0 0.0
  %78 = vmatpush2.msra.mxu0 0.0
  %79 = vmatprep.subr.mxu0 0.0
  %80 = vmatpush2.msra.mxu0 0.0
  %81 = vmatprep.subr.mxu0 0.0
  %82 = vmatpush2.msra.mxu0 0.0
  %83 = vmatprep.subr.mxu0 0.0
  %84 = vmatpush2.msra.mxu0 0.0
  %85 = vmatprep.subr.mxu0 0.0
  %86 = vmatpush2.msra.mxu0 0.0
  %87 = vmatprep.subr.mxu0 0.0
  %88 = vmatpush2.msra.mxu0 0.0
  %89 = vmatprep.subr.mxu0 0.0
  %90 = vmatpush2.msra.mxu0 0.0
  %91 = vmatprep.subr.mxu0 0.0
  %92 = vmatpush2.msra.mxu0 0.0
  %93 = vmatprep.subr.mxu0 0.0
  %94 = vmatpush2.msra.mxu0 0.0
  %95 = vmatprep.subr.mxu0 0.0
  %96 = vmatpush2.msra.mxu0 0.0
  %97 = vmatprep.subr.mxu0 0.0
  %98 = vmatpush2.msra.mxu0 0.0
  %99 = vmatprep.mubr.f32.mxu0 0.0
  %100 = vmatmul.mubr.f32.gmra.mxu0 %v33
  %v101 = vpop.f32.mrf.mxu0
  %v102 = vadd.f32 %v24, %v101
  %v103 = vpop.f32.mrf.mxu0
  %v104 = vadd.f32 %v28, %v103
  %105 = vdwg.mxu0
  %106 = vst [vmem:[%s3] sm:$0xff] %v102
  %107 = vst [vmem:[%s3 + $0x8] sm:$0xff] %v104
  // Predicated region
  $region14: #{forward.12} parent=0 // pred_check
    _
  $region15: #{forward.12} parent=0 // pred_check_branch
    %109 = sbr.rel (0) target = $region17
  $region16: #{forward.12} parent=0 // pred_region
    _
  $region17: #{forward.12} parent=0 // pred_fallthru
    _
  // Predicated region
  $region18: #{forward.12} parent=0 // pred_check
    _
  $region19: #{forward.12} parent=0 // pred_check_branch
    %111 = sbr.rel (0) target = $region21
  $region20: #{forward.12} parent=0 // pred_region
    _
  $region21: #{forward.12} parent=0 // pred_fallthru
    _

// kernel: forward.13
$region0: #{forward.13}
  #allocation0 [shape = 'u32[]', space=smem, size = 0x4, offset = 0x4, fixed_abs, tag = 'smem constant byte address 0x4 - core index']
  #allocation1 [shape = 'u32[144,128]{1,0:T(1,128)}', space=vmem, size = 0x12000, scoped, tag = 'internal scratch']
  %s0 = inlined_call_operand.vmem [shape: f32[8,256], index: 0, kind: input, shape index: {}]
  %s1 = inlined_call_operand.vmem [shape: f32[256,10], index: 1, kind: input, shape index: {}]
  %s2 = inlined_call_operand.vmem [shape: f32[1,10], index: 2, kind: input, shape index: {}]
  %s3 = inlined_call_operand.vmem [shape: f32[8,10], index: 3, kind: output, shape index: {}]
  %s4 = sld [smem:[#allocation0]]
  $region22: #{forward.13} parent=0
    _
  %s6 = ssub.s32 1, %s4
  %s7 = scalar_select 0, %s6, %s4
  // Predicated region
  $region2: #{forward.13} parent=0 // pred_check
    _
  $region3: #{forward.13} parent=0 // pred_check_branch
    %9 = sbr.rel (0) target = $region5
  $region4: #{forward.13} parent=0 // pred_region
    _
  $region5: #{forward.13} parent=0 // pred_fallthru
    _
  // Predicated region
  $region6: #{forward.13} parent=0 // pred_check
    _
  $region7: #{forward.13} parent=0 // pred_check_branch
    %11 = sbr.rel (0) target = $region9
  $region8: #{forward.13} parent=0 // pred_region
    _
  $region9: #{forward.13} parent=0 // pred_fallthru
    _
  // Predicated region
  $region10: #{forward.13} parent=0 // pred_check
    _
  $region11: #{forward.13} parent=0 // pred_check_branch
    %13 = sbr.rel (0) target = $region13
  $region12: #{forward.13} parent=0 // pred_region
    _
  $region13: #{forward.13} parent=0 // pred_fallthru
    _
  %v14 = vld [vmem:[%s0] sm:$0xff]
  %v15 = vld [vmem:[%s0 + $0x8] sm:$0xff]
  %v16 = vld [vmem:[%s1] sm:$0xff]
  %v17 = vld [vmem:[%s1 + $0x8] sm:$0xff]
  %v18 = vld [vmem:[%s1 + $0x10] sm:$0xff]
  %v19 = vld [vmem:[%s1 + $0x18] sm:$0xff]
  %v20 = vld [vmem:[%s1 + $0x20] sm:$0xff]
  %v21 = vld [vmem:[%s1 + $0x28] sm:$0xff]
  %v22 = vld [vmem:[%s1 + $0x30] sm:$0xff]
  %v23 = vld [vmem:[%s1 + $0x38] sm:$0xff]
  %v24 = vld [vmem:[%s1 + $0x40] sm:$0xff]
  %v25 = vld [vmem:[%s1 + $0x48] sm:$0xff]
  %v26 = vld [vmem:[%s1 + $0x50] sm:$0xff]
  %v27 = vld [vmem:[%s1 + $0x58] sm:$0xff]
  %v28 = vld [vmem:[%s1 + $0x60] sm:$0xff]
  %v29 = vld [vmem:[%s1 + $0x68] sm:$0xff]
  %v30 = vld [vmem:[%s1 + $0x70] sm:$0xff]
  %v31 = vld [vmem:[%s1 + $0x78] sm:$0xff]
  %v32 = vld [vmem:[%s1 + $0x80] sm:$0xff]
  %v33 = vld [vmem:[%s1 + $0x88] sm:$0xff]
  %v34 = vld [vmem:[%s1 + $0x90] sm:$0xff]
  %v35 = vld [vmem:[%s1 + $0x98] sm:$0xff]
  %v36 = vld [vmem:[%s1 + $0xa0] sm:$0xff]
  %v37 = vld [vmem:[%s1 + $0xa8] sm:$0xff]
  %v38 = vld [vmem:[%s1 + $0xb0] sm:$0xff]
  %v39 = vld [vmem:[%s1 + $0xb8] sm:$0xff]
  %v40 = vld [vmem:[%s1 + $0xc0] sm:$0xff]
  %v41 = vld [vmem:[%s1 + $0xc8] sm:$0xff]
  %v42 = vld [vmem:[%s1 + $0xd0] sm:$0xff]
  %v43 = vld [vmem:[%s1 + $0xd8] sm:$0xff]
  %v44 = vld [vmem:[%s1 + $0xe0] sm:$0xff]
  %v45 = vld [vmem:[%s1 + $0xe8] sm:$0xff]
  %v46 = vld [vmem:[%s1 + $0xf0] sm:$0xff]
  %v47 = vld [vmem:[%s1 + $0xf8] sm:$0xff]
  %v48 = vld [vmem:[%s2] sm:$0x1]
  %v50 = vlaneseq
  %v51 = vshrl.u32 %v50, 7
  %v52 = vsub.s32 0, %v51
  %v53 = vrot.slane %v48, %v52
  %55 = vmatprep.subr.mxu0 0.0
  %56 = vmatpush1.msra.mxu0 %v31
  %57 = vmatprep.subr.mxu0 0.0
  %58 = vmatpush1.msra.mxu0 %v30
  %59 = vmatprep.subr.mxu0 0.0
  %60 = vmatpush1.msra.mxu0 %v29
  %61 = vmatprep.subr.mxu0 0.0
  %62 = vmatpush1.msra.mxu0 %v28
  %63 = vmatprep.subr.mxu0 0.0
  %64 = vmatpush1.msra.mxu0 %v27
  %65 = vmatprep.subr.mxu0 0.0
  %66 = vmatpush1.msra.mxu0 %v26
  %67 = vmatprep.subr.mxu0 0.0
  %68 = vmatpush1.msra.mxu0 %v25
  %69 = vmatprep.subr.mxu0 0.0
  %70 = vmatpush1.msra.mxu0 %v24
  %71 = vmatprep.subr.mxu0 0.0
  %72 = vmatpush1.msra.mxu0 %v23
  %73 = vmatprep.subr.mxu0 0.0
  %74 = vmatpush1.msra.mxu0 %v22
  %75 = vmatprep.subr.mxu0 0.0
  %76 = vmatpush1.msra.mxu0 %v21
  %77 = vmatprep.subr.mxu0 0.0
  %78 = vmatpush1.msra.mxu0 %v20
  %79 = vmatprep.subr.mxu0 0.0
  %80 = vmatpush1.msra.mxu0 %v19
  %81 = vmatprep.subr.mxu0 0.0
  %82 = vmatpush1.msra.mxu0 %v18
  %83 = vmatprep.subr.mxu0 0.0
  %84 = vmatpush1.msra.mxu0 %v17
  %85 = vmatprep.subr.mxu0 0.0
  %86 = vmatpush1.msra.mxu0 %v16
  %87 = vmatprep.subr.mxu0 0.0
  %88 = vmatpush2.msra.mxu0 %v47
  %89 = vmatprep.subr.mxu0 0.0
  %90 = vmatpush2.msra.mxu0 %v46
  %91 = vmatprep.subr.mxu0 0.0
  %92 = vmatpush2.msra.mxu0 %v45
  %93 = vmatprep.subr.mxu0 0.0
  %94 = vmatpush2.msra.mxu0 %v44
  %95 = vmatprep.subr.mxu0 0.0
  %96 = vmatpush2.msra.mxu0 %v43
  %97 = vmatprep.subr.mxu0 0.0
  %98 = vmatpush2.msra.mxu0 %v42
  %99 = vmatprep.subr.mxu0 0.0
  %100 = vmatpush2.msra.mxu0 %v41
  %101 = vmatprep.subr.mxu0 0.0
  %102 = vmatpush2.msra.mxu0 %v40
  %103 = vmatprep.subr.mxu0 0.0
  %104 = vmatpush2.msra.mxu0 %v39
  %105 = vmatprep.subr.mxu0 0.0
  %106 = vmatpush2.msra.mxu0 %v38
  %107 = vmatprep.subr.mxu0 0.0
  %108 = vmatpush2.msra.mxu0 %v37
  %109 = vmatprep.subr.mxu0 0.0
  %110 = vmatpush2.msra.mxu0 %v36
  %111 = vmatprep.subr.mxu0 0.0
  %112 = vmatpush2.msra.mxu0 %v35
  %113 = vmatprep.subr.mxu0 0.0
  %114 = vmatpush2.msra.mxu0 %v34
  %115 = vmatprep.subr.mxu0 0.0
  %116 = vmatpush2.msra.mxu0 %v33
  %117 = vmatprep.subr.mxu0 0.0
  %118 = vmatpush2.msra.mxu0 %v32
  %119 = vmatprep.mubr.f32.mxu0 %v15
  %120 = vmatmul.mubr.f32.gmra.mxu0 %v14
  %v121 = vpop.f32.mrf.mxu0
  %v122 = vadd.f32 %v53, %v121
  %v123 = vpop.f32.mrf.mxu0
  %124 = vdwg.mxu0
  %vm125 = vcmask 80896
  %126 = vst.msk [vmem:[%s3] sm:$0xff] %vm125, %v122
  // Predicated region
  $region14: #{forward.13} parent=0 // pred_check
    _
  $region15: #{forward.13} parent=0 // pred_check_branch
    %128 = sbr.rel (0) target = $region17
  $region16: #{forward.13} parent=0 // pred_region
    _
  $region17: #{forward.13} parent=0 // pred_fallthru
    _
  // Predicated region
  $region18: #{forward.13} parent=0 // pred_check
    _
  $region19: #{forward.13} parent=0 // pred_check_branch
    %130 = sbr.rel (0) target = $region21
  $region20: #{forward.13} parent=0 // pred_region
    _
  $region21: #{forward.13} parent=0 // pred_fallthru
    _

</llo_original>
